<compile_context>
chip_gen: v5e
topology: v5e:2x2
jax: 0.10.0
libtpu: 0.0.40
codegen_flags: <defaults>
</compile_context>

<pallas_src>
import functools

import jax
import jax.numpy as jnp
from jax.experimental import pallas as pl
from jax.experimental.pallas import tpu as pltpu


# ----------------------------------------------------------------------------
# helpers
# ----------------------------------------------------------------------------
def _round_up(v, m):
    return ((v + m - 1) // m) * m


def _vmem_limit_bytes(est_bytes):
    """Generation-aware scoped-VMEM limit; never request more than needed."""
    cap = None
    try:
        info = pltpu.get_tpu_info()
        cap = int(getattr(info, "vmem_capacity_bytes", 0)) or None
    except Exception:
        cap = None
    if cap is None:
        cap = 64 * 1024 * 1024                      # conservative (v7x physical)
    ceiling = min(cap * 7 // 8, 100 * 1024 * 1024)  # ~100 MiB v5e/v6e, ~56 MiB v7x
    want = max(32 * 1024 * 1024, 2 * est_bytes)
    return int(min(ceiling, want))


def _pack_conv_w(wt, c, cp, dtype):
    """HWIO (3,3,c,c) -> (3, 3*cp, cp): per-kh weight with the 3 kw taps
    stacked along K (matches the in-kernel width-im2col order)."""
    wt = jnp.pad(wt, ((0, 0), (0, 0), (0, cp - c), (0, cp - c)))
    return wt.astype(dtype).reshape(3, 3 * cp, cp)


def _pack_bias(bt, c, cp):
    return jnp.pad(bt, (0, cp - c)).astype(jnp.float32).reshape(1, cp)


# ----------------------------------------------------------------------------
# fused AAG kernel
#   grid = (batch, n_resblocks + 1); step l < nrb: one full RB
#   (conv -> ReLU -> conv); step l == nrb: trailing conv + residual add.
# ----------------------------------------------------------------------------
def _aag_kernel(x_ref, wa_ref, ba_ref, wb_ref, bb_ref, o_ref,
                buf_a, buf_b, cat_ref, *, h, w, wq, cp, nrb):
    l = pl.program_id(1)

    # ---- first layer step for this image: zero borders, stage the input ----
    @pl.when(l == 0)
    def _stage_input():
        buf_a[...] = jnp.zeros_like(buf_a)
        buf_b[...] = jnp.zeros_like(buf_b)
        # x is already zero-padded in W and C, so this keeps the zero border
        # (SAME-conv padding) intact outside the true h x w image.
        buf_a[1:h + 1, 1:1 + wq, :] = x_ref[0]

    def conv3x3(src_ref, w3_ref, b_ref):
        # width-im2col staged once per conv: cat[r, q, kw*cp + c] = src[r, q+kw, c]
        for kw in range(3):
            cat_ref[:, :, kw * cp:(kw + 1) * cp] = src_ref[:, kw:kw + wq, :]
        acc = None
        for kh in range(3):                      # row taps: cheap plane slices
            lhs = cat_ref[kh:kh + h, :, :].reshape(h * wq, 3 * cp)
            part = jnp.dot(lhs, w3_ref[0, kh],
                           preferred_element_type=jnp.float32)
            acc = part if acc is None else acc + part
        return acc.reshape(h, wq, cp) + b_ref[0, 0].astype(jnp.float32)

    # conv "A": RB conv1 for l < nrb, the trailing AAG conv for l == nrb.
    y1 = conv3x3(buf_a, wa_ref, ba_ref)

    @pl.when(l < nrb)
    def _rb_body():
        if wq > w:   # keep W-padding columns exactly zero for later convs
            col = jax.lax.broadcasted_iota(jnp.int32, (1, wq, 1), 1)
            keep = col < w
        a = jnp.maximum(y1, 0.0)
        if wq > w:
            a = jnp.where(keep, a, 0.0)
        buf_b[1:h + 1, 1:1 + wq, :] = a.astype(buf_b.dtype)

        y2 = conv3x3(buf_b, wb_ref, bb_ref)
        if wq > w:
            y2 = jnp.where(keep, y2, 0.0)
        buf_a[1:h + 1, 1:1 + wq, :] = y2.astype(buf_a.dtype)

    @pl.when(l == nrb)
    def _tail():
        # AAG: res = tail_conv(res) + x   (cols [w, wq) are sliced off outside)
        o_ref[0] = (y1 + x_ref[0].astype(jnp.float32)).astype(o_ref.dtype)


# ----------------------------------------------------------------------------
# AAG forward (NCHW in / NCHW out, matching PyTorch convention)
# ----------------------------------------------------------------------------
@functools.partial(jax.jit, static_argnames=("compute_dtype",))
def aag_forward(x_nchw, params, compute_dtype=jnp.bfloat16):
    n, c, h, w = x_nchw.shape
    nrb = len(params["rbs"])
    cp = _round_up(c, 128)          # lane-dense channels
    wq = _round_up(w, 16)           # sublane-aligned stored width
    we = wq + 16                    # +1 left zero col, >=1 right zero col, aligned
    dt = jnp.dtype(compute_dtype)
    itemsize = dt.itemsize

    # --- pack & stack weights so the layer grid axis streams them ------------
    rbs = params["rbs"]
    wa = jnp.stack([_pack_conv_w(w1, c, cp, dt) for (w1, _, _, _) in rbs]
                   + [_pack_conv_w(params["wf"], c, cp, dt)])
    ba = jnp.stack([_pack_bias(b1, c, cp) for (_, b1, _, _) in rbs]
                   + [_pack_bias(params["bf"], c, cp)])
    wb = jnp.stack([_pack_conv_w(w2, c, cp, dt) for (_, _, w2, _) in rbs]
                   + [jnp.zeros((3, 3 * cp, cp), dt)])          # dummy for tail
    bb = jnp.stack([_pack_bias(b2, c, cp) for (_, _, _, b2) in rbs]
                   + [jnp.zeros((1, cp), jnp.float32)])

    # --- NHWC, zero-pad W and C once (no per-layer / halo copies) ------------
    x = jnp.transpose(x_nchw, (0, 2, 3, 1))
    x = jnp.pad(x, ((0, 0), (0, 0), (0, wq - w), (0, cp - c))).astype(dt)

    # --- VMEM budget: the whole image is resident per batch element ----------
    est = (2 * (h + 2) * we * cp            # ping/pong activation buffers
           + (h + 2) * wq * 3 * cp          # width-im2col staging
           + 4 * h * wq * cp                # x / out pipeline buffers (approx)
           + 4 * 3 * 3 * cp * cp) * itemsize
    est += 2 * h * wq * cp * 4              # f32 accumulator temporaries
    limit = _vmem_limit_bytes(est)
    if est > limit:
        raise ValueError(
            f"AAG fused kernel needs ~{est >> 20} MiB VMEM (> {limit >> 20} MiB "
            "available); feature map too large for the VMEM-resident path.")

    kernel = functools.partial(_aag_kernel, h=h, w=w, wq=wq, cp=cp, nrb=nrb)
    out = pl.pallas_call(
        kernel,
        out_shape=jax.ShapeDtypeStruct((n, h, wq, cp), dt),
        grid=(n, nrb + 1),
        in_specs=[
            pl.BlockSpec((1, h, wq, cp), lambda i, l: (i, 0, 0, 0)),      # x
            pl.BlockSpec((1, 3, 3 * cp, cp), lambda i, l: (l, 0, 0, 0)),  # wa
            pl.BlockSpec((1, 1, cp), lambda i, l: (l, 0, 0)),             # ba
            pl.BlockSpec((1, 3, 3 * cp, cp), lambda i, l: (l, 0, 0, 0)),  # wb
            pl.BlockSpec((1, 1, cp), lambda i, l: (l, 0, 0)),             # bb
        ],
        out_specs=pl.BlockSpec((1, h, wq, cp), lambda i, l: (i, 0, 0, 0)),
        scratch_shapes=[
            pltpu.VMEM((h + 2, we, cp), dt),        # buf_a (zero-bordered act)
            pltpu.VMEM((h + 2, we, cp), dt),        # buf_b (ping/pong partner)
            pltpu.VMEM((h + 2, wq, 3 * cp), dt),    # width-im2col staging
        ],
        compiler_params=pltpu.CompilerParams(
            dimension_semantics=("parallel", "arbitrary"),
            vmem_limit_bytes=limit),
    )(x, wa, ba, wb, bb)

    out = out[:, :, :w, :c].astype(x_nchw.dtype)
    return jnp.transpose(out, (0, 3, 1, 2))


# ----------------------------------------------------------------------------
# pure-JAX reference (lax conv) + param init for the self-test
# ----------------------------------------------------------------------------
def aag_reference(x_nchw, params):
    dn = ("NHWC", "HWIO", "NHWC")
    x = jnp.transpose(x_nchw, (0, 2, 3, 1))
    res = x
    for (w1, b1, w2, b2) in params["rbs"]:
        res = jax.lax.conv_general_dilated(res, w1, (1, 1), "SAME",
                                           dimension_numbers=dn) + b1
        res = jnp.maximum(res, 0.0)
        res = jax.lax.conv_general_dilated(res, w2, (1, 1), "SAME",
                                           dimension_numbers=dn) + b2
    res = jax.lax.conv_general_dilated(res, params["wf"], (1, 1), "SAME",
                                       dimension_numbers=dn) + params["bf"]
    res = res + x
    return jnp.transpose(res, (0, 3, 1, 2))


def init_params(key, n_feat, n_resblocks):
    params = {"rbs": []}
    for _ in range(n_resblocks):
        key, k1, k2, k3, k4 = jax.random.split(key, 5)
        w1 = 0.1 * jax.random.normal(k1, (3, 3, n_feat, n_feat), jnp.float32)
        b1 = 0.1 * jax.random.normal(k2, (n_feat,), jnp.float32)
        w2 = 0.1 * jax.random.normal(k3, (3, 3, n_feat, n_feat), jnp.float32)
        b2 = 0.1 * jax.random.normal(k4, (n_feat,), jnp.float32)
        params["rbs"].append((w1, b1, w2, b2))
    key, kf, kb = jax.random.split(key, 3)
    params["wf"] = 0.1 * jax.random.normal(kf, (3, 3, n_feat, n_feat), jnp.float32)
    params["bf"] = 0.1 * jax.random.normal(kb, (n_feat,), jnp.float32)
    return params


if __name__ == "__main__":
    batch, n_feat, H, W = 2, 4, 16, 16
    n_resblocks = 2

    root = jax.random.PRNGKey(0)
    kx, kp = jax.random.split(root)
    x = jax.random.normal(kx, (batch, n_feat, H, W), jnp.float32)   # NCHW
    params = init_params(kp, n_feat, n_resblocks)

    ref = jax.block_until_ready(aag_reference(x, params))

    # f32 compute: tight check against the lax.conv reference
    out_f32 = jax.block_until_ready(
        aag_forward(x, params, compute_dtype=jnp.float32))
    assert out_f32.shape == x.shape and out_f32.dtype == x.dtype
    assert jnp.allclose(out_f32, ref, atol=2e-3, rtol=2e-3), "f32 mismatch"

    # bf16 compute (default path): bf16-appropriate tolerance vs f32 reference
    out_bf16 = jax.block_until_ready(aag_forward(x, params))
    assert out_bf16.shape == x.shape
    assert jnp.allclose(out_bf16, ref, atol=1e-1, rtol=1e-1), "bf16 mismatch"

    print("KERNEL_OK")
</pallas_src>

<mosaic_0001>
module attributes {stable_mosaic.version = 11 : i64} {
  func.func @_aag_kernel(%arg0: i32, %arg1: i32, %arg2: memref<1x16x16x128xf32, #tpu.memory_space<vmem>>, %arg3: memref<1x3x384x128xf32, #tpu.memory_space<vmem>>, %arg4: memref<1x1x128xf32, #tpu.memory_space<vmem>>, %arg5: memref<1x3x384x128xf32, #tpu.memory_space<vmem>>, %arg6: memref<1x1x128xf32, #tpu.memory_space<vmem>>, %arg7: memref<1x16x16x128xf32, #tpu.memory_space<vmem>>, %arg8: memref<18x32x128xf32, #tpu.memory_space<vmem>>, %arg9: memref<18x32x128xf32, #tpu.memory_space<vmem>>, %arg10: memref<18x16x384xf32, #tpu.memory_space<vmem>>) attributes {dimension_semantics = [#tpu.dimension_semantics<parallel>, #tpu.dimension_semantics<arbitrary>], iteration_bounds = array<i64: 2, 3>, scalar_prefetch = 0 : i64, scratch_operands = 3 : i64, tpu.core_type = #tpu.core_type<tc>, window_params = [{transform_indices = @transform_0, window_bounds = array<i64: 1, 16, 16, 128>}, {transform_indices = @transform_1, window_bounds = array<i64: 1, 3, 384, 128>}, {transform_indices = @transform_2, window_bounds = array<i64: 1, 1, 128>}, {transform_indices = @transform_3, window_bounds = array<i64: 1, 3, 384, 128>}, {transform_indices = @transform_4, window_bounds = array<i64: 1, 1, 128>}, {transform_indices = @transform_5, window_bounds = array<i64: 1, 16, 16, 128>}]} {
    %c0_i32 = arith.constant 0 : i32
    %0 = arith.cmpi eq, %arg1, %c0_i32 : i32
    %1 = arith.extui %0 : i1 to i32
    %c0_i32_0 = arith.constant 0 : i32
    %2 = arith.cmpi ne, %1, %c0_i32_0 : i32
    scf.if %2 {
      %cst_43 = arith.constant 0.000000e+00 : f32
      %38 = vector.broadcast %cst_43 : f32 to vector<18x32x128xf32>
      %c0_44 = arith.constant 0 : index
      %c0_45 = arith.constant 0 : index
      %c0_46 = arith.constant 0 : index
      %39 = vector.load %arg8[%c0_44, %c0_45, %c0_46] : memref<18x32x128xf32, #tpu.memory_space<vmem>>, vector<18x32x128xf32>
      tpu.vector_store %arg8[%c0_44, %c0_45, %c0_46], %38 {strides = array<i32>} : memref<18x32x128xf32, #tpu.memory_space<vmem>>, vector<18x32x128xf32>,
      %cst_47 = arith.constant 0.000000e+00 : f32
      %40 = vector.broadcast %cst_47 : f32 to vector<18x32x128xf32>
      %c0_48 = arith.constant 0 : index
      %c0_49 = arith.constant 0 : index
      %c0_50 = arith.constant 0 : index
      %41 = vector.load %arg9[%c0_48, %c0_49, %c0_50] : memref<18x32x128xf32, #tpu.memory_space<vmem>>, vector<18x32x128xf32>
      tpu.vector_store %arg9[%c0_48, %c0_49, %c0_50], %40 {strides = array<i32>} : memref<18x32x128xf32, #tpu.memory_space<vmem>>, vector<18x32x128xf32>,
      %c0_51 = arith.constant 0 : index
      %c0_52 = arith.constant 0 : index
      %c0_53 = arith.constant 0 : index
      %c0_54 = arith.constant 0 : index
      %42 = vector.load %arg2[%c0_51, %c0_52, %c0_53, %c0_54] : memref<1x16x16x128xf32, #tpu.memory_space<vmem>>, vector<1x16x16x128xf32>
      %43 = vector.shape_cast %42 : vector<1x16x16x128xf32> to vector<16x16x128xf32>
      %c1_55 = arith.constant 1 : index
      %c1_56 = arith.constant 1 : index
      %c0_57 = arith.constant 0 : index
      %44 = vector.load %arg8[%c1_55, %c1_56, %c0_57] : memref<18x32x128xf32, #tpu.memory_space<vmem>>, vector<16x16x128xf32>
      tpu.vector_store %arg8[%c1_55, %c1_56, %c0_57], %43 {strides = array<i32>} : memref<18x32x128xf32, #tpu.memory_space<vmem>>, vector<16x16x128xf32>,
    } else {
    }
    %c0 = arith.constant 0 : index
    %c0_1 = arith.constant 0 : index
    %c0_2 = arith.constant 0 : index
    %3 = vector.load %arg8[%c0, %c0_1, %c0_2] : memref<18x32x128xf32, #tpu.memory_space<vmem>>, vector<18x16x128xf32>
    %c0_3 = arith.constant 0 : index
    %c0_4 = arith.constant 0 : index
    %c0_5 = arith.constant 0 : index
    %4 = vector.load %arg10[%c0_3, %c0_4, %c0_5] : memref<18x16x384xf32, #tpu.memory_space<vmem>>, vector<18x16x128xf32>
    tpu.vector_store %arg10[%c0_3, %c0_4, %c0_5], %3 {strides = array<i32>} : memref<18x16x384xf32, #tpu.memory_space<vmem>>, vector<18x16x128xf32>,
    %c0_6 = arith.constant 0 : index
    %c1 = arith.constant 1 : index
    %c0_7 = arith.constant 0 : index
    %5 = vector.load %arg8[%c0_6, %c1, %c0_7] : memref<18x32x128xf32, #tpu.memory_space<vmem>>, vector<18x16x128xf32>
    %c0_8 = arith.constant 0 : index
    %c0_9 = arith.constant 0 : index
    %c128 = arith.constant 128 : index
    %6 = vector.load %arg10[%c0_8, %c0_9, %c128] : memref<18x16x384xf32, #tpu.memory_space<vmem>>, vector<18x16x128xf32>
    tpu.vector_store %arg10[%c0_8, %c0_9, %c128], %5 {strides = array<i32>} : memref<18x16x384xf32, #tpu.memory_space<vmem>>, vector<18x16x128xf32>,
    %c0_10 = arith.constant 0 : index
    %c2 = arith.constant 2 : index
    %c0_11 = arith.constant 0 : index
    %7 = vector.load %arg8[%c0_10, %c2, %c0_11] : memref<18x32x128xf32, #tpu.memory_space<vmem>>, vector<18x16x128xf32>
    %c0_12 = arith.constant 0 : index
    %c0_13 = arith.constant 0 : index
    %c256 = arith.constant 256 : index
    %8 = vector.load %arg10[%c0_12, %c0_13, %c256] : memref<18x16x384xf32, #tpu.memory_space<vmem>>, vector<18x16x128xf32>
    tpu.vector_store %arg10[%c0_12, %c0_13, %c256], %7 {strides = array<i32>} : memref<18x16x384xf32, #tpu.memory_space<vmem>>, vector<18x16x128xf32>,
    %c0_14 = arith.constant 0 : index
    %c0_15 = arith.constant 0 : index
    %c0_16 = arith.constant 0 : index
    %9 = vector.load %arg10[%c0_14, %c0_15, %c0_16] : memref<18x16x384xf32, #tpu.memory_space<vmem>>, vector<16x16x384xf32>
    %10 = vector.shape_cast %9 : vector<16x16x384xf32> to vector<256x384xf32>
    %c0_17 = arith.constant 0 : index
    %c0_18 = arith.constant 0 : index
    %c0_19 = arith.constant 0 : index
    %c0_20 = arith.constant 0 : index
    %11 = vector.load %arg3[%c0_17, %c0_18, %c0_19, %c0_20] : memref<1x3x384x128xf32, #tpu.memory_space<vmem>>, vector<1x1x384x128xf32>
    %12 = vector.shape_cast %11 : vector<1x1x384x128xf32> to vector<384x128xf32>
    %cst = arith.constant dense<0.000000e+00> : vector<256x128xf32>
    %13 = tpu.matmul %10, %12, %cst {dimension_numbers = #tpu.dot_dimension_numbers<[1], [0], [0], [1], [0, 0, 1, 1], [], []>} : vector<256x384xf32>, vector<384x128xf32>, vector<256x128xf32> -> vector<256x128xf32>
    %c1_21 = arith.constant 1 : index
    %c0_22 = arith.constant 0 : index
    %c0_23 = arith.constant 0 : index
    %14 = vector.load %arg10[%c1_21, %c0_22, %c0_23] : memref<18x16x384xf32, #tpu.memory_space<vmem>>, vector<16x16x384xf32>
    %15 = vector.shape_cast %14 : vector<16x16x384xf32> to vector<256x384xf32>
    %c0_24 = arith.constant 0 : index
    %c1_25 = arith.constant 1 : index
    %c0_26 = arith.constant 0 : index
    %c0_27 = arith.constant 0 : index
    %16 = vector.load %arg3[%c0_24, %c1_25, %c0_26, %c0_27] : memref<1x3x384x128xf32, #tpu.memory_space<vmem>>, vector<1x1x384x128xf32>
    %17 = vector.shape_cast %16 : vector<1x1x384x128xf32> to vector<384x128xf32>
    %cst_28 = arith.constant dense<0.000000e+00> : vector<256x128xf32>
    %18 = tpu.matmul %15, %17, %cst_28 {dimension_numbers = #tpu.dot_dimension_numbers<[1], [0], [0], [1], [0, 0, 1, 1], [], []>} : vector<256x384xf32>, vector<384x128xf32>, vector<256x128xf32> -> vector<256x128xf32>
    %19 = arith.addf %13, %18 : vector<256x128xf32>
    %c2_29 = arith.constant 2 : index
    %c0_30 = arith.constant 0 : index
    %c0_31 = arith.constant 0 : index
    %20 = vector.load %arg10[%c2_29, %c0_30, %c0_31] : memref<18x16x384xf32, #tpu.memory_space<vmem>>, vector<16x16x384xf32>
    %21 = vector.shape_cast %20 : vector<16x16x384xf32> to vector<256x384xf32>
    %c0_32 = arith.constant 0 : index
    %c2_33 = arith.constant 2 : index
    %c0_34 = arith.constant 0 : index
    %c0_35 = arith.constant 0 : index
    %22 = vector.load %arg3[%c0_32, %c2_33, %c0_34, %c0_35] : memref<1x3x384x128xf32, #tpu.memory_space<vmem>>, vector<1x1x384x128xf32>
    %23 = vector.shape_cast %22 : vector<1x1x384x128xf32> to vector<384x128xf32>
    %cst_36 = arith.constant dense<0.000000e+00> : vector<256x128xf32>
    %24 = tpu.matmul %21, %23, %cst_36 {dimension_numbers = #tpu.dot_dimension_numbers<[1], [0], [0], [1], [0, 0, 1, 1], [], []>} : vector<256x384xf32>, vector<384x128xf32>, vector<256x128xf32> -> vector<256x128xf32>
    %25 = arith.addf %19, %24 : vector<256x128xf32>
    %26 = vector.shape_cast %25 : vector<256x128xf32> to vector<16x16x128xf32>
    %c0_37 = arith.constant 0 : index
    %c0_38 = arith.constant 0 : index
    %c0_39 = arith.constant 0 : index
    %27 = vector.load %arg4[%c0_37, %c0_38, %c0_39] : memref<1x1x128xf32, #tpu.memory_space<vmem>>, vector<1x1x128xf32>
    %28 = vector.shape_cast %27 : vector<1x1x128xf32> to vector<128xf32>
    %29 = vector.shape_cast %28 : vector<128xf32> to vector<1x1x128xf32>
    %30 = vector.broadcast %29 : vector<1x1x128xf32> to vector<16x16x128xf32>
    %31 = arith.addf %26, %30 : vector<16x16x128xf32>
    %c2_i32 = arith.constant 2 : i32
    %32 = arith.cmpi slt, %arg1, %c2_i32 : i32
    %33 = arith.extui %32 : i1 to i32
    %c0_i32_40 = arith.constant 0 : i32
    %34 = arith.cmpi ne, %33, %c0_i32_40 : i32
    scf.if %34 {
      %cst_43 = arith.constant 0.000000e+00 : f32
      %38 = vector.broadcast %cst_43 : f32 to vector<16x16x128xf32>
      %39 = arith.maximumf %31, %38 : vector<16x16x128xf32>
      %c1_44 = arith.constant 1 : index
      %c1_45 = arith.constant 1 : index
      %c0_46 = arith.constant 0 : index
      %40 = vector.load %arg9[%c1_44, %c1_45, %c0_46] : memref<18x32x128xf32, #tpu.memory_space<vmem>>, vector<16x16x128xf32>
      tpu.vector_store %arg9[%c1_44, %c1_45, %c0_46], %39 {strides = array<i32>} : memref<18x32x128xf32, #tpu.memory_space<vmem>>, vector<16x16x128xf32>,
      %c0_47 = arith.constant 0 : index
      %c0_48 = arith.constant 0 : index
      %c0_49 = arith.constant 0 : index
      %41 = vector.load %arg9[%c0_47, %c0_48, %c0_49] : memref<18x32x128xf32, #tpu.memory_space<vmem>>, vector<18x16x128xf32>
      %c0_50 = arith.constant 0 : index
      %c0_51 = arith.constant 0 : index
      %c0_52 = arith.constant 0 : index
      %42 = vector.load %arg10[%c0_50, %c0_51, %c0_52] : memref<18x16x384xf32, #tpu.memory_space<vmem>>, vector<18x16x128xf32>
      tpu.vector_store %arg10[%c0_50, %c0_51, %c0_52], %41 {strides = array<i32>} : memref<18x16x384xf32, #tpu.memory_space<vmem>>, vector<18x16x128xf32>,
      %c0_53 = arith.constant 0 : index
      %c1_54 = arith.constant 1 : index
      %c0_55 = arith.constant 0 : index
      %43 = vector.load %arg9[%c0_53, %c1_54, %c0_55] : memref<18x32x128xf32, #tpu.memory_space<vmem>>, vector<18x16x128xf32>
      %c0_56 = arith.constant 0 : index
      %c0_57 = arith.constant 0 : index
      %c128_58 = arith.constant 128 : index
      %44 = vector.load %arg10[%c0_56, %c0_57, %c128_58] : memref<18x16x384xf32, #tpu.memory_space<vmem>>, vector<18x16x128xf32>
      tpu.vector_store %arg10[%c0_56, %c0_57, %c128_58], %43 {strides = array<i32>} : memref<18x16x384xf32, #tpu.memory_space<vmem>>, vector<18x16x128xf32>,
      %c0_59 = arith.constant 0 : index
      %c2_60 = arith.constant 2 : index
      %c0_61 = arith.constant 0 : index
      %45 = vector.load %arg9[%c0_59, %c2_60, %c0_61] : memref<18x32x128xf32, #tpu.memory_space<vmem>>, vector<18x16x128xf32>
      %c0_62 = arith.constant 0 : index
      %c0_63 = arith.constant 0 : index
      %c256_64 = arith.constant 256 : index
      %46 = vector.load %arg10[%c0_62, %c0_63, %c256_64] : memref<18x16x384xf32, #tpu.memory_space<vmem>>, vector<18x16x128xf32>
      tpu.vector_store %arg10[%c0_62, %c0_63, %c256_64], %45 {strides = array<i32>} : memref<18x16x384xf32, #tpu.memory_space<vmem>>, vector<18x16x128xf32>,
      %c0_65 = arith.constant 0 : index
      %c0_66 = arith.constant 0 : index
      %c0_67 = arith.constant 0 : index
      %47 = vector.load %arg10[%c0_65, %c0_66, %c0_67] : memref<18x16x384xf32, #tpu.memory_space<vmem>>, vector<16x16x384xf32>
      %48 = vector.shape_cast %47 : vector<16x16x384xf32> to vector<256x384xf32>
      %c0_68 = arith.constant 0 : index
      %c0_69 = arith.constant 0 : index
      %c0_70 = arith.constant 0 : index
      %c0_71 = arith.constant 0 : index
      %49 = vector.load %arg5[%c0_68, %c0_69, %c0_70, %c0_71] : memref<1x3x384x128xf32, #tpu.memory_space<vmem>>, vector<1x1x384x128xf32>
      %50 = vector.shape_cast %49 : vector<1x1x384x128xf32> to vector<384x128xf32>
      %cst_72 = arith.constant dense<0.000000e+00> : vector<256x128xf32>
      %51 = tpu.matmul %48, %50, %cst_72 {dimension_numbers = #tpu.dot_dimension_numbers<[1], [0], [0], [1], [0, 0, 1, 1], [], []>} : vector<256x384xf32>, vector<384x128xf32>, vector<256x128xf32> -> vector<256x128xf32>
      %c1_73 = arith.constant 1 : index
      %c0_74 = arith.constant 0 : index
      %c0_75 = arith.constant 0 : index
      %52 = vector.load %arg10[%c1_73, %c0_74, %c0_75] : memref<18x16x384xf32, #tpu.memory_space<vmem>>, vector<16x16x384xf32>
      %53 = vector.shape_cast %52 : vector<16x16x384xf32> to vector<256x384xf32>
      %c0_76 = arith.constant 0 : index
      %c1_77 = arith.constant 1 : index
      %c0_78 = arith.constant 0 : index
      %c0_79 = arith.constant 0 : index
      %54 = vector.load %arg5[%c0_76, %c1_77, %c0_78, %c0_79] : memref<1x3x384x128xf32, #tpu.memory_space<vmem>>, vector<1x1x384x128xf32>
      %55 = vector.shape_cast %54 : vector<1x1x384x128xf32> to vector<384x128xf32>
      %cst_80 = arith.constant dense<0.000000e+00> : vector<256x128xf32>
      %56 = tpu.matmul %53, %55, %cst_80 {dimension_numbers = #tpu.dot_dimension_numbers<[1], [0], [0], [1], [0, 0, 1, 1], [], []>} : vector<256x384xf32>, vector<384x128xf32>, vector<256x128xf32> -> vector<256x128xf32>
      %57 = arith.addf %51, %56 : vector<256x128xf32>
      %c2_81 = arith.constant 2 : index
      %c0_82 = arith.constant 0 : index
      %c0_83 = arith.constant 0 : index
      %58 = vector.load %arg10[%c2_81, %c0_82, %c0_83] : memref<18x16x384xf32, #tpu.memory_space<vmem>>, vector<16x16x384xf32>
      %59 = vector.shape_cast %58 : vector<16x16x384xf32> to vector<256x384xf32>
      %c0_84 = arith.constant 0 : index
      %c2_85 = arith.constant 2 : index
      %c0_86 = arith.constant 0 : index
      %c0_87 = arith.constant 0 : index
      %60 = vector.load %arg5[%c0_84, %c2_85, %c0_86, %c0_87] : memref<1x3x384x128xf32, #tpu.memory_space<vmem>>, vector<1x1x384x128xf32>
      %61 = vector.shape_cast %60 : vector<1x1x384x128xf32> to vector<384x128xf32>
      %cst_88 = arith.constant dense<0.000000e+00> : vector<256x128xf32>
      %62 = tpu.matmul %59, %61, %cst_88 {dimension_numbers = #tpu.dot_dimension_numbers<[1], [0], [0], [1], [0, 0, 1, 1], [], []>} : vector<256x384xf32>, vector<384x128xf32>, vector<256x128xf32> -> vector<256x128xf32>
      %63 = arith.addf %57, %62 : vector<256x128xf32>
      %64 = vector.shape_cast %63 : vector<256x128xf32> to vector<16x16x128xf32>
      %c0_89 = arith.constant 0 : index
      %c0_90 = arith.constant 0 : index
      %c0_91 = arith.constant 0 : index
      %65 = vector.load %arg6[%c0_89, %c0_90, %c0_91] : memref<1x1x128xf32, #tpu.memory_space<vmem>>, vector<1x1x128xf32>
      %66 = vector.shape_cast %65 : vector<1x1x128xf32> to vector<128xf32>
      %67 = vector.shape_cast %66 : vector<128xf32> to vector<1x1x128xf32>
      %68 = vector.broadcast %67 : vector<1x1x128xf32> to vector<16x16x128xf32>
      %69 = arith.addf %64, %68 : vector<16x16x128xf32>
      %c1_92 = arith.constant 1 : index
      %c1_93 = arith.constant 1 : index
      %c0_94 = arith.constant 0 : index
      %70 = vector.load %arg8[%c1_92, %c1_93, %c0_94] : memref<18x32x128xf32, #tpu.memory_space<vmem>>, vector<16x16x128xf32>
      tpu.vector_store %arg8[%c1_92, %c1_93, %c0_94], %69 {strides = array<i32>} : memref<18x32x128xf32, #tpu.memory_space<vmem>>, vector<16x16x128xf32>,
    } else {
    }
    %c2_i32_41 = arith.constant 2 : i32
    %35 = arith.cmpi eq, %arg1, %c2_i32_41 : i32
    %36 = arith.extui %35 : i1 to i32
    %c0_i32_42 = arith.constant 0 : i32
    %37 = arith.cmpi ne, %36, %c0_i32_42 : i32
    scf.if %37 {
      %c0_43 = arith.constant 0 : index
      %c0_44 = arith.constant 0 : index
      %c0_45 = arith.constant 0 : index
      %c0_46 = arith.constant 0 : index
      %38 = vector.load %arg2[%c0_43, %c0_44, %c0_45, %c0_46] : memref<1x16x16x128xf32, #tpu.memory_space<vmem>>, vector<1x16x16x128xf32>
      %39 = vector.shape_cast %38 : vector<1x16x16x128xf32> to vector<16x16x128xf32>
      %40 = arith.addf %31, %39 : vector<16x16x128xf32>
      %c0_47 = arith.constant 0 : index
      %c0_48 = arith.constant 0 : index
      %c0_49 = arith.constant 0 : index
      %c0_50 = arith.constant 0 : index
      %41 = vector.load %arg7[%c0_47, %c0_48, %c0_49, %c0_50] : memref<1x16x16x128xf32, #tpu.memory_space<vmem>>, vector<1x16x16x128xf32>
      %42 = vector.shape_cast %41 : vector<1x16x16x128xf32> to vector<16x16x128xf32>
      %43 = vector.shape_cast %40 : vector<16x16x128xf32> to vector<1x16x16x128xf32>
      tpu.vector_store %arg7[%c0_47, %c0_48, %c0_49, %c0_50], %43 {strides = array<i32>} : memref<1x16x16x128xf32, #tpu.memory_space<vmem>>, vector<1x16x16x128xf32>,
    } else {
    }
    return
  }
  func.func @transform_0(%arg0: i32, %arg1: i32) -> (i32, i32, i32, i32) {
    %c0_i32 = arith.constant 0 : i32
    %c0_i32_0 = arith.constant 0 : i32
    %c0_i32_1 = arith.constant 0 : i32
    %c0_i32_2 = arith.constant 0 : i32
    return %arg0, %c0_i32, %c0_i32_0, %c0_i32_1 : i32, i32, i32, i32
  }
  func.func @transform_1(%arg0: i32, %arg1: i32) -> (i32, i32, i32, i32) {
    %c0_i32 = arith.constant 0 : i32
    %c0_i32_0 = arith.constant 0 : i32
    %c0_i32_1 = arith.constant 0 : i32
    %c0_i32_2 = arith.constant 0 : i32
    return %arg1, %c0_i32, %c0_i32_0, %c0_i32_1 : i32, i32, i32, i32
  }
  func.func @transform_2(%arg0: i32, %arg1: i32) -> (i32, i32, i32) {
    %c0_i32 = arith.constant 0 : i32
    %c0_i32_0 = arith.constant 0 : i32
    %c0_i32_1 = arith.constant 0 : i32
    return %arg1, %c0_i32, %c0_i32_0 : i32, i32, i32
  }
  func.func @transform_3(%arg0: i32, %arg1: i32) -> (i32, i32, i32, i32) {
    %c0_i32 = arith.constant 0 : i32
    %c0_i32_0 = arith.constant 0 : i32
    %c0_i32_1 = arith.constant 0 : i32
    %c0_i32_2 = arith.constant 0 : i32
    return %arg1, %c0_i32, %c0_i32_0, %c0_i32_1 : i32, i32, i32, i32
  }
  func.func @transform_4(%arg0: i32, %arg1: i32) -> (i32, i32, i32) {
    %c0_i32 = arith.constant 0 : i32
    %c0_i32_0 = arith.constant 0 : i32
    %c0_i32_1 = arith.constant 0 : i32
    return %arg1, %c0_i32, %c0_i32_0 : i32, i32, i32
  }
  func.func @transform_5(%arg0: i32, %arg1: i32) -> (i32, i32, i32, i32) {
    %c0_i32 = arith.constant 0 : i32
    %c0_i32_0 = arith.constant 0 : i32
    %c0_i32_1 = arith.constant 0 : i32
    %c0_i32_2 = arith.constant 0 : i32
    return %arg0, %c0_i32, %c0_i32_0, %c0_i32_1 : i32, i32, i32, i32
  }
}

</mosaic_0001>

<llo_original>
// kernel: aag_forward.1
$region0: #{aag_forward.1}
  #allocation0 [shape = 'u32[]', space=smem, size = 0x4, offset = 0x4, fixed_abs, tag = 'smem constant byte address 0x4 - core index']
  #allocation1 [shape = 'u32[72,128]{1,0:T(1,128)}', space=vmem, size = 0x9000, scoped, tag = 'internal scratch']
  #allocation2 [shape = 'f32[18,32,128]{2,1,0:T(8,128)}', space=vmem, size = 0x48000, scoped, tag = 'scratch operand']
  #allocation3 [shape = 'f32[18,32,128]{2,1,0:T(8,128)}', space=vmem, size = 0x48000, scoped, tag = 'scratch operand']
  #allocation4 [shape = 'f32[18,16,384]{2,1,0:T(8,128)}', space=vmem, size = 0x6c000, scoped, tag = 'scratch operand']
  %s0 = inlined_call_operand.vmem [shape: f32[2,16,16,128], index: 0, kind: input, shape index: {}]
  %s1 = inlined_call_operand.vmem [shape: f32[3,3,384,128], index: 1, kind: input, shape index: {}]
  %s2 = inlined_call_operand.vmem [shape: f32[3,1,128], index: 2, kind: input, shape index: {}]
  %s3 = inlined_call_operand.vmem [shape: f32[3,3,384,128], index: 3, kind: input, shape index: {}]
  %s4 = inlined_call_operand.vmem [shape: f32[3,1,128], index: 4, kind: input, shape index: {}]
  %s5 = inlined_call_operand.vmem [shape: f32[2,16,16,128], index: 5, kind: output, shape index: {}]
  %s6 = sld [smem:[#allocation0]]
  $region65: #{aag_forward.1} parent=0
    _
  %s8 = ssub.s32 1, %s6
  %s9 = scalar_select 0, %s8, %s6
  loop: start=0, step=1, limit=8
  $region2: #{aag_forward.1} parent=0 // loop_pre_header
    _
  $region3: #{aag_forward.1} parent=0 // loop_header
    %s11 = sphi 0, %s15
    %p12 = scmp.ge.s32.totalorder %s11, 8
    %s18 = sphi 0, %s30
    %s19 = sphi 0, %s26
    %s20 = sphi 0, %s18
    %s21 = sphi 0, %s19
    %s22 = sphi 0, %s20
    %s23 = sphi 0, %s21
    %s33 = sphi 0, %s35
    %s36 = sphi 0, %s33
    %s37 = sphi 0, %s36
    %s53 = sphi 0, %s37
    %s59 = sphi 0, %s61
    %s62 = sphi 0, %s59
    %s63 = sphi 0, %s62
    %s79 = sphi 0, %s63
    %s85 = sphi 0, %s87
    %s88 = sphi 0, %s85
    %s89 = sphi 0, %s88
    %s105 = sphi 0, %s89
    %s111 = sphi 0, %s113
    %s114 = sphi 0, %s111
    %s115 = sphi 0, %s114
    %s131 = sphi 0, %s115
    %s137 = sphi 0, %s139
    %s140 = sphi 0, %s137
    %s141 = sphi 0, %s140
    %s157 = sphi 0, %s141
    %s163 = sphi 0, %s165
    %s166 = sphi 0, %s163
    %s167 = sphi 0, %s166
    %s183 = sphi 0, %s167
  $region4: #{aag_forward.1} parent=0 // loop_header_branch
    %14 = sbr.rel (%p12) target = $region8
  $region5: #{aag_forward.1} parent=0 // loop_body
    %s16 = ssub.s32 %s11, 1
    %s17 = ssub.s32 %s11, 2
    %s24 = sadd.s32 1, %s19
    %p25 = scmp.ge.s32.totalorder %s24, 3
    %s26 = scalar_select %p25, 0, %s24
    %s27 = sadd.s32 1, %s18
    %s28 = scalar_select %p25, %s27, %s18
    %p29 = scmp.ge.s32.totalorder %s28, 2
    %s30 = scalar_select %p29, 0, %s28
    %s31 = ssub.s32 %s18, %s30
    %p32 = scmp.eq.s32.totalorder %s31, 0
    %s34 = sadd.s32 %s33, 1
    %s35 = scalar_select %p32, %s33, %s34
    %p38 = pneg %p32
    %p39 = scmp.eq.s32.totalorder %s11, 5
    %p40 = por %p38, %p39
    %p41 = scmp.ne.s32.totalorder %s33, %s36
    %p42 = scmp.eq.s32.totalorder %s11, 0
    %p43 = por %p41, %p42
    %p44 = scmp.ne.s32.totalorder %s33, %s36
    %p45 = scmp.eq.s32.totalorder %s16, 5
    %p46 = por %p44, %p45
    %p47 = scmp.ne.s32.totalorder %s36, %s37
    %p48 = scmp.eq.s32.totalorder %s16, 0
    %p49 = por %p47, %p48
    %p50 = scmp.ne.s32.totalorder %s36, %s37
    %p51 = scmp.eq.s32.totalorder %s17, 5
    %p52 = por %p50, %p51
    %p54 = scmp.ne.s32.totalorder %s37, %s53
    %p55 = scmp.eq.s32.totalorder %s17, 0
    %p56 = por %p54, %p55
    %s57 = ssub.s32 %s19, %s26
    %p58 = scmp.eq.s32.totalorder %s57, 0
    %s60 = sadd.s32 %s59, 1
    %s61 = scalar_select %p58, %s59, %s60
    %p64 = pneg %p58
    %p65 = scmp.eq.s32.totalorder %s11, 5
    %p66 = por %p64, %p65
    %p67 = scmp.ne.s32.totalorder %s59, %s62
    %p68 = scmp.eq.s32.totalorder %s11, 0
    %p69 = por %p67, %p68
    %p70 = scmp.ne.s32.totalorder %s59, %s62
    %p71 = scmp.eq.s32.totalorder %s16, 5
    %p72 = por %p70, %p71
    %p73 = scmp.ne.s32.totalorder %s62, %s63
    %p74 = scmp.eq.s32.totalorder %s16, 0
    %p75 = por %p73, %p74
    %p76 = scmp.ne.s32.totalorder %s62, %s63
    %p77 = scmp.eq.s32.totalorder %s17, 5
    %p78 = por %p76, %p77
    %p80 = scmp.ne.s32.totalorder %s63, %s79
    %p81 = scmp.eq.s32.totalorder %s17, 0
    %p82 = por %p80, %p81
    %s83 = ssub.s32 %s19, %s26
    %p84 = scmp.eq.s32.totalorder %s83, 0
    %s86 = sadd.s32 %s85, 1
    %s87 = scalar_select %p84, %s85, %s86
    %p90 = pneg %p84
    %p91 = scmp.eq.s32.totalorder %s11, 5
    %p92 = por %p90, %p91
    %p93 = scmp.ne.s32.totalorder %s85, %s88
    %p94 = scmp.eq.s32.totalorder %s11, 0
    %p95 = por %p93, %p94
    %p96 = scmp.ne.s32.totalorder %s85, %s88
    %p97 = scmp.eq.s32.totalorder %s16, 5
    %p98 = por %p96, %p97
    %p99 = scmp.ne.s32.totalorder %s88, %s89
    %p100 = scmp.eq.s32.totalorder %s16, 0
    %p101 = por %p99, %p100
    %p102 = scmp.ne.s32.totalorder %s88, %s89
    %p103 = scmp.eq.s32.totalorder %s17, 5
    %p104 = por %p102, %p103
    %p106 = scmp.ne.s32.totalorder %s89, %s105
    %p107 = scmp.eq.s32.totalorder %s17, 0
    %p108 = por %p106, %p107
    %s109 = ssub.s32 %s19, %s26
    %p110 = scmp.eq.s32.totalorder %s109, 0
    %s112 = sadd.s32 %s111, 1
    %s113 = scalar_select %p110, %s111, %s112
    %p116 = pneg %p110
    %p117 = scmp.eq.s32.totalorder %s11, 5
    %p118 = por %p116, %p117
    %p119 = scmp.ne.s32.totalorder %s111, %s114
    %p120 = scmp.eq.s32.totalorder %s11, 0
    %p121 = por %p119, %p120
    %p122 = scmp.ne.s32.totalorder %s111, %s114
    %p123 = scmp.eq.s32.totalorder %s16, 5
    %p124 = por %p122, %p123
    %p125 = scmp.ne.s32.totalorder %s114, %s115
    %p126 = scmp.eq.s32.totalorder %s16, 0
    %p127 = por %p125, %p126
    %p128 = scmp.ne.s32.totalorder %s114, %s115
    %p129 = scmp.eq.s32.totalorder %s17, 5
    %p130 = por %p128, %p129
    %p132 = scmp.ne.s32.totalorder %s115, %s131
    %p133 = scmp.eq.s32.totalorder %s17, 0
    %p134 = por %p132, %p133
    %s135 = ssub.s32 %s19, %s26
    %p136 = scmp.eq.s32.totalorder %s135, 0
    %s138 = sadd.s32 %s137, 1
    %s139 = scalar_select %p136, %s137, %s138
    %p142 = pneg %p136
    %p143 = scmp.eq.s32.totalorder %s11, 5
    %p144 = por %p142, %p143
    %p145 = scmp.ne.s32.totalorder %s137, %s140
    %p146 = scmp.eq.s32.totalorder %s11, 0
    %p147 = por %p145, %p146
    %p148 = scmp.ne.s32.totalorder %s137, %s140
    %p149 = scmp.eq.s32.totalorder %s16, 5
    %p150 = por %p148, %p149
    %p151 = scmp.ne.s32.totalorder %s140, %s141
    %p152 = scmp.eq.s32.totalorder %s16, 0
    %p153 = por %p151, %p152
    %p154 = scmp.ne.s32.totalorder %s140, %s141
    %p155 = scmp.eq.s32.totalorder %s17, 5
    %p156 = por %p154, %p155
    %p158 = scmp.ne.s32.totalorder %s141, %s157
    %p159 = scmp.eq.s32.totalorder %s17, 0
    %p160 = por %p158, %p159
    %s161 = ssub.s32 %s18, %s30
    %p162 = scmp.eq.s32.totalorder %s161, 0
    %s164 = sadd.s32 %s163, 1
    %s165 = scalar_select %p162, %s163, %s164
    %p168 = pneg %p162
    %p169 = scmp.eq.s32.totalorder %s11, 5
    %p170 = por %p168, %p169
    %p171 = scmp.ne.s32.totalorder %s163, %s166
    %p172 = scmp.eq.s32.totalorder %s11, 0
    %p173 = por %p171, %p172
    %p174 = scmp.ne.s32.totalorder %s163, %s166
    %p175 = scmp.eq.s32.totalorder %s16, 5
    %p176 = por %p174, %p175
    %p177 = scmp.ne.s32.totalorder %s166, %s167
    %p178 = scmp.eq.s32.totalorder %s16, 0
    %p179 = por %p177, %p178
    %p180 = scmp.ne.s32.totalorder %s166, %s167
    %p181 = scmp.eq.s32.totalorder %s17, 5
    %p182 = por %p180, %p181
    %p184 = scmp.ne.s32.totalorder %s167, %s183
    %p185 = scmp.eq.s32.totalorder %s17, 0
    %p186 = por %p184, %p185
    %p187 = scmp.le.s32.totalorder 1, %s11
    %p188 = scmp.lt.s32.totalorder %s11, 7
    %p189 = pnand %p187, %p188
    %p190 = pneg %p189
    // Predicated region
    $region9: #{aag_forward.1} parent=5 // pred_check
      _
    $region10: #{aag_forward.1} parent=5 // pred_check_branch
      %192 = sbr.rel (%p189) target = $region12
    $region11: #{aag_forward.1} parent=5 // pred_region
      %s193 = ssub.s32 %s11, 1
    $region12: #{aag_forward.1} parent=5 // pred_fallthru
      _
    %p194 = scmp.lt.s32.totalorder %s11, 6
    // Predicated region
    $region13: #{aag_forward.1} parent=5 // pred_check
      %p195 = pneg %p194
    $region14: #{aag_forward.1} parent=5 // pred_check_branch
      %197 = sbr.rel (%p195) target = $region16
    $region15: #{aag_forward.1} parent=5 // pred_region
      // Predicated region
      $region17: #{aag_forward.1} parent=15 // pred_check
        %p198 = pneg %p43
      $region18: #{aag_forward.1} parent=15 // pred_check_branch
        %200 = sbr.rel (%p198) target = $region20
      $region19: #{aag_forward.1} parent=15 // pred_region
        %p201 = scmp.lt.s32.totalorder %s18, 1
        %s202 = scalar_select %p201, %s18, 1
        %s203 = smul.addr %s202, 32
        %s204 = smul.addr %s203, 8
        %s205 = scalar_lea.vmem %s0, %s204
      $region20: #{aag_forward.1} parent=15 // pred_fallthru
        _
      // Predicated region
      $region21: #{aag_forward.1} parent=15 // pred_check
        %p206 = pneg %p69
      $region22: #{aag_forward.1} parent=15 // pred_check_branch
        %208 = sbr.rel (%p206) target = $region24
      $region23: #{aag_forward.1} parent=15 // pred_region
        %p209 = scmp.lt.s32.totalorder %s19, 2
        %s210 = scalar_select %p209, %s19, 2
        %s211 = smul.addr %s210, 144
        %s212 = smul.addr %s211, 8
        %s213 = scalar_lea.vmem %s1, %s212
      $region24: #{aag_forward.1} parent=15 // pred_fallthru
        _
      // Predicated region
      $region25: #{aag_forward.1} parent=15 // pred_check
        %p214 = pneg %p95
      $region26: #{aag_forward.1} parent=15 // pred_check_branch
        %216 = sbr.rel (%p214) target = $region28
      $region27: #{aag_forward.1} parent=15 // pred_region
        %p217 = scmp.lt.s32.totalorder %s19, 2
        %s218 = scalar_select %p217, %s19, 2
        %s219 = scalar_lea.vmem %s2, %s218
      $region28: #{aag_forward.1} parent=15 // pred_fallthru
        _
      // Predicated region
      $region29: #{aag_forward.1} parent=15 // pred_check
        %p220 = pneg %p121
      $region30: #{aag_forward.1} parent=15 // pred_check_branch
        %222 = sbr.rel (%p220) target = $region32
      $region31: #{aag_forward.1} parent=15 // pred_region
        %p223 = scmp.lt.s32.totalorder %s19, 2
        %s224 = scalar_select %p223, %s19, 2
        %s225 = smul.addr %s224, 144
        %s226 = smul.addr %s225, 8
        %s227 = scalar_lea.vmem %s3, %s226
      $region32: #{aag_forward.1} parent=15 // pred_fallthru
        _
      // Predicated region
      $region33: #{aag_forward.1} parent=15 // pred_check
        %p228 = pneg %p147
      $region34: #{aag_forward.1} parent=15 // pred_check_branch
        %230 = sbr.rel (%p228) target = $region36
      $region35: #{aag_forward.1} parent=15 // pred_region
        %p231 = scmp.lt.s32.totalorder %s19, 2
        %s232 = scalar_select %p231, %s19, 2
        %s233 = scalar_lea.vmem %s4, %s232
      $region36: #{aag_forward.1} parent=15 // pred_fallthru
        _
    $region16: #{aag_forward.1} parent=5 // pred_fallthru
      _
    %p234 = scmp.le.s32.totalorder 1, %s11
    %p235 = scmp.lt.s32.totalorder %s11, 7
    %p236 = pnand %p234, %p235
    %p237 = pneg %p236
    // Predicated region
    $region37: #{aag_forward.1} parent=5 // pred_check
      _
    $region38: #{aag_forward.1} parent=5 // pred_check_branch
      %239 = sbr.rel (%p236) target = $region40
    $region39: #{aag_forward.1} parent=5 // pred_region
      %s240 = ssub.s32 %s11, 1
      %p241 = scmp.lt.s32.totalorder %s20, 1
      %s242 = scalar_select %p241, %s20, 1
      %s243 = smul.addr %s242, 32
      %s244 = smul.addr %s243, 8
      %s245 = scalar_lea.vmem %s0, %s244
      %p246 = pneg %p49
      %p247 = pneg %p46
      %p248 = scmp.lt.s32.totalorder %s21, 2
      %s249 = scalar_select %p248, %s21, 2
      %s250 = smul.addr %s249, 144
      %s251 = smul.addr %s250, 8
      %s252 = scalar_lea.vmem %s1, %s251
      %p253 = pneg %p75
      %p254 = pneg %p72
      %p255 = scmp.lt.s32.totalorder %s21, 2
      %s256 = scalar_select %p255, %s21, 2
      %s257 = scalar_lea.vmem %s2, %s256
      %p258 = pneg %p101
      %p259 = pneg %p98
      %p260 = scmp.lt.s32.totalorder %s21, 2
      %s261 = scalar_select %p260, %s21, 2
      %s262 = smul.addr %s261, 144
      %s263 = smul.addr %s262, 8
      %s264 = scalar_lea.vmem %s3, %s263
      %p265 = pneg %p127
      %p266 = pneg %p124
      %p267 = scmp.lt.s32.totalorder %s21, 2
      %s268 = scalar_select %p267, %s21, 2
      %s269 = scalar_lea.vmem %s4, %s268
      %p270 = pneg %p153
      %p271 = pneg %p150
      %p272 = pneg %p179
      %p273 = pneg %p176
      %p274 = scmp.lt.s32.totalorder %s20, 1
      %s275 = scalar_select %p274, %s20, 1
      %s276 = smul.addr %s275, 32
      %s277 = smul.addr %s276, 8
      %s278 = scalar_lea.vmem %s5, %s277
      %p279 = scmp.lt.s32.totalorder %s20, 1
      %s280 = scalar_select %p279, %s20, 1
      %s281 = smul.addr %s280, 32
      %s282 = smul.addr %s281, 8
      %s283 = scalar_lea.vmem %s0, %s282
      %p284 = scmp.lt.s32.totalorder %s21, 2
      %s285 = scalar_select %p284, %s21, 2
      %s286 = smul.addr %s285, 144
      %s287 = smul.addr %s286, 8
      %s288 = scalar_lea.vmem %s1, %s287
      %p289 = scmp.lt.s32.totalorder %s21, 2
      %s290 = scalar_select %p289, %s21, 2
      %s291 = scalar_lea.vmem %s2, %s290
      %p292 = scmp.lt.s32.totalorder %s21, 2
      %s293 = scalar_select %p292, %s21, 2
      %s294 = smul.addr %s293, 144
      %s295 = smul.addr %s294, 8
      %s296 = scalar_lea.vmem %s3, %s295
      %p297 = scmp.lt.s32.totalorder %s21, 2
      %s298 = scalar_select %p297, %s21, 2
      %s299 = scalar_lea.vmem %s4, %s298
      %p300 = scmp.lt.s32.totalorder %s20, 1
      %s301 = scalar_select %p300, %s20, 1
      %s302 = smul.addr %s301, 32
      %s303 = smul.addr %s302, 8
      %s304 = scalar_lea.vmem %s5, %s303
      %p305 = scmp.eq.s32.totalorder %s21, 0
      // Predicated region
      $region41: #{aag_forward.1} parent=39 // pred_check
        %p306 = pneg %p305
      $region42: #{aag_forward.1} parent=39 // pred_check_branch
        %308 = sbr.rel (%p306) target = $region44
      $region43: #{aag_forward.1} parent=39 // pred_region
        %309 = vst [vmem:[#allocation2] sm:$0xff] 0.0
        %310 = vst [vmem:[#allocation2 + $0x8] sm:$0xff] 0.0
        %311 = vst [vmem:[#allocation2 + $0x10] sm:$0xff] 0.0
        %312 = vst [vmem:[#allocation2 + $0x18] sm:$0xff] 0.0
        %313 = vst [vmem:[#allocation2 + $0x20] sm:$0xff] 0.0
        %314 = vst [vmem:[#allocation2 + $0x28] sm:$0xff] 0.0
        %315 = vst [vmem:[#allocation2 + $0x30] sm:$0xff] 0.0
        %316 = vst [vmem:[#allocation2 + $0x38] sm:$0xff] 0.0
        %317 = vst [vmem:[#allocation2 + $0x40] sm:$0xff] 0.0
        %318 = vst [vmem:[#allocation2 + $0x48] sm:$0xff] 0.0
        %319 = vst [vmem:[#allocation2 + $0x50] sm:$0xff] 0.0
        %320 = vst [vmem:[#allocation2 + $0x58] sm:$0xff] 0.0
        %321 = vst [vmem:[#allocation2 + $0x60] sm:$0xff] 0.0
        %322 = vst [vmem:[#allocation2 + $0x68] sm:$0xff] 0.0
        %323 = vst [vmem:[#allocation2 + $0x70] sm:$0xff] 0.0
        %324 = vst [vmem:[#allocation2 + $0x78] sm:$0xff] 0.0
        %325 = vst [vmem:[#allocation2 + $0x80] sm:$0xff] 0.0
        %326 = vst [vmem:[#allocation2 + $0x88] sm:$0xff] 0.0
        %327 = vst [vmem:[#allocation2 + $0x90] sm:$0xff] 0.0
        %328 = vst [vmem:[#allocation2 + $0x98] sm:$0xff] 0.0
        %329 = vst [vmem:[#allocation2 + $0xa0] sm:$0xff] 0.0
        %330 = vst [vmem:[#allocation2 + $0xa8] sm:$0xff] 0.0
        %331 = vst [vmem:[#allocation2 + $0xb0] sm:$0xff] 0.0
        %332 = vst [vmem:[#allocation2 + $0xb8] sm:$0xff] 0.0
        %333 = vst [vmem:[#allocation2 + $0xc0] sm:$0xff] 0.0
        %334 = vst [vmem:[#allocation2 + $0xc8] sm:$0xff] 0.0
        %335 = vst [vmem:[#allocation2 + $0xd0] sm:$0xff] 0.0
        %336 = vst [vmem:[#allocation2 + $0xd8] sm:$0xff] 0.0
        %337 = vst [vmem:[#allocation2 + $0xe0] sm:$0xff] 0.0
        %338 = vst [vmem:[#allocation2 + $0xe8] sm:$0xff] 0.0
        %339 = vst [vmem:[#allocation2 + $0xf0] sm:$0xff] 0.0
        %340 = vst [vmem:[#allocation2 + $0xf8] sm:$0xff] 0.0
        %341 = vst [vmem:[#allocation2 + $0x100] sm:$0xff] 0.0
        %342 = vst [vmem:[#allocation2 + $0x108] sm:$0xff] 0.0
        %343 = vst [vmem:[#allocation2 + $0x110] sm:$0xff] 0.0
        %344 = vst [vmem:[#allocation2 + $0x118] sm:$0xff] 0.0
        %345 = vst [vmem:[#allocation2 + $0x120] sm:$0xff] 0.0
        %346 = vst [vmem:[#allocation2 + $0x128] sm:$0xff] 0.0
        %347 = vst [vmem:[#allocation2 + $0x130] sm:$0xff] 0.0
        %348 = vst [vmem:[#allocation2 + $0x138] sm:$0xff] 0.0
        %349 = vst [vmem:[#allocation2 + $0x140] sm:$0xff] 0.0
        %350 = vst [vmem:[#allocation2 + $0x148] sm:$0xff] 0.0
        %351 = vst [vmem:[#allocation2 + $0x150] sm:$0xff] 0.0
        %352 = vst [vmem:[#allocation2 + $0x158] sm:$0xff] 0.0
        %353 = vst [vmem:[#allocation2 + $0x160] sm:$0xff] 0.0
        %354 = vst [vmem:[#allocation2 + $0x168] sm:$0xff] 0.0
        %355 = vst [vmem:[#allocation2 + $0x170] sm:$0xff] 0.0
        %356 = vst [vmem:[#allocation2 + $0x178] sm:$0xff] 0.0
        %357 = vst [vmem:[#allocation2 + $0x180] sm:$0xff] 0.0
        %358 = vst [vmem:[#allocation2 + $0x188] sm:$0xff] 0.0
        %359 = vst [vmem:[#allocation2 + $0x190] sm:$0xff] 0.0
        %360 = vst [vmem:[#allocation2 + $0x198] sm:$0xff] 0.0
        %361 = vst [vmem:[#allocation2 + $0x1a0] sm:$0xff] 0.0
        %362 = vst [vmem:[#allocation2 + $0x1a8] sm:$0xff] 0.0
        %363 = vst [vmem:[#allocation2 + $0x1b0] sm:$0xff] 0.0
        %364 = vst [vmem:[#allocation2 + $0x1b8] sm:$0xff] 0.0
        %365 = vst [vmem:[#allocation2 + $0x1c0] sm:$0xff] 0.0
        %366 = vst [vmem:[#allocation2 + $0x1c8] sm:$0xff] 0.0
        %367 = vst [vmem:[#allocation2 + $0x1d0] sm:$0xff] 0.0
        %368 = vst [vmem:[#allocation2 + $0x1d8] sm:$0xff] 0.0
        %369 = vst [vmem:[#allocation2 + $0x1e0] sm:$0xff] 0.0
        %370 = vst [vmem:[#allocation2 + $0x1e8] sm:$0xff] 0.0
        %371 = vst [vmem:[#allocation2 + $0x1f0] sm:$0xff] 0.0
        %372 = vst [vmem:[#allocation2 + $0x1f8] sm:$0xff] 0.0
        %373 = vst [vmem:[#allocation2 + $0x200] sm:$0xff] 0.0
        %374 = vst [vmem:[#allocation2 + $0x208] sm:$0xff] 0.0
        %375 = vst [vmem:[#allocation2 + $0x210] sm:$0xff] 0.0
        %376 = vst [vmem:[#allocation2 + $0x218] sm:$0xff] 0.0
        %377 = vst [vmem:[#allocation2 + $0x220] sm:$0xff] 0.0
        %378 = vst [vmem:[#allocation2 + $0x228] sm:$0xff] 0.0
        %379 = vst [vmem:[#allocation2 + $0x230] sm:$0xff] 0.0
        %380 = vst [vmem:[#allocation2 + $0x238] sm:$0xff] 0.0
        %381 = vst [vmem:[#allocation3] sm:$0xff] 0.0
        %382 = vst [vmem:[#allocation3 + $0x8] sm:$0xff] 0.0
        %383 = vst [vmem:[#allocation3 + $0x10] sm:$0xff] 0.0
        %384 = vst [vmem:[#allocation3 + $0x18] sm:$0xff] 0.0
        %385 = vst [vmem:[#allocation3 + $0x20] sm:$0xff] 0.0
        %386 = vst [vmem:[#allocation3 + $0x28] sm:$0xff] 0.0
        %387 = vst [vmem:[#allocation3 + $0x30] sm:$0xff] 0.0
        %388 = vst [vmem:[#allocation3 + $0x38] sm:$0xff] 0.0
        %389 = vst [vmem:[#allocation3 + $0x40] sm:$0xff] 0.0
        %390 = vst [vmem:[#allocation3 + $0x48] sm:$0xff] 0.0
        %391 = vst [vmem:[#allocation3 + $0x50] sm:$0xff] 0.0
        %392 = vst [vmem:[#allocation3 + $0x58] sm:$0xff] 0.0
        %393 = vst [vmem:[#allocation3 + $0x60] sm:$0xff] 0.0
        %394 = vst [vmem:[#allocation3 + $0x68] sm:$0xff] 0.0
        %395 = vst [vmem:[#allocation3 + $0x70] sm:$0xff] 0.0
        %396 = vst [vmem:[#allocation3 + $0x78] sm:$0xff] 0.0
        %397 = vst [vmem:[#allocation3 + $0x80] sm:$0xff] 0.0
        %398 = vst [vmem:[#allocation3 + $0x88] sm:$0xff] 0.0
        %399 = vst [vmem:[#allocation3 + $0x90] sm:$0xff] 0.0
        %400 = vst [vmem:[#allocation3 + $0x98] sm:$0xff] 0.0
        %401 = vst [vmem:[#allocation3 + $0xa0] sm:$0xff] 0.0
        %402 = vst [vmem:[#allocation3 + $0xa8] sm:$0xff] 0.0
        %403 = vst [vmem:[#allocation3 + $0xb0] sm:$0xff] 0.0
        %404 = vst [vmem:[#allocation3 + $0xb8] sm:$0xff] 0.0
        %405 = vst [vmem:[#allocation3 + $0xc0] sm:$0xff] 0.0
        %406 = vst [vmem:[#allocation3 + $0xc8] sm:$0xff] 0.0
        %407 = vst [vmem:[#allocation3 + $0xd0] sm:$0xff] 0.0
        %408 = vst [vmem:[#allocation3 + $0xd8] sm:$0xff] 0.0
        %409 = vst [vmem:[#allocation3 + $0xe0] sm:$0xff] 0.0
        %410 = vst [vmem:[#allocation3 + $0xe8] sm:$0xff] 0.0
        %411 = vst [vmem:[#allocation3 + $0xf0] sm:$0xff] 0.0
        %412 = vst [vmem:[#allocation3 + $0xf8] sm:$0xff] 0.0
        %413 = vst [vmem:[#allocation3 + $0x100] sm:$0xff] 0.0
        %414 = vst [vmem:[#allocation3 + $0x108] sm:$0xff] 0.0
        %415 = vst [vmem:[#allocation3 + $0x110] sm:$0xff] 0.0
        %416 = vst [vmem:[#allocation3 + $0x118] sm:$0xff] 0.0
        %417 = vst [vmem:[#allocation3 + $0x120] sm:$0xff] 0.0
        %418 = vst [vmem:[#allocation3 + $0x128] sm:$0xff] 0.0
        %419 = vst [vmem:[#allocation3 + $0x130] sm:$0xff] 0.0
        %420 = vst [vmem:[#allocation3 + $0x138] sm:$0xff] 0.0
        %421 = vst [vmem:[#allocation3 + $0x140] sm:$0xff] 0.0
        %422 = vst [vmem:[#allocation3 + $0x148] sm:$0xff] 0.0
        %423 = vst [vmem:[#allocation3 + $0x150] sm:$0xff] 0.0
        %424 = vst [vmem:[#allocation3 + $0x158] sm:$0xff] 0.0
        %425 = vst [vmem:[#allocation3 + $0x160] sm:$0xff] 0.0
        %426 = vst [vmem:[#allocation3 + $0x168] sm:$0xff] 0.0
        %427 = vst [vmem:[#allocation3 + $0x170] sm:$0xff] 0.0
        %428 = vst [vmem:[#allocation3 + $0x178] sm:$0xff] 0.0
        %429 = vst [vmem:[#allocation3 + $0x180] sm:$0xff] 0.0
        %430 = vst [vmem:[#allocation3 + $0x188] sm:$0xff] 0.0
        %431 = vst [vmem:[#allocation3 + $0x190] sm:$0xff] 0.0
        %432 = vst [vmem:[#allocation3 + $0x198] sm:$0xff] 0.0
        %433 = vst [vmem:[#allocation3 + $0x1a0] sm:$0xff] 0.0
        %434 = vst [vmem:[#allocation3 + $0x1a8] sm:$0xff] 0.0
        %435 = vst [vmem:[#allocation3 + $0x1b0] sm:$0xff] 0.0
        %436 = vst [vmem:[#allocation3 + $0x1b8] sm:$0xff] 0.0
        %437 = vst [vmem:[#allocation3 + $0x1c0] sm:$0xff] 0.0
        %438 = vst [vmem:[#allocation3 + $0x1c8] sm:$0xff] 0.0
        %439 = vst [vmem:[#allocation3 + $0x1d0] sm:$0xff] 0.0
        %440 = vst [vmem:[#allocation3 + $0x1d8] sm:$0xff] 0.0
        %441 = vst [vmem:[#allocation3 + $0x1e0] sm:$0xff] 0.0
        %442 = vst [vmem:[#allocation3 + $0x1e8] sm:$0xff] 0.0
        %443 = vst [vmem:[#allocation3 + $0x1f0] sm:$0xff] 0.0
        %444 = vst [vmem:[#allocation3 + $0x1f8] sm:$0xff] 0.0
        %445 = vst [vmem:[#allocation3 + $0x200] sm:$0xff] 0.0
        %446 = vst [vmem:[#allocation3 + $0x208] sm:$0xff] 0.0
        %447 = vst [vmem:[#allocation3 + $0x210] sm:$0xff] 0.0
        %448 = vst [vmem:[#allocation3 + $0x218] sm:$0xff] 0.0
        %449 = vst [vmem:[#allocation3 + $0x220] sm:$0xff] 0.0
        %450 = vst [vmem:[#allocation3 + $0x228] sm:$0xff] 0.0
        %451 = vst [vmem:[#allocation3 + $0x230] sm:$0xff] 0.0
        %452 = vst [vmem:[#allocation3 + $0x238] sm:$0xff] 0.0
        %v453 = vld [vmem:[%s283] sm:$0xff]
        %v454 = vld [vmem:[%s283 + $0x8] sm:$0xff]
        %v455 = vld [vmem:[%s283 + $0x10] sm:$0xff]
        %v456 = vld [vmem:[%s283 + $0x18] sm:$0xff]
        %v457 = vld [vmem:[%s283 + $0x20] sm:$0xff]
        %v458 = vld [vmem:[%s283 + $0x28] sm:$0xff]
        %v459 = vld [vmem:[%s283 + $0x30] sm:$0xff]
        %v460 = vld [vmem:[%s283 + $0x38] sm:$0xff]
        %v461 = vld [vmem:[%s283 + $0x40] sm:$0xff]
        %v462 = vld [vmem:[%s283 + $0x48] sm:$0xff]
        %v463 = vld [vmem:[%s283 + $0x50] sm:$0xff]
        %v464 = vld [vmem:[%s283 + $0x58] sm:$0xff]
        %v465 = vld [vmem:[%s283 + $0x60] sm:$0xff]
        %v466 = vld [vmem:[%s283 + $0x68] sm:$0xff]
        %v467 = vld [vmem:[%s283 + $0x70] sm:$0xff]
        %v468 = vld [vmem:[%s283 + $0x78] sm:$0xff]
        %v469 = vld [vmem:[%s283 + $0x80] sm:$0xff]
        %v470 = vld [vmem:[%s283 + $0x88] sm:$0xff]
        %v471 = vld [vmem:[%s283 + $0x90] sm:$0xff]
        %v472 = vld [vmem:[%s283 + $0x98] sm:$0xff]
        %v473 = vld [vmem:[%s283 + $0xa0] sm:$0xff]
        %v474 = vld [vmem:[%s283 + $0xa8] sm:$0xff]
        %v475 = vld [vmem:[%s283 + $0xb0] sm:$0xff]
        %v476 = vld [vmem:[%s283 + $0xb8] sm:$0xff]
        %v477 = vld [vmem:[%s283 + $0xc0] sm:$0xff]
        %v478 = vld [vmem:[%s283 + $0xc8] sm:$0xff]
        %v479 = vld [vmem:[%s283 + $0xd0] sm:$0xff]
        %v480 = vld [vmem:[%s283 + $0xd8] sm:$0xff]
        %v481 = vld [vmem:[%s283 + $0xe0] sm:$0xff]
        %v482 = vld [vmem:[%s283 + $0xe8] sm:$0xff]
        %v483 = vld [vmem:[%s283 + $0xf0] sm:$0xff]
        %v484 = vld [vmem:[%s283 + $0xf8] sm:$0xff]
        %s485 = scalar_lea.vmem [#allocation2], 32
        %486 = vst [vmem:[%s485 + $0x1] sm:$0xff] %v453
        %487 = vst [vmem:[%s485 + $0x9] sm:$0xff] %v454
        %488 = vst [vmem:[%s485 + $0x21] sm:$0xff] %v455
        %489 = vst [vmem:[%s485 + $0x29] sm:$0xff] %v456
        %490 = vst [vmem:[%s485 + $0x41] sm:$0xff] %v457
        %491 = vst [vmem:[%s485 + $0x49] sm:$0xff] %v458
        %492 = vst [vmem:[%s485 + $0x61] sm:$0xff] %v459
        %493 = vst [vmem:[%s485 + $0x69] sm:$0xff] %v460
        %494 = vst [vmem:[%s485 + $0x81] sm:$0xff] %v461
        %495 = vst [vmem:[%s485 + $0x89] sm:$0xff] %v462
        %496 = vst [vmem:[%s485 + $0xa1] sm:$0xff] %v463
        %497 = vst [vmem:[%s485 + $0xa9] sm:$0xff] %v464
        %498 = vst [vmem:[%s485 + $0xc1] sm:$0xff] %v465
        %499 = vst [vmem:[%s485 + $0xc9] sm:$0xff] %v466
        %500 = vst [vmem:[%s485 + $0xe1] sm:$0xff] %v467
        %501 = vst [vmem:[%s485 + $0xe9] sm:$0xff] %v468
        %502 = vst [vmem:[%s485 + $0x101] sm:$0xff] %v469
        %503 = vst [vmem:[%s485 + $0x109] sm:$0xff] %v470
        %504 = vst [vmem:[%s485 + $0x121] sm:$0xff] %v471
        %505 = vst [vmem:[%s485 + $0x129] sm:$0xff] %v472
        %506 = vst [vmem:[%s485 + $0x141] sm:$0xff] %v473
        %507 = vst [vmem:[%s485 + $0x149] sm:$0xff] %v474
        %508 = vst [vmem:[%s485 + $0x161] sm:$0xff] %v475
        %509 = vst [vmem:[%s485 + $0x169] sm:$0xff] %v476
        %510 = vst [vmem:[%s485 + $0x181] sm:$0xff] %v477
        %511 = vst [vmem:[%s485 + $0x189] sm:$0xff] %v478
        %512 = vst [vmem:[%s485 + $0x1a1] sm:$0xff] %v479
        %513 = vst [vmem:[%s485 + $0x1a9] sm:$0xff] %v480
        %514 = vst [vmem:[%s485 + $0x1c1] sm:$0xff] %v481
        %515 = vst [vmem:[%s485 + $0x1c9] sm:$0xff] %v482
        %516 = vst [vmem:[%s485 + $0x1e1] sm:$0xff] %v483
        %517 = vst [vmem:[%s485 + $0x1e9] sm:$0xff] %v484
      $region44: #{aag_forward.1} parent=39 // pred_fallthru
        _
      %v518 = vld [vmem:[#allocation2] sm:$0xff]
      %v519 = vld [vmem:[#allocation2 + $0x8] sm:$0xff]
      %v520 = vld [vmem:[#allocation2 + $0x20] sm:$0xff]
      %v521 = vld [vmem:[#allocation2 + $0x28] sm:$0xff]
      %v522 = vld [vmem:[#allocation2 + $0x40] sm:$0xff]
      %v523 = vld [vmem:[#allocation2 + $0x48] sm:$0xff]
      %v524 = vld [vmem:[#allocation2 + $0x60] sm:$0xff]
      %v525 = vld [vmem:[#allocation2 + $0x68] sm:$0xff]
      %v526 = vld [vmem:[#allocation2 + $0x80] sm:$0xff]
      %v527 = vld [vmem:[#allocation2 + $0x88] sm:$0xff]
      %v528 = vld [vmem:[#allocation2 + $0xa0] sm:$0xff]
      %v529 = vld [vmem:[#allocation2 + $0xa8] sm:$0xff]
      %v530 = vld [vmem:[#allocation2 + $0xc0] sm:$0xff]
      %v531 = vld [vmem:[#allocation2 + $0xc8] sm:$0xff]
      %v532 = vld [vmem:[#allocation2 + $0xe0] sm:$0xff]
      %v533 = vld [vmem:[#allocation2 + $0xe8] sm:$0xff]
      %v534 = vld [vmem:[#allocation2 + $0x100] sm:$0xff]
      %v535 = vld [vmem:[#allocation2 + $0x108] sm:$0xff]
      %v536 = vld [vmem:[#allocation2 + $0x120] sm:$0xff]
      %v537 = vld [vmem:[#allocation2 + $0x128] sm:$0xff]
      %v538 = vld [vmem:[#allocation2 + $0x140] sm:$0xff]
      %v539 = vld [vmem:[#allocation2 + $0x148] sm:$0xff]
      %v540 = vld [vmem:[#allocation2 + $0x160] sm:$0xff]
      %v541 = vld [vmem:[#allocation2 + $0x168] sm:$0xff]
      %v542 = vld [vmem:[#allocation2 + $0x180] sm:$0xff]
      %v543 = vld [vmem:[#allocation2 + $0x188] sm:$0xff]
      %v544 = vld [vmem:[#allocation2 + $0x1a0] sm:$0xff]
      %v545 = vld [vmem:[#allocation2 + $0x1a8] sm:$0xff]
      %v546 = vld [vmem:[#allocation2 + $0x1c0] sm:$0xff]
      %v547 = vld [vmem:[#allocation2 + $0x1c8] sm:$0xff]
      %v548 = vld [vmem:[#allocation2 + $0x1e0] sm:$0xff]
      %v549 = vld [vmem:[#allocation2 + $0x1e8] sm:$0xff]
      %v550 = vld [vmem:[#allocation2 + $0x200] sm:$0xff]
      %v551 = vld [vmem:[#allocation2 + $0x208] sm:$0xff]
      %v552 = vld [vmem:[#allocation2 + $0x220] sm:$0xff]
      %v553 = vld [vmem:[#allocation2 + $0x228] sm:$0xff]
      %554 = vst [vmem:[#allocation4] sm:$0xff] %v518
      %555 = vst [vmem:[#allocation4 + $0x18] sm:$0xff] %v519
      %556 = vst [vmem:[#allocation4 + $0x30] sm:$0xff] %v520
      %557 = vst [vmem:[#allocation4 + $0x48] sm:$0xff] %v521
      %558 = vst [vmem:[#allocation4 + $0x60] sm:$0xff] %v522
      %559 = vst [vmem:[#allocation4 + $0x78] sm:$0xff] %v523
      %560 = vst [vmem:[#allocation4 + $0x90] sm:$0xff] %v524
      %561 = vst [vmem:[#allocation4 + $0xa8] sm:$0xff] %v525
      %562 = vst [vmem:[#allocation4 + $0xc0] sm:$0xff] %v526
      %563 = vst [vmem:[#allocation4 + $0xd8] sm:$0xff] %v527
      %564 = vst [vmem:[#allocation4 + $0xf0] sm:$0xff] %v528
      %565 = vst [vmem:[#allocation4 + $0x108] sm:$0xff] %v529
      %566 = vst [vmem:[#allocation4 + $0x120] sm:$0xff] %v530
      %567 = vst [vmem:[#allocation4 + $0x138] sm:$0xff] %v531
      %568 = vst [vmem:[#allocation4 + $0x150] sm:$0xff] %v532
      %569 = vst [vmem:[#allocation4 + $0x168] sm:$0xff] %v533
      %570 = vst [vmem:[#allocation4 + $0x180] sm:$0xff] %v534
      %571 = vst [vmem:[#allocation4 + $0x198] sm:$0xff] %v535
      %572 = vst [vmem:[#allocation4 + $0x1b0] sm:$0xff] %v536
      %573 = vst [vmem:[#allocation4 + $0x1c8] sm:$0xff] %v537
      %574 = vst [vmem:[#allocation4 + $0x1e0] sm:$0xff] %v538
      %575 = vst [vmem:[#allocation4 + $0x1f8] sm:$0xff] %v539
      %576 = vst [vmem:[#allocation4 + $0x210] sm:$0xff] %v540
      %577 = vst [vmem:[#allocation4 + $0x228] sm:$0xff] %v541
      %578 = vst [vmem:[#allocation4 + $0x240] sm:$0xff] %v542
      %579 = vst [vmem:[#allocation4 + $0x258] sm:$0xff] %v543
      %580 = vst [vmem:[#allocation4 + $0x270] sm:$0xff] %v544
      %581 = vst [vmem:[#allocation4 + $0x288] sm:$0xff] %v545
      %582 = vst [vmem:[#allocation4 + $0x2a0] sm:$0xff] %v546
      %583 = vst [vmem:[#allocation4 + $0x2b8] sm:$0xff] %v547
      %584 = vst [vmem:[#allocation4 + $0x2d0] sm:$0xff] %v548
      %585 = vst [vmem:[#allocation4 + $0x2e8] sm:$0xff] %v549
      %586 = vst [vmem:[#allocation4 + $0x300] sm:$0xff] %v550
      %587 = vst [vmem:[#allocation4 + $0x318] sm:$0xff] %v551
      %588 = vst [vmem:[#allocation4 + $0x330] sm:$0xff] %v552
      %589 = vst [vmem:[#allocation4 + $0x348] sm:$0xff] %v553
      %v590 = vld [vmem:[#allocation2 + $0x1] sm:$0xff]
      %v591 = vld [vmem:[#allocation2 + $0x9] sm:$0xff]
      %v592 = vld [vmem:[#allocation2 + $0x21] sm:$0xff]
      %v593 = vld [vmem:[#allocation2 + $0x29] sm:$0xff]
      %v594 = vld [vmem:[#allocation2 + $0x41] sm:$0xff]
      %v595 = vld [vmem:[#allocation2 + $0x49] sm:$0xff]
      %v596 = vld [vmem:[#allocation2 + $0x61] sm:$0xff]
      %v597 = vld [vmem:[#allocation2 + $0x69] sm:$0xff]
      %v598 = vld [vmem:[#allocation2 + $0x81] sm:$0xff]
      %v599 = vld [vmem:[#allocation2 + $0x89] sm:$0xff]
      %v600 = vld [vmem:[#allocation2 + $0xa1] sm:$0xff]
      %v601 = vld [vmem:[#allocation2 + $0xa9] sm:$0xff]
      %v602 = vld [vmem:[#allocation2 + $0xc1] sm:$0xff]
      %v603 = vld [vmem:[#allocation2 + $0xc9] sm:$0xff]
      %v604 = vld [vmem:[#allocation2 + $0xe1] sm:$0xff]
      %v605 = vld [vmem:[#allocation2 + $0xe9] sm:$0xff]
      %v606 = vld [vmem:[#allocation2 + $0x101] sm:$0xff]
      %v607 = vld [vmem:[#allocation2 + $0x109] sm:$0xff]
      %v608 = vld [vmem:[#allocation2 + $0x121] sm:$0xff]
      %v609 = vld [vmem:[#allocation2 + $0x129] sm:$0xff]
      %v610 = vld [vmem:[#allocation2 + $0x141] sm:$0xff]
      %v611 = vld [vmem:[#allocation2 + $0x149] sm:$0xff]
      %v612 = vld [vmem:[#allocation2 + $0x161] sm:$0xff]
      %v613 = vld [vmem:[#allocation2 + $0x169] sm:$0xff]
      %v614 = vld [vmem:[#allocation2 + $0x181] sm:$0xff]
      %v615 = vld [vmem:[#allocation2 + $0x189] sm:$0xff]
      %v616 = vld [vmem:[#allocation2 + $0x1a1] sm:$0xff]
      %v617 = vld [vmem:[#allocation2 + $0x1a9] sm:$0xff]
      %v618 = vld [vmem:[#allocation2 + $0x1c1] sm:$0xff]
      %v619 = vld [vmem:[#allocation2 + $0x1c9] sm:$0xff]
      %v620 = vld [vmem:[#allocation2 + $0x1e1] sm:$0xff]
      %v621 = vld [vmem:[#allocation2 + $0x1e9] sm:$0xff]
      %v622 = vld [vmem:[#allocation2 + $0x201] sm:$0xff]
      %v623 = vld [vmem:[#allocation2 + $0x209] sm:$0xff]
      %v624 = vld [vmem:[#allocation2 + $0x221] sm:$0xff]
      %v625 = vld [vmem:[#allocation2 + $0x229] sm:$0xff]
      %626 = vst [vmem:[#allocation4 + $0x8] sm:$0xff] %v590
      %627 = vst [vmem:[#allocation4 + $0x20] sm:$0xff] %v591
      %628 = vst [vmem:[#allocation4 + $0x38] sm:$0xff] %v592
      %629 = vst [vmem:[#allocation4 + $0x50] sm:$0xff] %v593
      %630 = vst [vmem:[#allocation4 + $0x68] sm:$0xff] %v594
      %631 = vst [vmem:[#allocation4 + $0x80] sm:$0xff] %v595
      %632 = vst [vmem:[#allocation4 + $0x98] sm:$0xff] %v596
      %633 = vst [vmem:[#allocation4 + $0xb0] sm:$0xff] %v597
      %634 = vst [vmem:[#allocation4 + $0xc8] sm:$0xff] %v598
      %635 = vst [vmem:[#allocation4 + $0xe0] sm:$0xff] %v599
      %636 = vst [vmem:[#allocation4 + $0xf8] sm:$0xff] %v600
      %637 = vst [vmem:[#allocation4 + $0x110] sm:$0xff] %v601
      %638 = vst [vmem:[#allocation4 + $0x128] sm:$0xff] %v602
      %639 = vst [vmem:[#allocation4 + $0x140] sm:$0xff] %v603
      %640 = vst [vmem:[#allocation4 + $0x158] sm:$0xff] %v604
      %641 = vst [vmem:[#allocation4 + $0x170] sm:$0xff] %v605
      %642 = vst [vmem:[#allocation4 + $0x188] sm:$0xff] %v606
      %643 = vst [vmem:[#allocation4 + $0x1a0] sm:$0xff] %v607
      %644 = vst [vmem:[#allocation4 + $0x1b8] sm:$0xff] %v608
      %645 = vst [vmem:[#allocation4 + $0x1d0] sm:$0xff] %v609
      %646 = vst [vmem:[#allocation4 + $0x1e8] sm:$0xff] %v610
      %647 = vst [vmem:[#allocation4 + $0x200] sm:$0xff] %v611
      %648 = vst [vmem:[#allocation4 + $0x218] sm:$0xff] %v612
      %649 = vst [vmem:[#allocation4 + $0x230] sm:$0xff] %v613
      %650 = vst [vmem:[#allocation4 + $0x248] sm:$0xff] %v614
      %651 = vst [vmem:[#allocation4 + $0x260] sm:$0xff] %v615
      %652 = vst [vmem:[#allocation4 + $0x278] sm:$0xff] %v616
      %653 = vst [vmem:[#allocation4 + $0x290] sm:$0xff] %v617
      %654 = vst [vmem:[#allocation4 + $0x2a8] sm:$0xff] %v618
      %655 = vst [vmem:[#allocation4 + $0x2c0] sm:$0xff] %v619
      %656 = vst [vmem:[#allocation4 + $0x2d8] sm:$0xff] %v620
      %657 = vst [vmem:[#allocation4 + $0x2f0] sm:$0xff] %v621
      %658 = vst [vmem:[#allocation4 + $0x308] sm:$0xff] %v622
      %659 = vst [vmem:[#allocation4 + $0x320] sm:$0xff] %v623
      %660 = vst [vmem:[#allocation4 + $0x338] sm:$0xff] %v624
      %661 = vst [vmem:[#allocation4 + $0x350] sm:$0xff] %v625
      %v662 = vld [vmem:[#allocation2 + $0x2] sm:$0xff]
      %v663 = vld [vmem:[#allocation2 + $0xa] sm:$0xff]
      %v664 = vld [vmem:[#allocation2 + $0x22] sm:$0xff]
      %v665 = vld [vmem:[#allocation2 + $0x2a] sm:$0xff]
      %v666 = vld [vmem:[#allocation2 + $0x42] sm:$0xff]
      %v667 = vld [vmem:[#allocation2 + $0x4a] sm:$0xff]
      %v668 = vld [vmem:[#allocation2 + $0x62] sm:$0xff]
      %v669 = vld [vmem:[#allocation2 + $0x6a] sm:$0xff]
      %v670 = vld [vmem:[#allocation2 + $0x82] sm:$0xff]
      %v671 = vld [vmem:[#allocation2 + $0x8a] sm:$0xff]
      %v672 = vld [vmem:[#allocation2 + $0xa2] sm:$0xff]
      %v673 = vld [vmem:[#allocation2 + $0xaa] sm:$0xff]
      %v674 = vld [vmem:[#allocation2 + $0xc2] sm:$0xff]
      %v675 = vld [vmem:[#allocation2 + $0xca] sm:$0xff]
      %v676 = vld [vmem:[#allocation2 + $0xe2] sm:$0xff]
      %v677 = vld [vmem:[#allocation2 + $0xea] sm:$0xff]
      %v678 = vld [vmem:[#allocation2 + $0x102] sm:$0xff]
      %v679 = vld [vmem:[#allocation2 + $0x10a] sm:$0xff]
      %v680 = vld [vmem:[#allocation2 + $0x122] sm:$0xff]
      %v681 = vld [vmem:[#allocation2 + $0x12a] sm:$0xff]
      %v682 = vld [vmem:[#allocation2 + $0x142] sm:$0xff]
      %v683 = vld [vmem:[#allocation2 + $0x14a] sm:$0xff]
      %v684 = vld [vmem:[#allocation2 + $0x162] sm:$0xff]
      %v685 = vld [vmem:[#allocation2 + $0x16a] sm:$0xff]
      %v686 = vld [vmem:[#allocation2 + $0x182] sm:$0xff]
      %v687 = vld [vmem:[#allocation2 + $0x18a] sm:$0xff]
      %v688 = vld [vmem:[#allocation2 + $0x1a2] sm:$0xff]
      %v689 = vld [vmem:[#allocation2 + $0x1aa] sm:$0xff]
      %v690 = vld [vmem:[#allocation2 + $0x1c2] sm:$0xff]
      %v691 = vld [vmem:[#allocation2 + $0x1ca] sm:$0xff]
      %v692 = vld [vmem:[#allocation2 + $0x1e2] sm:$0xff]
      %v693 = vld [vmem:[#allocation2 + $0x1ea] sm:$0xff]
      %v694 = vld [vmem:[#allocation2 + $0x202] sm:$0xff]
      %v695 = vld [vmem:[#allocation2 + $0x20a] sm:$0xff]
      %v696 = vld [vmem:[#allocation2 + $0x222] sm:$0xff]
      %v697 = vld [vmem:[#allocation2 + $0x22a] sm:$0xff]
      %698 = vst [vmem:[#allocation4 + $0x10] sm:$0xff] %v662
      %699 = vst [vmem:[#allocation4 + $0x28] sm:$0xff] %v663
      %700 = vst [vmem:[#allocation4 + $0x40] sm:$0xff] %v664
      %701 = vst [vmem:[#allocation4 + $0x58] sm:$0xff] %v665
      %702 = vst [vmem:[#allocation4 + $0x70] sm:$0xff] %v666
      %703 = vst [vmem:[#allocation4 + $0x88] sm:$0xff] %v667
      %704 = vst [vmem:[#allocation4 + $0xa0] sm:$0xff] %v668
      %705 = vst [vmem:[#allocation4 + $0xb8] sm:$0xff] %v669
      %706 = vst [vmem:[#allocation4 + $0xd0] sm:$0xff] %v670
      %707 = vst [vmem:[#allocation4 + $0xe8] sm:$0xff] %v671
      %708 = vst [vmem:[#allocation4 + $0x100] sm:$0xff] %v672
      %709 = vst [vmem:[#allocation4 + $0x118] sm:$0xff] %v673
      %710 = vst [vmem:[#allocation4 + $0x130] sm:$0xff] %v674
      %711 = vst [vmem:[#allocation4 + $0x148] sm:$0xff] %v675
      %712 = vst [vmem:[#allocation4 + $0x160] sm:$0xff] %v676
      %713 = vst [vmem:[#allocation4 + $0x178] sm:$0xff] %v677
      %714 = vst [vmem:[#allocation4 + $0x190] sm:$0xff] %v678
      %715 = vst [vmem:[#allocation4 + $0x1a8] sm:$0xff] %v679
      %716 = vst [vmem:[#allocation4 + $0x1c0] sm:$0xff] %v680
      %717 = vst [vmem:[#allocation4 + $0x1d8] sm:$0xff] %v681
      %718 = vst [vmem:[#allocation4 + $0x1f0] sm:$0xff] %v682
      %719 = vst [vmem:[#allocation4 + $0x208] sm:$0xff] %v683
      %720 = vst [vmem:[#allocation4 + $0x220] sm:$0xff] %v684
      %721 = vst [vmem:[#allocation4 + $0x238] sm:$0xff] %v685
      %722 = vst [vmem:[#allocation4 + $0x250] sm:$0xff] %v686
      %723 = vst [vmem:[#allocation4 + $0x268] sm:$0xff] %v687
      %724 = vst [vmem:[#allocation4 + $0x280] sm:$0xff] %v688
      %725 = vst [vmem:[#allocation4 + $0x298] sm:$0xff] %v689
      %726 = vst [vmem:[#allocation4 + $0x2b0] sm:$0xff] %v690
      %727 = vst [vmem:[#allocation4 + $0x2c8] sm:$0xff] %v691
      %728 = vst [vmem:[#allocation4 + $0x2e0] sm:$0xff] %v692
      %729 = vst [vmem:[#allocation4 + $0x2f8] sm:$0xff] %v693
      %730 = vst [vmem:[#allocation4 + $0x310] sm:$0xff] %v694
      %731 = vst [vmem:[#allocation4 + $0x328] sm:$0xff] %v695
      %732 = vst [vmem:[#allocation4 + $0x340] sm:$0xff] %v696
      %733 = vst [vmem:[#allocation4 + $0x358] sm:$0xff] %v697
      %v734 = vld [vmem:[#allocation4] sm:$0xff]
      %v735 = vld [vmem:[#allocation4 + $0x8] sm:$0xff]
      %v736 = vld [vmem:[#allocation4 + $0x10] sm:$0xff]
      %v737 = vld [vmem:[#allocation4 + $0x18] sm:$0xff]
      %v738 = vld [vmem:[#allocation4 + $0x20] sm:$0xff]
      %v739 = vld [vmem:[#allocation4 + $0x28] sm:$0xff]
      %v740 = vld [vmem:[#allocation4 + $0x30] sm:$0xff]
      %v741 = vld [vmem:[#allocation4 + $0x38] sm:$0xff]
      %v742 = vld [vmem:[#allocation4 + $0x40] sm:$0xff]
      %v743 = vld [vmem:[#allocation4 + $0x48] sm:$0xff]
      %v744 = vld [vmem:[#allocation4 + $0x50] sm:$0xff]
      %v745 = vld [vmem:[#allocation4 + $0x58] sm:$0xff]
      %v746 = vld [vmem:[#allocation4 + $0x60] sm:$0xff]
      %v747 = vld [vmem:[#allocation4 + $0x68] sm:$0xff]
      %v748 = vld [vmem:[#allocation4 + $0x70] sm:$0xff]
      %v749 = vld [vmem:[#allocation4 + $0x78] sm:$0xff]
      %v750 = vld [vmem:[#allocation4 + $0x80] sm:$0xff]
      %v751 = vld [vmem:[#allocation4 + $0x88] sm:$0xff]
      %v752 = vld [vmem:[#allocation4 + $0x90] sm:$0xff]
      %v753 = vld [vmem:[#allocation4 + $0x98] sm:$0xff]
      %v754 = vld [vmem:[#allocation4 + $0xa0] sm:$0xff]
      %v755 = vld [vmem:[#allocation4 + $0xa8] sm:$0xff]
      %v756 = vld [vmem:[#allocation4 + $0xb0] sm:$0xff]
      %v757 = vld [vmem:[#allocation4 + $0xb8] sm:$0xff]
      %v758 = vld [vmem:[#allocation4 + $0xc0] sm:$0xff]
      %v759 = vld [vmem:[#allocation4 + $0xc8] sm:$0xff]
      %v760 = vld [vmem:[#allocation4 + $0xd0] sm:$0xff]
      %v761 = vld [vmem:[#allocation4 + $0xd8] sm:$0xff]
      %v762 = vld [vmem:[#allocation4 + $0xe0] sm:$0xff]
      %v763 = vld [vmem:[#allocation4 + $0xe8] sm:$0xff]
      %v764 = vld [vmem:[#allocation4 + $0xf0] sm:$0xff]
      %v765 = vld [vmem:[#allocation4 + $0xf8] sm:$0xff]
      %v766 = vld [vmem:[#allocation4 + $0x100] sm:$0xff]
      %v767 = vld [vmem:[#allocation4 + $0x108] sm:$0xff]
      %v768 = vld [vmem:[#allocation4 + $0x110] sm:$0xff]
      %v769 = vld [vmem:[#allocation4 + $0x118] sm:$0xff]
      %v770 = vld [vmem:[#allocation4 + $0x120] sm:$0xff]
      %v771 = vld [vmem:[#allocation4 + $0x128] sm:$0xff]
      %v772 = vld [vmem:[#allocation4 + $0x130] sm:$0xff]
      %v773 = vld [vmem:[#allocation4 + $0x138] sm:$0xff]
      %v774 = vld [vmem:[#allocation4 + $0x140] sm:$0xff]
      %v775 = vld [vmem:[#allocation4 + $0x148] sm:$0xff]
      %v776 = vld [vmem:[#allocation4 + $0x150] sm:$0xff]
      %v777 = vld [vmem:[#allocation4 + $0x158] sm:$0xff]
      %v778 = vld [vmem:[#allocation4 + $0x160] sm:$0xff]
      %v779 = vld [vmem:[#allocation4 + $0x168] sm:$0xff]
      %v780 = vld [vmem:[#allocation4 + $0x170] sm:$0xff]
      %v781 = vld [vmem:[#allocation4 + $0x178] sm:$0xff]
      %v782 = vld [vmem:[#allocation4 + $0x180] sm:$0xff]
      %v783 = vld [vmem:[#allocation4 + $0x188] sm:$0xff]
      %v784 = vld [vmem:[#allocation4 + $0x190] sm:$0xff]
      %v785 = vld [vmem:[#allocation4 + $0x198] sm:$0xff]
      %v786 = vld [vmem:[#allocation4 + $0x1a0] sm:$0xff]
      %v787 = vld [vmem:[#allocation4 + $0x1a8] sm:$0xff]
      %v788 = vld [vmem:[#allocation4 + $0x1b0] sm:$0xff]
      %v789 = vld [vmem:[#allocation4 + $0x1b8] sm:$0xff]
      %v790 = vld [vmem:[#allocation4 + $0x1c0] sm:$0xff]
      %v791 = vld [vmem:[#allocation4 + $0x1c8] sm:$0xff]
      %v792 = vld [vmem:[#allocation4 + $0x1d0] sm:$0xff]
      %v793 = vld [vmem:[#allocation4 + $0x1d8] sm:$0xff]
      %v794 = vld [vmem:[#allocation4 + $0x1e0] sm:$0xff]
      %v795 = vld [vmem:[#allocation4 + $0x1e8] sm:$0xff]
      %v796 = vld [vmem:[#allocation4 + $0x1f0] sm:$0xff]
      %v797 = vld [vmem:[#allocation4 + $0x1f8] sm:$0xff]
      %v798 = vld [vmem:[#allocation4 + $0x200] sm:$0xff]
      %v799 = vld [vmem:[#allocation4 + $0x208] sm:$0xff]
      %v800 = vld [vmem:[#allocation4 + $0x210] sm:$0xff]
      %v801 = vld [vmem:[#allocation4 + $0x218] sm:$0xff]
      %v802 = vld [vmem:[#allocation4 + $0x220] sm:$0xff]
      %v803 = vld [vmem:[#allocation4 + $0x228] sm:$0xff]
      %v804 = vld [vmem:[#allocation4 + $0x230] sm:$0xff]
      %v805 = vld [vmem:[#allocation4 + $0x238] sm:$0xff]
      %v806 = vld [vmem:[#allocation4 + $0x240] sm:$0xff]
      %v807 = vld [vmem:[#allocation4 + $0x248] sm:$0xff]
      %v808 = vld [vmem:[#allocation4 + $0x250] sm:$0xff]
      %v809 = vld [vmem:[#allocation4 + $0x258] sm:$0xff]
      %v810 = vld [vmem:[#allocation4 + $0x260] sm:$0xff]
      %v811 = vld [vmem:[#allocation4 + $0x268] sm:$0xff]
      %v812 = vld [vmem:[#allocation4 + $0x270] sm:$0xff]
      %v813 = vld [vmem:[#allocation4 + $0x278] sm:$0xff]
      %v814 = vld [vmem:[#allocation4 + $0x280] sm:$0xff]
      %v815 = vld [vmem:[#allocation4 + $0x288] sm:$0xff]
      %v816 = vld [vmem:[#allocation4 + $0x290] sm:$0xff]
      %v817 = vld [vmem:[#allocation4 + $0x298] sm:$0xff]
      %v818 = vld [vmem:[#allocation4 + $0x2a0] sm:$0xff]
      %v819 = vld [vmem:[#allocation4 + $0x2a8] sm:$0xff]
      %v820 = vld [vmem:[#allocation4 + $0x2b0] sm:$0xff]
      %v821 = vld [vmem:[#allocation4 + $0x2b8] sm:$0xff]
      %v822 = vld [vmem:[#allocation4 + $0x2c0] sm:$0xff]
      %v823 = vld [vmem:[#allocation4 + $0x2c8] sm:$0xff]
      %v824 = vld [vmem:[#allocation4 + $0x2d0] sm:$0xff]
      %v825 = vld [vmem:[#allocation4 + $0x2d8] sm:$0xff]
      %v826 = vld [vmem:[#allocation4 + $0x2e0] sm:$0xff]
      %v827 = vld [vmem:[#allocation4 + $0x2e8] sm:$0xff]
      %v828 = vld [vmem:[#allocation4 + $0x2f0] sm:$0xff]
      %v829 = vld [vmem:[#allocation4 + $0x2f8] sm:$0xff]
      %v830 = vld [vmem:[%s288] sm:$0xff]
      %v831 = vld [vmem:[%s288 + $0x8] sm:$0xff]
      %v832 = vld [vmem:[%s288 + $0x10] sm:$0xff]
      %v833 = vld [vmem:[%s288 + $0x18] sm:$0xff]
      %v834 = vld [vmem:[%s288 + $0x20] sm:$0xff]
      %v835 = vld [vmem:[%s288 + $0x28] sm:$0xff]
      %v836 = vld [vmem:[%s288 + $0x30] sm:$0xff]
      %v837 = vld [vmem:[%s288 + $0x38] sm:$0xff]
      %v838 = vld [vmem:[%s288 + $0x40] sm:$0xff]
      %v839 = vld [vmem:[%s288 + $0x48] sm:$0xff]
      %v840 = vld [vmem:[%s288 + $0x50] sm:$0xff]
      %v841 = vld [vmem:[%s288 + $0x58] sm:$0xff]
      %v842 = vld [vmem:[%s288 + $0x60] sm:$0xff]
      %v843 = vld [vmem:[%s288 + $0x68] sm:$0xff]
      %v844 = vld [vmem:[%s288 + $0x70] sm:$0xff]
      %v845 = vld [vmem:[%s288 + $0x78] sm:$0xff]
      %v846 = vld [vmem:[%s288 + $0x80] sm:$0xff]
      %v847 = vld [vmem:[%s288 + $0x88] sm:$0xff]
      %v848 = vld [vmem:[%s288 + $0x90] sm:$0xff]
      %v849 = vld [vmem:[%s288 + $0x98] sm:$0xff]
      %v850 = vld [vmem:[%s288 + $0xa0] sm:$0xff]
      %v851 = vld [vmem:[%s288 + $0xa8] sm:$0xff]
      %v852 = vld [vmem:[%s288 + $0xb0] sm:$0xff]
      %v853 = vld [vmem:[%s288 + $0xb8] sm:$0xff]
      %v854 = vld [vmem:[%s288 + $0xc0] sm:$0xff]
      %v855 = vld [vmem:[%s288 + $0xc8] sm:$0xff]
      %v856 = vld [vmem:[%s288 + $0xd0] sm:$0xff]
      %v857 = vld [vmem:[%s288 + $0xd8] sm:$0xff]
      %v858 = vld [vmem:[%s288 + $0xe0] sm:$0xff]
      %v859 = vld [vmem:[%s288 + $0xe8] sm:$0xff]
      %v860 = vld [vmem:[%s288 + $0xf0] sm:$0xff]
      %v861 = vld [vmem:[%s288 + $0xf8] sm:$0xff]
      %v862 = vld [vmem:[%s288 + $0x100] sm:$0xff]
      %v863 = vld [vmem:[%s288 + $0x108] sm:$0xff]
      %v864 = vld [vmem:[%s288 + $0x110] sm:$0xff]
      %v865 = vld [vmem:[%s288 + $0x118] sm:$0xff]
      %v866 = vld [vmem:[%s288 + $0x120] sm:$0xff]
      %v867 = vld [vmem:[%s288 + $0x128] sm:$0xff]
      %v868 = vld [vmem:[%s288 + $0x130] sm:$0xff]
      %v869 = vld [vmem:[%s288 + $0x138] sm:$0xff]
      %v870 = vld [vmem:[%s288 + $0x140] sm:$0xff]
      %v871 = vld [vmem:[%s288 + $0x148] sm:$0xff]
      %v872 = vld [vmem:[%s288 + $0x150] sm:$0xff]
      %v873 = vld [vmem:[%s288 + $0x158] sm:$0xff]
      %v874 = vld [vmem:[%s288 + $0x160] sm:$0xff]
      %v875 = vld [vmem:[%s288 + $0x168] sm:$0xff]
      %v876 = vld [vmem:[%s288 + $0x170] sm:$0xff]
      %v877 = vld [vmem:[%s288 + $0x178] sm:$0xff]
      %s878 = scalar_lea.vmem [#allocation4], 48
      %v879 = vld [vmem:[%s878] sm:$0xff]
      %v880 = vld [vmem:[%s878 + $0x8] sm:$0xff]
      %v881 = vld [vmem:[%s878 + $0x10] sm:$0xff]
      %v882 = vld [vmem:[%s878 + $0x18] sm:$0xff]
      %v883 = vld [vmem:[%s878 + $0x20] sm:$0xff]
      %v884 = vld [vmem:[%s878 + $0x28] sm:$0xff]
      %v885 = vld [vmem:[%s878 + $0x30] sm:$0xff]
      %v886 = vld [vmem:[%s878 + $0x38] sm:$0xff]
      %v887 = vld [vmem:[%s878 + $0x40] sm:$0xff]
      %v888 = vld [vmem:[%s878 + $0x48] sm:$0xff]
      %v889 = vld [vmem:[%s878 + $0x50] sm:$0xff]
      %v890 = vld [vmem:[%s878 + $0x58] sm:$0xff]
      %v891 = vld [vmem:[%s878 + $0x60] sm:$0xff]
      %v892 = vld [vmem:[%s878 + $0x68] sm:$0xff]
      %v893 = vld [vmem:[%s878 + $0x70] sm:$0xff]
      %v894 = vld [vmem:[%s878 + $0x78] sm:$0xff]
      %v895 = vld [vmem:[%s878 + $0x80] sm:$0xff]
      %v896 = vld [vmem:[%s878 + $0x88] sm:$0xff]
      %v897 = vld [vmem:[%s878 + $0x90] sm:$0xff]
      %v898 = vld [vmem:[%s878 + $0x98] sm:$0xff]
      %v899 = vld [vmem:[%s878 + $0xa0] sm:$0xff]
      %v900 = vld [vmem:[%s878 + $0xa8] sm:$0xff]
      %v901 = vld [vmem:[%s878 + $0xb0] sm:$0xff]
      %v902 = vld [vmem:[%s878 + $0xb8] sm:$0xff]
      %v903 = vld [vmem:[%s878 + $0xc0] sm:$0xff]
      %v904 = vld [vmem:[%s878 + $0xc8] sm:$0xff]
      %v905 = vld [vmem:[%s878 + $0xd0] sm:$0xff]
      %v906 = vld [vmem:[%s878 + $0xd8] sm:$0xff]
      %v907 = vld [vmem:[%s878 + $0xe0] sm:$0xff]
      %v908 = vld [vmem:[%s878 + $0xe8] sm:$0xff]
      %v909 = vld [vmem:[%s878 + $0xf0] sm:$0xff]
      %v910 = vld [vmem:[%s878 + $0xf8] sm:$0xff]
      %v911 = vld [vmem:[%s878 + $0x100] sm:$0xff]
      %v912 = vld [vmem:[%s878 + $0x108] sm:$0xff]
      %v913 = vld [vmem:[%s878 + $0x110] sm:$0xff]
      %v914 = vld [vmem:[%s878 + $0x118] sm:$0xff]
      %v915 = vld [vmem:[%s878 + $0x120] sm:$0xff]
      %v916 = vld [vmem:[%s878 + $0x128] sm:$0xff]
      %v917 = vld [vmem:[%s878 + $0x130] sm:$0xff]
      %v918 = vld [vmem:[%s878 + $0x138] sm:$0xff]
      %v919 = vld [vmem:[%s878 + $0x140] sm:$0xff]
      %v920 = vld [vmem:[%s878 + $0x148] sm:$0xff]
      %v921 = vld [vmem:[%s878 + $0x150] sm:$0xff]
      %v922 = vld [vmem:[%s878 + $0x158] sm:$0xff]
      %v923 = vld [vmem:[%s878 + $0x160] sm:$0xff]
      %v924 = vld [vmem:[%s878 + $0x168] sm:$0xff]
      %v925 = vld [vmem:[%s878 + $0x170] sm:$0xff]
      %v926 = vld [vmem:[%s878 + $0x178] sm:$0xff]
      %v927 = vld [vmem:[%s878 + $0x180] sm:$0xff]
      %v928 = vld [vmem:[%s878 + $0x188] sm:$0xff]
      %v929 = vld [vmem:[%s878 + $0x190] sm:$0xff]
      %v930 = vld [vmem:[%s878 + $0x198] sm:$0xff]
      %v931 = vld [vmem:[%s878 + $0x1a0] sm:$0xff]
      %v932 = vld [vmem:[%s878 + $0x1a8] sm:$0xff]
      %v933 = vld [vmem:[%s878 + $0x1b0] sm:$0xff]
      %v934 = vld [vmem:[%s878 + $0x1b8] sm:$0xff]
      %v935 = vld [vmem:[%s878 + $0x1c0] sm:$0xff]
      %v936 = vld [vmem:[%s878 + $0x1c8] sm:$0xff]
      %v937 = vld [vmem:[%s878 + $0x1d0] sm:$0xff]
      %v938 = vld [vmem:[%s878 + $0x1d8] sm:$0xff]
      %v939 = vld [vmem:[%s878 + $0x1e0] sm:$0xff]
      %v940 = vld [vmem:[%s878 + $0x1e8] sm:$0xff]
      %v941 = vld [vmem:[%s878 + $0x1f0] sm:$0xff]
      %v942 = vld [vmem:[%s878 + $0x1f8] sm:$0xff]
      %v943 = vld [vmem:[%s878 + $0x200] sm:$0xff]
      %v944 = vld [vmem:[%s878 + $0x208] sm:$0xff]
      %v945 = vld [vmem:[%s878 + $0x210] sm:$0xff]
      %v946 = vld [vmem:[%s878 + $0x218] sm:$0xff]
      %v947 = vld [vmem:[%s878 + $0x220] sm:$0xff]
      %v948 = vld [vmem:[%s878 + $0x228] sm:$0xff]
      %v949 = vld [vmem:[%s878 + $0x230] sm:$0xff]
      %v950 = vld [vmem:[%s878 + $0x238] sm:$0xff]
      %v951 = vld [vmem:[%s878 + $0x240] sm:$0xff]
      %v952 = vld [vmem:[%s878 + $0x248] sm:$0xff]
      %v953 = vld [vmem:[%s878 + $0x250] sm:$0xff]
      %v954 = vld [vmem:[%s878 + $0x258] sm:$0xff]
      %v955 = vld [vmem:[%s878 + $0x260] sm:$0xff]
      %v956 = vld [vmem:[%s878 + $0x268] sm:$0xff]
      %v957 = vld [vmem:[%s878 + $0x270] sm:$0xff]
      %v958 = vld [vmem:[%s878 + $0x278] sm:$0xff]
      %v959 = vld [vmem:[%s878 + $0x280] sm:$0xff]
      %v960 = vld [vmem:[%s878 + $0x288] sm:$0xff]
      %v961 = vld [vmem:[%s878 + $0x290] sm:$0xff]
      %v962 = vld [vmem:[%s878 + $0x298] sm:$0xff]
      %v963 = vld [vmem:[%s878 + $0x2a0] sm:$0xff]
      %v964 = vld [vmem:[%s878 + $0x2a8] sm:$0xff]
      %v965 = vld [vmem:[%s878 + $0x2b0] sm:$0xff]
      %v966 = vld [vmem:[%s878 + $0x2b8] sm:$0xff]
      %v967 = vld [vmem:[%s878 + $0x2c0] sm:$0xff]
      %v968 = vld [vmem:[%s878 + $0x2c8] sm:$0xff]
      %v969 = vld [vmem:[%s878 + $0x2d0] sm:$0xff]
      %v970 = vld [vmem:[%s878 + $0x2d8] sm:$0xff]
      %v971 = vld [vmem:[%s878 + $0x2e0] sm:$0xff]
      %v972 = vld [vmem:[%s878 + $0x2e8] sm:$0xff]
      %v973 = vld [vmem:[%s878 + $0x2f0] sm:$0xff]
      %v974 = vld [vmem:[%s878 + $0x2f8] sm:$0xff]
      %s975 = scalar_lea.vmem %s288, 384
      %v976 = vld [vmem:[%s975] sm:$0xff]
      %v977 = vld [vmem:[%s975 + $0x8] sm:$0xff]
      %v978 = vld [vmem:[%s975 + $0x10] sm:$0xff]
      %v979 = vld [vmem:[%s975 + $0x18] sm:$0xff]
      %v980 = vld [vmem:[%s975 + $0x20] sm:$0xff]
      %v981 = vld [vmem:[%s975 + $0x28] sm:$0xff]
      %v982 = vld [vmem:[%s975 + $0x30] sm:$0xff]
      %v983 = vld [vmem:[%s975 + $0x38] sm:$0xff]
      %v984 = vld [vmem:[%s975 + $0x40] sm:$0xff]
      %v985 = vld [vmem:[%s975 + $0x48] sm:$0xff]
      %v986 = vld [vmem:[%s975 + $0x50] sm:$0xff]
      %v987 = vld [vmem:[%s975 + $0x58] sm:$0xff]
      %v988 = vld [vmem:[%s975 + $0x60] sm:$0xff]
      %v989 = vld [vmem:[%s975 + $0x68] sm:$0xff]
      %v990 = vld [vmem:[%s975 + $0x70] sm:$0xff]
      %v991 = vld [vmem:[%s975 + $0x78] sm:$0xff]
      %v992 = vld [vmem:[%s975 + $0x80] sm:$0xff]
      %v993 = vld [vmem:[%s975 + $0x88] sm:$0xff]
      %v994 = vld [vmem:[%s975 + $0x90] sm:$0xff]
      %v995 = vld [vmem:[%s975 + $0x98] sm:$0xff]
      %v996 = vld [vmem:[%s975 + $0xa0] sm:$0xff]
      %v997 = vld [vmem:[%s975 + $0xa8] sm:$0xff]
      %v998 = vld [vmem:[%s975 + $0xb0] sm:$0xff]
      %v999 = vld [vmem:[%s975 + $0xb8] sm:$0xff]
      %v1000 = vld [vmem:[%s975 + $0xc0] sm:$0xff]
      %v1001 = vld [vmem:[%s975 + $0xc8] sm:$0xff]
      %v1002 = vld [vmem:[%s975 + $0xd0] sm:$0xff]
      %v1003 = vld [vmem:[%s975 + $0xd8] sm:$0xff]
      %v1004 = vld [vmem:[%s975 + $0xe0] sm:$0xff]
      %v1005 = vld [vmem:[%s975 + $0xe8] sm:$0xff]
      %v1006 = vld [vmem:[%s975 + $0xf0] sm:$0xff]
      %v1007 = vld [vmem:[%s975 + $0xf8] sm:$0xff]
      %v1008 = vld [vmem:[%s975 + $0x100] sm:$0xff]
      %v1009 = vld [vmem:[%s975 + $0x108] sm:$0xff]
      %v1010 = vld [vmem:[%s975 + $0x110] sm:$0xff]
      %v1011 = vld [vmem:[%s975 + $0x118] sm:$0xff]
      %v1012 = vld [vmem:[%s975 + $0x120] sm:$0xff]
      %v1013 = vld [vmem:[%s975 + $0x128] sm:$0xff]
      %v1014 = vld [vmem:[%s975 + $0x130] sm:$0xff]
      %v1015 = vld [vmem:[%s975 + $0x138] sm:$0xff]
      %v1016 = vld [vmem:[%s975 + $0x140] sm:$0xff]
      %v1017 = vld [vmem:[%s975 + $0x148] sm:$0xff]
      %v1018 = vld [vmem:[%s975 + $0x150] sm:$0xff]
      %v1019 = vld [vmem:[%s975 + $0x158] sm:$0xff]
      %v1020 = vld [vmem:[%s975 + $0x160] sm:$0xff]
      %v1021 = vld [vmem:[%s975 + $0x168] sm:$0xff]
      %v1022 = vld [vmem:[%s975 + $0x170] sm:$0xff]
      %v1023 = vld [vmem:[%s975 + $0x178] sm:$0xff]
      %1024 = vmatpush.msra.mxu0 %v991
      %1025 = vmatpush.msra.mxu0 %v990
      %1026 = vmatpush.msra.mxu0 %v989
      %1027 = vmatpush.msra.mxu0 %v988
      %1028 = vmatpush.msra.mxu0 %v987
      %1029 = vmatpush.msra.mxu0 %v986
      %1030 = vmatpush.msra.mxu0 %v985
      %1031 = vmatpush.msra.mxu0 %v984
      %1032 = vmatpush.msra.mxu0 %v983
      %1033 = vmatpush.msra.mxu0 %v982
      %1034 = vmatpush.msra.mxu0 %v981
      %1035 = vmatpush.msra.mxu0 %v980
      %1036 = vmatpush.msra.mxu0 %v979
      %1037 = vmatpush.msra.mxu0 %v978
      %1038 = vmatpush.msra.mxu0 %v977
      %1039 = vmatpush.msra.mxu0 %v976
      %1040 = vmatmul.f32.gmra.mxu0 %v879
      %v1041 = vpop.f32.mrf.mxu0
      %v1042 = vadd.f32 0.0, %v1041
      %1043 = vmatmul.f32.gmra.mxu0 %v882
      %v1044 = vpop.f32.mrf.mxu0
      %v1045 = vadd.f32 0.0, %v1044
      %1046 = vmatmul.f32.gmra.mxu0 %v885
      %v1047 = vpop.f32.mrf.mxu0
      %v1048 = vadd.f32 0.0, %v1047
      %1049 = vmatmul.f32.gmra.mxu0 %v888
      %v1050 = vpop.f32.mrf.mxu0
      %v1051 = vadd.f32 0.0, %v1050
      %1052 = vmatmul.f32.gmra.mxu0 %v891
      %v1053 = vpop.f32.mrf.mxu0
      %v1054 = vadd.f32 0.0, %v1053
      %1055 = vmatmul.f32.gmra.mxu0 %v894
      %v1056 = vpop.f32.mrf.mxu0
      %v1057 = vadd.f32 0.0, %v1056
      %1058 = vmatmul.f32.gmra.mxu0 %v897
      %v1059 = vpop.f32.mrf.mxu0
      %v1060 = vadd.f32 0.0, %v1059
      %1061 = vmatmul.f32.gmra.mxu0 %v900
      %v1062 = vpop.f32.mrf.mxu0
      %v1063 = vadd.f32 0.0, %v1062
      %1064 = vmatmul.f32.gmra.mxu0 %v903
      %v1065 = vpop.f32.mrf.mxu0
      %v1066 = vadd.f32 0.0, %v1065
      %1067 = vmatmul.f32.gmra.mxu0 %v906
      %v1068 = vpop.f32.mrf.mxu0
      %v1069 = vadd.f32 0.0, %v1068
      %1070 = vmatmul.f32.gmra.mxu0 %v909
      %v1071 = vpop.f32.mrf.mxu0
      %v1072 = vadd.f32 0.0, %v1071
      %1073 = vmatmul.f32.gmra.mxu0 %v912
      %v1074 = vpop.f32.mrf.mxu0
      %v1075 = vadd.f32 0.0, %v1074
      %1076 = vmatmul.f32.gmra.mxu0 %v915
      %v1077 = vpop.f32.mrf.mxu0
      %v1078 = vadd.f32 0.0, %v1077
      %1079 = vmatmul.f32.gmra.mxu0 %v918
      %v1080 = vpop.f32.mrf.mxu0
      %v1081 = vadd.f32 0.0, %v1080
      %1082 = vmatmul.f32.gmra.mxu0 %v921
      %v1083 = vpop.f32.mrf.mxu0
      %v1084 = vadd.f32 0.0, %v1083
      %1085 = vmatmul.f32.gmra.mxu0 %v924
      %v1086 = vpop.f32.mrf.mxu0
      %v1087 = vadd.f32 0.0, %v1086
      %1088 = vmatmul.f32.gmra.mxu0 %v927
      %v1089 = vpop.f32.mrf.mxu0
      %v1090 = vadd.f32 0.0, %v1089
      %1091 = vmatmul.f32.gmra.mxu0 %v930
      %v1092 = vpop.f32.mrf.mxu0
      %v1093 = vadd.f32 0.0, %v1092
      %1094 = vmatmul.f32.gmra.mxu0 %v933
      %v1095 = vpop.f32.mrf.mxu0
      %v1096 = vadd.f32 0.0, %v1095
      %1097 = vmatmul.f32.gmra.mxu0 %v936
      %v1098 = vpop.f32.mrf.mxu0
      %v1099 = vadd.f32 0.0, %v1098
      %1100 = vmatmul.f32.gmra.mxu0 %v939
      %v1101 = vpop.f32.mrf.mxu0
      %v1102 = vadd.f32 0.0, %v1101
      %1103 = vmatmul.f32.gmra.mxu0 %v942
      %v1104 = vpop.f32.mrf.mxu0
      %v1105 = vadd.f32 0.0, %v1104
      %1106 = vmatmul.f32.gmra.mxu0 %v945
      %v1107 = vpop.f32.mrf.mxu0
      %v1108 = vadd.f32 0.0, %v1107
      %1109 = vmatmul.f32.gmra.mxu0 %v948
      %v1110 = vpop.f32.mrf.mxu0
      %v1111 = vadd.f32 0.0, %v1110
      %1112 = vmatmul.f32.gmra.mxu0 %v951
      %v1113 = vpop.f32.mrf.mxu0
      %v1114 = vadd.f32 0.0, %v1113
      %1115 = vmatmul.f32.gmra.mxu0 %v954
      %v1116 = vpop.f32.mrf.mxu0
      %v1117 = vadd.f32 0.0, %v1116
      %1118 = vmatmul.f32.gmra.mxu0 %v957
      %v1119 = vpop.f32.mrf.mxu0
      %v1120 = vadd.f32 0.0, %v1119
      %1121 = vmatmul.f32.gmra.mxu0 %v960
      %v1122 = vpop.f32.mrf.mxu0
      %v1123 = vadd.f32 0.0, %v1122
      %1124 = vmatmul.f32.gmra.mxu0 %v963
      %v1125 = vpop.f32.mrf.mxu0
      %v1126 = vadd.f32 0.0, %v1125
      %1127 = vmatmul.f32.gmra.mxu0 %v966
      %v1128 = vpop.f32.mrf.mxu0
      %v1129 = vadd.f32 0.0, %v1128
      %1130 = vmatmul.f32.gmra.mxu0 %v969
      %v1131 = vpop.f32.mrf.mxu0
      %v1132 = vadd.f32 0.0, %v1131
      %1133 = vmatmul.f32.gmra.mxu0 %v972
      %v1134 = vpop.f32.mrf.mxu0
      %v1135 = vadd.f32 0.0, %v1134
      %1136 = vdwg.mxu0
      %1137 = vmatpush.msra.mxu0 %v1007
      %1138 = vmatpush.msra.mxu0 %v1006
      %1139 = vmatpush.msra.mxu0 %v1005
      %1140 = vmatpush.msra.mxu0 %v1004
      %1141 = vmatpush.msra.mxu0 %v1003
      %1142 = vmatpush.msra.mxu0 %v1002
      %1143 = vmatpush.msra.mxu0 %v1001
      %1144 = vmatpush.msra.mxu0 %v1000
      %1145 = vmatpush.msra.mxu0 %v999
      %1146 = vmatpush.msra.mxu0 %v998
      %1147 = vmatpush.msra.mxu0 %v997
      %1148 = vmatpush.msra.mxu0 %v996
      %1149 = vmatpush.msra.mxu0 %v995
      %1150 = vmatpush.msra.mxu0 %v994
      %1151 = vmatpush.msra.mxu0 %v993
      %1152 = vmatpush.msra.mxu0 %v992
      %1153 = vmatmul.f32.gmra.mxu0 %v880
      %v1154 = vpop.f32.mrf.mxu0
      %v1155 = vadd.f32 %v1042, %v1154
      %1156 = vmatmul.f32.gmra.mxu0 %v883
      %v1157 = vpop.f32.mrf.mxu0
      %v1158 = vadd.f32 %v1045, %v1157
      %1159 = vmatmul.f32.gmra.mxu0 %v886
      %v1160 = vpop.f32.mrf.mxu0
      %v1161 = vadd.f32 %v1048, %v1160
      %1162 = vmatmul.f32.gmra.mxu0 %v889
      %v1163 = vpop.f32.mrf.mxu0
      %v1164 = vadd.f32 %v1051, %v1163
      %1165 = vmatmul.f32.gmra.mxu0 %v892
      %v1166 = vpop.f32.mrf.mxu0
      %v1167 = vadd.f32 %v1054, %v1166
      %1168 = vmatmul.f32.gmra.mxu0 %v895
      %v1169 = vpop.f32.mrf.mxu0
      %v1170 = vadd.f32 %v1057, %v1169
      %1171 = vmatmul.f32.gmra.mxu0 %v898
      %v1172 = vpop.f32.mrf.mxu0
      %v1173 = vadd.f32 %v1060, %v1172
      %1174 = vmatmul.f32.gmra.mxu0 %v901
      %v1175 = vpop.f32.mrf.mxu0
      %v1176 = vadd.f32 %v1063, %v1175
      %1177 = vmatmul.f32.gmra.mxu0 %v904
      %v1178 = vpop.f32.mrf.mxu0
      %v1179 = vadd.f32 %v1066, %v1178
      %1180 = vmatmul.f32.gmra.mxu0 %v907
      %v1181 = vpop.f32.mrf.mxu0
      %v1182 = vadd.f32 %v1069, %v1181
      %1183 = vmatmul.f32.gmra.mxu0 %v910
      %v1184 = vpop.f32.mrf.mxu0
      %v1185 = vadd.f32 %v1072, %v1184
      %1186 = vmatmul.f32.gmra.mxu0 %v913
      %v1187 = vpop.f32.mrf.mxu0
      %v1188 = vadd.f32 %v1075, %v1187
      %1189 = vmatmul.f32.gmra.mxu0 %v916
      %v1190 = vpop.f32.mrf.mxu0
      %v1191 = vadd.f32 %v1078, %v1190
      %1192 = vmatmul.f32.gmra.mxu0 %v919
      %v1193 = vpop.f32.mrf.mxu0
      %v1194 = vadd.f32 %v1081, %v1193
      %1195 = vmatmul.f32.gmra.mxu0 %v922
      %v1196 = vpop.f32.mrf.mxu0
      %v1197 = vadd.f32 %v1084, %v1196
      %1198 = vmatmul.f32.gmra.mxu0 %v925
      %v1199 = vpop.f32.mrf.mxu0
      %v1200 = vadd.f32 %v1087, %v1199
      %1201 = vmatmul.f32.gmra.mxu0 %v928
      %v1202 = vpop.f32.mrf.mxu0
      %v1203 = vadd.f32 %v1090, %v1202
      %1204 = vmatmul.f32.gmra.mxu0 %v931
      %v1205 = vpop.f32.mrf.mxu0
      %v1206 = vadd.f32 %v1093, %v1205
      %1207 = vmatmul.f32.gmra.mxu0 %v934
      %v1208 = vpop.f32.mrf.mxu0
      %v1209 = vadd.f32 %v1096, %v1208
      %1210 = vmatmul.f32.gmra.mxu0 %v937
      %v1211 = vpop.f32.mrf.mxu0
      %v1212 = vadd.f32 %v1099, %v1211
      %1213 = vmatmul.f32.gmra.mxu0 %v940
      %v1214 = vpop.f32.mrf.mxu0
      %v1215 = vadd.f32 %v1102, %v1214
      %1216 = vmatmul.f32.gmra.mxu0 %v943
      %v1217 = vpop.f32.mrf.mxu0
      %v1218 = vadd.f32 %v1105, %v1217
      %1219 = vmatmul.f32.gmra.mxu0 %v946
      %v1220 = vpop.f32.mrf.mxu0
      %v1221 = vadd.f32 %v1108, %v1220
      %1222 = vmatmul.f32.gmra.mxu0 %v949
      %v1223 = vpop.f32.mrf.mxu0
      %v1224 = vadd.f32 %v1111, %v1223
      %1225 = vmatmul.f32.gmra.mxu0 %v952
      %v1226 = vpop.f32.mrf.mxu0
      %v1227 = vadd.f32 %v1114, %v1226
      %1228 = vmatmul.f32.gmra.mxu0 %v955
      %v1229 = vpop.f32.mrf.mxu0
      %v1230 = vadd.f32 %v1117, %v1229
      %1231 = vmatmul.f32.gmra.mxu0 %v958
      %v1232 = vpop.f32.mrf.mxu0
      %v1233 = vadd.f32 %v1120, %v1232
      %1234 = vmatmul.f32.gmra.mxu0 %v961
      %v1235 = vpop.f32.mrf.mxu0
      %v1236 = vadd.f32 %v1123, %v1235
      %1237 = vmatmul.f32.gmra.mxu0 %v964
      %v1238 = vpop.f32.mrf.mxu0
      %v1239 = vadd.f32 %v1126, %v1238
      %1240 = vmatmul.f32.gmra.mxu0 %v967
      %v1241 = vpop.f32.mrf.mxu0
      %v1242 = vadd.f32 %v1129, %v1241
      %1243 = vmatmul.f32.gmra.mxu0 %v970
      %v1244 = vpop.f32.mrf.mxu0
      %v1245 = vadd.f32 %v1132, %v1244
      %1246 = vmatmul.f32.gmra.mxu0 %v973
      %v1247 = vpop.f32.mrf.mxu0
      %v1248 = vadd.f32 %v1135, %v1247
      %1249 = vdwg.mxu0
      %1250 = vmatpush.msra.mxu0 %v1023
      %1251 = vmatpush.msra.mxu0 %v1022
      %1252 = vmatpush.msra.mxu0 %v1021
      %1253 = vmatpush.msra.mxu0 %v1020
      %1254 = vmatpush.msra.mxu0 %v1019
      %1255 = vmatpush.msra.mxu0 %v1018
      %1256 = vmatpush.msra.mxu0 %v1017
      %1257 = vmatpush.msra.mxu0 %v1016
      %1258 = vmatpush.msra.mxu0 %v1015
      %1259 = vmatpush.msra.mxu0 %v1014
      %1260 = vmatpush.msra.mxu0 %v1013
      %1261 = vmatpush.msra.mxu0 %v1012
      %1262 = vmatpush.msra.mxu0 %v1011
      %1263 = vmatpush.msra.mxu0 %v1010
      %1264 = vmatpush.msra.mxu0 %v1009
      %1265 = vmatpush.msra.mxu0 %v1008
      %1266 = vmatmul.f32.gmra.mxu0 %v881
      %v1267 = vpop.f32.mrf.mxu0
      %v1268 = vadd.f32 %v1155, %v1267
      %1269 = vmatmul.f32.gmra.mxu0 %v884
      %v1270 = vpop.f32.mrf.mxu0
      %v1271 = vadd.f32 %v1158, %v1270
      %1272 = vmatmul.f32.gmra.mxu0 %v887
      %v1273 = vpop.f32.mrf.mxu0
      %v1274 = vadd.f32 %v1161, %v1273
      %1275 = vmatmul.f32.gmra.mxu0 %v890
      %v1276 = vpop.f32.mrf.mxu0
      %v1277 = vadd.f32 %v1164, %v1276
      %1278 = vmatmul.f32.gmra.mxu0 %v893
      %v1279 = vpop.f32.mrf.mxu0
      %v1280 = vadd.f32 %v1167, %v1279
      %1281 = vmatmul.f32.gmra.mxu0 %v896
      %v1282 = vpop.f32.mrf.mxu0
      %v1283 = vadd.f32 %v1170, %v1282
      %1284 = vmatmul.f32.gmra.mxu0 %v899
      %v1285 = vpop.f32.mrf.mxu0
      %v1286 = vadd.f32 %v1173, %v1285
      %1287 = vmatmul.f32.gmra.mxu0 %v902
      %v1288 = vpop.f32.mrf.mxu0
      %v1289 = vadd.f32 %v1176, %v1288
      %1290 = vmatmul.f32.gmra.mxu0 %v905
      %v1291 = vpop.f32.mrf.mxu0
      %v1292 = vadd.f32 %v1179, %v1291
      %1293 = vmatmul.f32.gmra.mxu0 %v908
      %v1294 = vpop.f32.mrf.mxu0
      %v1295 = vadd.f32 %v1182, %v1294
      %1296 = vmatmul.f32.gmra.mxu0 %v911
      %v1297 = vpop.f32.mrf.mxu0
      %v1298 = vadd.f32 %v1185, %v1297
      %1299 = vmatmul.f32.gmra.mxu0 %v914
      %v1300 = vpop.f32.mrf.mxu0
      %v1301 = vadd.f32 %v1188, %v1300
      %1302 = vmatmul.f32.gmra.mxu0 %v917
      %v1303 = vpop.f32.mrf.mxu0
      %v1304 = vadd.f32 %v1191, %v1303
      %1305 = vmatmul.f32.gmra.mxu0 %v920
      %v1306 = vpop.f32.mrf.mxu0
      %v1307 = vadd.f32 %v1194, %v1306
      %1308 = vmatmul.f32.gmra.mxu0 %v923
      %v1309 = vpop.f32.mrf.mxu0
      %v1310 = vadd.f32 %v1197, %v1309
      %1311 = vmatmul.f32.gmra.mxu0 %v926
      %v1312 = vpop.f32.mrf.mxu0
      %v1313 = vadd.f32 %v1200, %v1312
      %1314 = vmatmul.f32.gmra.mxu0 %v929
      %v1315 = vpop.f32.mrf.mxu0
      %v1316 = vadd.f32 %v1203, %v1315
      %1317 = vmatmul.f32.gmra.mxu0 %v932
      %v1318 = vpop.f32.mrf.mxu0
      %v1319 = vadd.f32 %v1206, %v1318
      %1320 = vmatmul.f32.gmra.mxu0 %v935
      %v1321 = vpop.f32.mrf.mxu0
      %v1322 = vadd.f32 %v1209, %v1321
      %1323 = vmatmul.f32.gmra.mxu0 %v938
      %v1324 = vpop.f32.mrf.mxu0
      %v1325 = vadd.f32 %v1212, %v1324
      %1326 = vmatmul.f32.gmra.mxu0 %v941
      %v1327 = vpop.f32.mrf.mxu0
      %v1328 = vadd.f32 %v1215, %v1327
      %1329 = vmatmul.f32.gmra.mxu0 %v944
      %v1330 = vpop.f32.mrf.mxu0
      %v1331 = vadd.f32 %v1218, %v1330
      %1332 = vmatmul.f32.gmra.mxu0 %v947
      %v1333 = vpop.f32.mrf.mxu0
      %v1334 = vadd.f32 %v1221, %v1333
      %1335 = vmatmul.f32.gmra.mxu0 %v950
      %v1336 = vpop.f32.mrf.mxu0
      %v1337 = vadd.f32 %v1224, %v1336
      %1338 = vmatmul.f32.gmra.mxu0 %v953
      %v1339 = vpop.f32.mrf.mxu0
      %v1340 = vadd.f32 %v1227, %v1339
      %1341 = vmatmul.f32.gmra.mxu0 %v956
      %v1342 = vpop.f32.mrf.mxu0
      %v1343 = vadd.f32 %v1230, %v1342
      %1344 = vmatmul.f32.gmra.mxu0 %v959
      %v1345 = vpop.f32.mrf.mxu0
      %v1346 = vadd.f32 %v1233, %v1345
      %1347 = vmatmul.f32.gmra.mxu0 %v962
      %v1348 = vpop.f32.mrf.mxu0
      %v1349 = vadd.f32 %v1236, %v1348
      %1350 = vmatmul.f32.gmra.mxu0 %v965
      %v1351 = vpop.f32.mrf.mxu0
      %v1352 = vadd.f32 %v1239, %v1351
      %1353 = vmatmul.f32.gmra.mxu0 %v968
      %v1354 = vpop.f32.mrf.mxu0
      %v1355 = vadd.f32 %v1242, %v1354
      %1356 = vmatmul.f32.gmra.mxu0 %v971
      %v1357 = vpop.f32.mrf.mxu0
      %v1358 = vadd.f32 %v1245, %v1357
      %1359 = vmatmul.f32.gmra.mxu0 %v974
      %v1360 = vpop.f32.mrf.mxu0
      %v1361 = vadd.f32 %v1248, %v1360
      %1362 = vdwg.mxu0
      %1363 = vmatpush.msra.mxu0 %v845
      %1364 = vmatpush.msra.mxu0 %v844
      %1365 = vmatpush.msra.mxu0 %v843
      %1366 = vmatpush.msra.mxu0 %v842
      %1367 = vmatpush.msra.mxu0 %v841
      %1368 = vmatpush.msra.mxu0 %v840
      %1369 = vmatpush.msra.mxu0 %v839
      %1370 = vmatpush.msra.mxu0 %v838
      %1371 = vmatpush.msra.mxu0 %v837
      %1372 = vmatpush.msra.mxu0 %v836
      %1373 = vmatpush.msra.mxu0 %v835
      %1374 = vmatpush.msra.mxu0 %v834
      %1375 = vmatpush.msra.mxu0 %v833
      %1376 = vmatpush.msra.mxu0 %v832
      %1377 = vmatpush.msra.mxu0 %v831
      %1378 = vmatpush.msra.mxu0 %v830
      %1379 = vmatmul.f32.gmra.mxu0 %v734
      %v1380 = vpop.f32.mrf.mxu0
      %v1381 = vadd.f32 %v1268, %v1380
      %1382 = vmatmul.f32.gmra.mxu0 %v737
      %v1383 = vpop.f32.mrf.mxu0
      %v1384 = vadd.f32 %v1271, %v1383
      %1385 = vmatmul.f32.gmra.mxu0 %v740
      %v1386 = vpop.f32.mrf.mxu0
      %v1387 = vadd.f32 %v1274, %v1386
      %1388 = vmatmul.f32.gmra.mxu0 %v743
      %v1389 = vpop.f32.mrf.mxu0
      %v1390 = vadd.f32 %v1277, %v1389
      %1391 = vmatmul.f32.gmra.mxu0 %v746
      %v1392 = vpop.f32.mrf.mxu0
      %v1393 = vadd.f32 %v1280, %v1392
      %1394 = vmatmul.f32.gmra.mxu0 %v749
      %v1395 = vpop.f32.mrf.mxu0
      %v1396 = vadd.f32 %v1283, %v1395
      %1397 = vmatmul.f32.gmra.mxu0 %v752
      %v1398 = vpop.f32.mrf.mxu0
      %v1399 = vadd.f32 %v1286, %v1398
      %1400 = vmatmul.f32.gmra.mxu0 %v755
      %v1401 = vpop.f32.mrf.mxu0
      %v1402 = vadd.f32 %v1289, %v1401
      %1403 = vmatmul.f32.gmra.mxu0 %v758
      %v1404 = vpop.f32.mrf.mxu0
      %v1405 = vadd.f32 %v1292, %v1404
      %1406 = vmatmul.f32.gmra.mxu0 %v761
      %v1407 = vpop.f32.mrf.mxu0
      %v1408 = vadd.f32 %v1295, %v1407
      %1409 = vmatmul.f32.gmra.mxu0 %v764
      %v1410 = vpop.f32.mrf.mxu0
      %v1411 = vadd.f32 %v1298, %v1410
      %1412 = vmatmul.f32.gmra.mxu0 %v767
      %v1413 = vpop.f32.mrf.mxu0
      %v1414 = vadd.f32 %v1301, %v1413
      %1415 = vmatmul.f32.gmra.mxu0 %v770
      %v1416 = vpop.f32.mrf.mxu0
      %v1417 = vadd.f32 %v1304, %v1416
      %1418 = vmatmul.f32.gmra.mxu0 %v773
      %v1419 = vpop.f32.mrf.mxu0
      %v1420 = vadd.f32 %v1307, %v1419
      %1421 = vmatmul.f32.gmra.mxu0 %v776
      %v1422 = vpop.f32.mrf.mxu0
      %v1423 = vadd.f32 %v1310, %v1422
      %1424 = vmatmul.f32.gmra.mxu0 %v779
      %v1425 = vpop.f32.mrf.mxu0
      %v1426 = vadd.f32 %v1313, %v1425
      %1427 = vmatmul.f32.gmra.mxu0 %v782
      %v1428 = vpop.f32.mrf.mxu0
      %v1429 = vadd.f32 %v1316, %v1428
      %1430 = vmatmul.f32.gmra.mxu0 %v785
      %v1431 = vpop.f32.mrf.mxu0
      %v1432 = vadd.f32 %v1319, %v1431
      %1433 = vmatmul.f32.gmra.mxu0 %v788
      %v1434 = vpop.f32.mrf.mxu0
      %v1435 = vadd.f32 %v1322, %v1434
      %1436 = vmatmul.f32.gmra.mxu0 %v791
      %v1437 = vpop.f32.mrf.mxu0
      %v1438 = vadd.f32 %v1325, %v1437
      %1439 = vmatmul.f32.gmra.mxu0 %v794
      %v1440 = vpop.f32.mrf.mxu0
      %v1441 = vadd.f32 %v1328, %v1440
      %1442 = vmatmul.f32.gmra.mxu0 %v797
      %v1443 = vpop.f32.mrf.mxu0
      %v1444 = vadd.f32 %v1331, %v1443
      %1445 = vmatmul.f32.gmra.mxu0 %v800
      %v1446 = vpop.f32.mrf.mxu0
      %v1447 = vadd.f32 %v1334, %v1446
      %1448 = vmatmul.f32.gmra.mxu0 %v803
      %v1449 = vpop.f32.mrf.mxu0
      %v1450 = vadd.f32 %v1337, %v1449
      %1451 = vmatmul.f32.gmra.mxu0 %v806
      %v1452 = vpop.f32.mrf.mxu0
      %v1453 = vadd.f32 %v1340, %v1452
      %1454 = vmatmul.f32.gmra.mxu0 %v809
      %v1455 = vpop.f32.mrf.mxu0
      %v1456 = vadd.f32 %v1343, %v1455
      %1457 = vmatmul.f32.gmra.mxu0 %v812
      %v1458 = vpop.f32.mrf.mxu0
      %v1459 = vadd.f32 %v1346, %v1458
      %1460 = vmatmul.f32.gmra.mxu0 %v815
      %v1461 = vpop.f32.mrf.mxu0
      %v1462 = vadd.f32 %v1349, %v1461
      %1463 = vmatmul.f32.gmra.mxu0 %v818
      %v1464 = vpop.f32.mrf.mxu0
      %v1465 = vadd.f32 %v1352, %v1464
      %1466 = vmatmul.f32.gmra.mxu0 %v821
      %v1467 = vpop.f32.mrf.mxu0
      %v1468 = vadd.f32 %v1355, %v1467
      %1469 = vmatmul.f32.gmra.mxu0 %v824
      %v1470 = vpop.f32.mrf.mxu0
      %v1471 = vadd.f32 %v1358, %v1470
      %1472 = vmatmul.f32.gmra.mxu0 %v827
      %v1473 = vpop.f32.mrf.mxu0
      %v1474 = vadd.f32 %v1361, %v1473
      %1475 = vdwg.mxu0
      %1476 = vmatpush.msra.mxu0 %v861
      %1477 = vmatpush.msra.mxu0 %v860
      %1478 = vmatpush.msra.mxu0 %v859
      %1479 = vmatpush.msra.mxu0 %v858
      %1480 = vmatpush.msra.mxu0 %v857
      %1481 = vmatpush.msra.mxu0 %v856
      %1482 = vmatpush.msra.mxu0 %v855
      %1483 = vmatpush.msra.mxu0 %v854
      %1484 = vmatpush.msra.mxu0 %v853
      %1485 = vmatpush.msra.mxu0 %v852
      %1486 = vmatpush.msra.mxu0 %v851
      %1487 = vmatpush.msra.mxu0 %v850
      %1488 = vmatpush.msra.mxu0 %v849
      %1489 = vmatpush.msra.mxu0 %v848
      %1490 = vmatpush.msra.mxu0 %v847
      %1491 = vmatpush.msra.mxu0 %v846
      %1492 = vmatmul.f32.gmra.mxu0 %v735
      %v1493 = vpop.f32.mrf.mxu0
      %v1494 = vadd.f32 %v1381, %v1493
      %1495 = vmatmul.f32.gmra.mxu0 %v738
      %v1496 = vpop.f32.mrf.mxu0
      %v1497 = vadd.f32 %v1384, %v1496
      %1498 = vmatmul.f32.gmra.mxu0 %v741
      %v1499 = vpop.f32.mrf.mxu0
      %v1500 = vadd.f32 %v1387, %v1499
      %1501 = vmatmul.f32.gmra.mxu0 %v744
      %v1502 = vpop.f32.mrf.mxu0
      %v1503 = vadd.f32 %v1390, %v1502
      %1504 = vmatmul.f32.gmra.mxu0 %v747
      %v1505 = vpop.f32.mrf.mxu0
      %v1506 = vadd.f32 %v1393, %v1505
      %1507 = vmatmul.f32.gmra.mxu0 %v750
      %v1508 = vpop.f32.mrf.mxu0
      %v1509 = vadd.f32 %v1396, %v1508
      %1510 = vmatmul.f32.gmra.mxu0 %v753
      %v1511 = vpop.f32.mrf.mxu0
      %v1512 = vadd.f32 %v1399, %v1511
      %1513 = vmatmul.f32.gmra.mxu0 %v756
      %v1514 = vpop.f32.mrf.mxu0
      %v1515 = vadd.f32 %v1402, %v1514
      %1516 = vmatmul.f32.gmra.mxu0 %v759
      %v1517 = vpop.f32.mrf.mxu0
      %v1518 = vadd.f32 %v1405, %v1517
      %1519 = vmatmul.f32.gmra.mxu0 %v762
      %v1520 = vpop.f32.mrf.mxu0
      %v1521 = vadd.f32 %v1408, %v1520
      %1522 = vmatmul.f32.gmra.mxu0 %v765
      %v1523 = vpop.f32.mrf.mxu0
      %v1524 = vadd.f32 %v1411, %v1523
      %1525 = vmatmul.f32.gmra.mxu0 %v768
      %v1526 = vpop.f32.mrf.mxu0
      %v1527 = vadd.f32 %v1414, %v1526
      %1528 = vmatmul.f32.gmra.mxu0 %v771
      %v1529 = vpop.f32.mrf.mxu0
      %v1530 = vadd.f32 %v1417, %v1529
      %1531 = vmatmul.f32.gmra.mxu0 %v774
      %v1532 = vpop.f32.mrf.mxu0
      %v1533 = vadd.f32 %v1420, %v1532
      %1534 = vmatmul.f32.gmra.mxu0 %v777
      %v1535 = vpop.f32.mrf.mxu0
      %v1536 = vadd.f32 %v1423, %v1535
      %1537 = vmatmul.f32.gmra.mxu0 %v780
      %v1538 = vpop.f32.mrf.mxu0
      %v1539 = vadd.f32 %v1426, %v1538
      %1540 = vmatmul.f32.gmra.mxu0 %v783
      %v1541 = vpop.f32.mrf.mxu0
      %v1542 = vadd.f32 %v1429, %v1541
      %1543 = vmatmul.f32.gmra.mxu0 %v786
      %v1544 = vpop.f32.mrf.mxu0
      %v1545 = vadd.f32 %v1432, %v1544
      %1546 = vmatmul.f32.gmra.mxu0 %v789
      %v1547 = vpop.f32.mrf.mxu0
      %v1548 = vadd.f32 %v1435, %v1547
      %1549 = vmatmul.f32.gmra.mxu0 %v792
      %v1550 = vpop.f32.mrf.mxu0
      %v1551 = vadd.f32 %v1438, %v1550
      %1552 = vmatmul.f32.gmra.mxu0 %v795
      %v1553 = vpop.f32.mrf.mxu0
      %v1554 = vadd.f32 %v1441, %v1553
      %1555 = vmatmul.f32.gmra.mxu0 %v798
      %v1556 = vpop.f32.mrf.mxu0
      %v1557 = vadd.f32 %v1444, %v1556
      %1558 = vmatmul.f32.gmra.mxu0 %v801
      %v1559 = vpop.f32.mrf.mxu0
      %v1560 = vadd.f32 %v1447, %v1559
      %1561 = vmatmul.f32.gmra.mxu0 %v804
      %v1562 = vpop.f32.mrf.mxu0
      %v1563 = vadd.f32 %v1450, %v1562
      %1564 = vmatmul.f32.gmra.mxu0 %v807
      %v1565 = vpop.f32.mrf.mxu0
      %v1566 = vadd.f32 %v1453, %v1565
      %1567 = vmatmul.f32.gmra.mxu0 %v810
      %v1568 = vpop.f32.mrf.mxu0
      %v1569 = vadd.f32 %v1456, %v1568
      %1570 = vmatmul.f32.gmra.mxu0 %v813
      %v1571 = vpop.f32.mrf.mxu0
      %v1572 = vadd.f32 %v1459, %v1571
      %1573 = vmatmul.f32.gmra.mxu0 %v816
      %v1574 = vpop.f32.mrf.mxu0
      %v1575 = vadd.f32 %v1462, %v1574
      %1576 = vmatmul.f32.gmra.mxu0 %v819
      %v1577 = vpop.f32.mrf.mxu0
      %v1578 = vadd.f32 %v1465, %v1577
      %1579 = vmatmul.f32.gmra.mxu0 %v822
      %v1580 = vpop.f32.mrf.mxu0
      %v1581 = vadd.f32 %v1468, %v1580
      %1582 = vmatmul.f32.gmra.mxu0 %v825
      %v1583 = vpop.f32.mrf.mxu0
      %v1584 = vadd.f32 %v1471, %v1583
      %1585 = vmatmul.f32.gmra.mxu0 %v828
      %v1586 = vpop.f32.mrf.mxu0
      %v1587 = vadd.f32 %v1474, %v1586
      %1588 = vdwg.mxu0
      %1589 = vmatpush.msra.mxu0 %v877
      %1590 = vmatpush.msra.mxu0 %v876
      %1591 = vmatpush.msra.mxu0 %v875
      %1592 = vmatpush.msra.mxu0 %v874
      %1593 = vmatpush.msra.mxu0 %v873
      %1594 = vmatpush.msra.mxu0 %v872
      %1595 = vmatpush.msra.mxu0 %v871
      %1596 = vmatpush.msra.mxu0 %v870
      %1597 = vmatpush.msra.mxu0 %v869
      %1598 = vmatpush.msra.mxu0 %v868
      %1599 = vmatpush.msra.mxu0 %v867
      %1600 = vmatpush.msra.mxu0 %v866
      %1601 = vmatpush.msra.mxu0 %v865
      %1602 = vmatpush.msra.mxu0 %v864
      %1603 = vmatpush.msra.mxu0 %v863
      %1604 = vmatpush.msra.mxu0 %v862
      %1605 = vmatmul.f32.gmra.mxu0 %v736
      %v1606 = vpop.f32.mrf.mxu0
      %v1607 = vadd.f32 %v1494, %v1606
      %1608 = vmatmul.f32.gmra.mxu0 %v739
      %v1609 = vpop.f32.mrf.mxu0
      %v1610 = vadd.f32 %v1497, %v1609
      %1611 = vmatmul.f32.gmra.mxu0 %v742
      %v1612 = vpop.f32.mrf.mxu0
      %v1613 = vadd.f32 %v1500, %v1612
      %1614 = vmatmul.f32.gmra.mxu0 %v745
      %v1615 = vpop.f32.mrf.mxu0
      %v1616 = vadd.f32 %v1503, %v1615
      %1617 = vmatmul.f32.gmra.mxu0 %v748
      %v1618 = vpop.f32.mrf.mxu0
      %v1619 = vadd.f32 %v1506, %v1618
      %1620 = vmatmul.f32.gmra.mxu0 %v751
      %v1621 = vpop.f32.mrf.mxu0
      %v1622 = vadd.f32 %v1509, %v1621
      %1623 = vmatmul.f32.gmra.mxu0 %v754
      %v1624 = vpop.f32.mrf.mxu0
      %v1625 = vadd.f32 %v1512, %v1624
      %1626 = vmatmul.f32.gmra.mxu0 %v757
      %v1627 = vpop.f32.mrf.mxu0
      %v1628 = vadd.f32 %v1515, %v1627
      %1629 = vmatmul.f32.gmra.mxu0 %v760
      %v1630 = vpop.f32.mrf.mxu0
      %v1631 = vadd.f32 %v1518, %v1630
      %1632 = vmatmul.f32.gmra.mxu0 %v763
      %v1633 = vpop.f32.mrf.mxu0
      %v1634 = vadd.f32 %v1521, %v1633
      %1635 = vmatmul.f32.gmra.mxu0 %v766
      %v1636 = vpop.f32.mrf.mxu0
      %v1637 = vadd.f32 %v1524, %v1636
      %1638 = vmatmul.f32.gmra.mxu0 %v769
      %v1639 = vpop.f32.mrf.mxu0
      %v1640 = vadd.f32 %v1527, %v1639
      %1641 = vmatmul.f32.gmra.mxu0 %v772
      %v1642 = vpop.f32.mrf.mxu0
      %v1643 = vadd.f32 %v1530, %v1642
      %1644 = vmatmul.f32.gmra.mxu0 %v775
      %v1645 = vpop.f32.mrf.mxu0
      %v1646 = vadd.f32 %v1533, %v1645
      %1647 = vmatmul.f32.gmra.mxu0 %v778
      %v1648 = vpop.f32.mrf.mxu0
      %v1649 = vadd.f32 %v1536, %v1648
      %1650 = vmatmul.f32.gmra.mxu0 %v781
      %v1651 = vpop.f32.mrf.mxu0
      %v1652 = vadd.f32 %v1539, %v1651
      %1653 = vmatmul.f32.gmra.mxu0 %v784
      %v1654 = vpop.f32.mrf.mxu0
      %v1655 = vadd.f32 %v1542, %v1654
      %1656 = vmatmul.f32.gmra.mxu0 %v787
      %v1657 = vpop.f32.mrf.mxu0
      %v1658 = vadd.f32 %v1545, %v1657
      %1659 = vmatmul.f32.gmra.mxu0 %v790
      %v1660 = vpop.f32.mrf.mxu0
      %v1661 = vadd.f32 %v1548, %v1660
      %1662 = vmatmul.f32.gmra.mxu0 %v793
      %v1663 = vpop.f32.mrf.mxu0
      %v1664 = vadd.f32 %v1551, %v1663
      %1665 = vmatmul.f32.gmra.mxu0 %v796
      %v1666 = vpop.f32.mrf.mxu0
      %v1667 = vadd.f32 %v1554, %v1666
      %1668 = vmatmul.f32.gmra.mxu0 %v799
      %v1669 = vpop.f32.mrf.mxu0
      %v1670 = vadd.f32 %v1557, %v1669
      %1671 = vmatmul.f32.gmra.mxu0 %v802
      %v1672 = vpop.f32.mrf.mxu0
      %v1673 = vadd.f32 %v1560, %v1672
      %1674 = vmatmul.f32.gmra.mxu0 %v805
      %v1675 = vpop.f32.mrf.mxu0
      %v1676 = vadd.f32 %v1563, %v1675
      %1677 = vmatmul.f32.gmra.mxu0 %v808
      %v1678 = vpop.f32.mrf.mxu0
      %v1679 = vadd.f32 %v1566, %v1678
      %1680 = vmatmul.f32.gmra.mxu0 %v811
      %v1681 = vpop.f32.mrf.mxu0
      %v1682 = vadd.f32 %v1569, %v1681
      %1683 = vmatmul.f32.gmra.mxu0 %v814
      %v1684 = vpop.f32.mrf.mxu0
      %v1685 = vadd.f32 %v1572, %v1684
      %1686 = vmatmul.f32.gmra.mxu0 %v817
      %v1687 = vpop.f32.mrf.mxu0
      %v1688 = vadd.f32 %v1575, %v1687
      %1689 = vmatmul.f32.gmra.mxu0 %v820
      %v1690 = vpop.f32.mrf.mxu0
      %v1691 = vadd.f32 %v1578, %v1690
      %1692 = vmatmul.f32.gmra.mxu0 %v823
      %v1693 = vpop.f32.mrf.mxu0
      %v1694 = vadd.f32 %v1581, %v1693
      %1695 = vmatmul.f32.gmra.mxu0 %v826
      %v1696 = vpop.f32.mrf.mxu0
      %v1697 = vadd.f32 %v1584, %v1696
      %1698 = vmatmul.f32.gmra.mxu0 %v829
      %v1699 = vpop.f32.mrf.mxu0
      %v1700 = vadd.f32 %v1587, %v1699
      %1701 = vdwg.mxu0
      %s1702 = scalar_lea.vmem [#allocation4], 96
      %v1703 = vld [vmem:[%s1702] sm:$0xff]
      %v1704 = vld [vmem:[%s1702 + $0x8] sm:$0xff]
      %v1705 = vld [vmem:[%s1702 + $0x10] sm:$0xff]
      %v1706 = vld [vmem:[%s1702 + $0x18] sm:$0xff]
      %v1707 = vld [vmem:[%s1702 + $0x20] sm:$0xff]
      %v1708 = vld [vmem:[%s1702 + $0x28] sm:$0xff]
      %v1709 = vld [vmem:[%s1702 + $0x30] sm:$0xff]
      %v1710 = vld [vmem:[%s1702 + $0x38] sm:$0xff]
      %v1711 = vld [vmem:[%s1702 + $0x40] sm:$0xff]
      %v1712 = vld [vmem:[%s1702 + $0x48] sm:$0xff]
      %v1713 = vld [vmem:[%s1702 + $0x50] sm:$0xff]
      %v1714 = vld [vmem:[%s1702 + $0x58] sm:$0xff]
      %v1715 = vld [vmem:[%s1702 + $0x60] sm:$0xff]
      %v1716 = vld [vmem:[%s1702 + $0x68] sm:$0xff]
      %v1717 = vld [vmem:[%s1702 + $0x70] sm:$0xff]
      %v1718 = vld [vmem:[%s1702 + $0x78] sm:$0xff]
      %v1719 = vld [vmem:[%s1702 + $0x80] sm:$0xff]
      %v1720 = vld [vmem:[%s1702 + $0x88] sm:$0xff]
      %v1721 = vld [vmem:[%s1702 + $0x90] sm:$0xff]
      %v1722 = vld [vmem:[%s1702 + $0x98] sm:$0xff]
      %v1723 = vld [vmem:[%s1702 + $0xa0] sm:$0xff]
      %v1724 = vld [vmem:[%s1702 + $0xa8] sm:$0xff]
      %v1725 = vld [vmem:[%s1702 + $0xb0] sm:$0xff]
      %v1726 = vld [vmem:[%s1702 + $0xb8] sm:$0xff]
      %v1727 = vld [vmem:[%s1702 + $0xc0] sm:$0xff]
      %v1728 = vld [vmem:[%s1702 + $0xc8] sm:$0xff]
      %v1729 = vld [vmem:[%s1702 + $0xd0] sm:$0xff]
      %v1730 = vld [vmem:[%s1702 + $0xd8] sm:$0xff]
      %v1731 = vld [vmem:[%s1702 + $0xe0] sm:$0xff]
      %v1732 = vld [vmem:[%s1702 + $0xe8] sm:$0xff]
      %v1733 = vld [vmem:[%s1702 + $0xf0] sm:$0xff]
      %v1734 = vld [vmem:[%s1702 + $0xf8] sm:$0xff]
      %v1735 = vld [vmem:[%s1702 + $0x100] sm:$0xff]
      %v1736 = vld [vmem:[%s1702 + $0x108] sm:$0xff]
      %v1737 = vld [vmem:[%s1702 + $0x110] sm:$0xff]
      %v1738 = vld [vmem:[%s1702 + $0x118] sm:$0xff]
      %v1739 = vld [vmem:[%s1702 + $0x120] sm:$0xff]
      %v1740 = vld [vmem:[%s1702 + $0x128] sm:$0xff]
      %v1741 = vld [vmem:[%s1702 + $0x130] sm:$0xff]
      %v1742 = vld [vmem:[%s1702 + $0x138] sm:$0xff]
      %v1743 = vld [vmem:[%s1702 + $0x140] sm:$0xff]
      %v1744 = vld [vmem:[%s1702 + $0x148] sm:$0xff]
      %v1745 = vld [vmem:[%s1702 + $0x150] sm:$0xff]
      %v1746 = vld [vmem:[%s1702 + $0x158] sm:$0xff]
      %v1747 = vld [vmem:[%s1702 + $0x160] sm:$0xff]
      %v1748 = vld [vmem:[%s1702 + $0x168] sm:$0xff]
      %v1749 = vld [vmem:[%s1702 + $0x170] sm:$0xff]
      %v1750 = vld [vmem:[%s1702 + $0x178] sm:$0xff]
      %v1751 = vld [vmem:[%s1702 + $0x180] sm:$0xff]
      %v1752 = vld [vmem:[%s1702 + $0x188] sm:$0xff]
      %v1753 = vld [vmem:[%s1702 + $0x190] sm:$0xff]
      %v1754 = vld [vmem:[%s1702 + $0x198] sm:$0xff]
      %v1755 = vld [vmem:[%s1702 + $0x1a0] sm:$0xff]
      %v1756 = vld [vmem:[%s1702 + $0x1a8] sm:$0xff]
      %v1757 = vld [vmem:[%s1702 + $0x1b0] sm:$0xff]
      %v1758 = vld [vmem:[%s1702 + $0x1b8] sm:$0xff]
      %v1759 = vld [vmem:[%s1702 + $0x1c0] sm:$0xff]
      %v1760 = vld [vmem:[%s1702 + $0x1c8] sm:$0xff]
      %v1761 = vld [vmem:[%s1702 + $0x1d0] sm:$0xff]
      %v1762 = vld [vmem:[%s1702 + $0x1d8] sm:$0xff]
      %v1763 = vld [vmem:[%s1702 + $0x1e0] sm:$0xff]
      %v1764 = vld [vmem:[%s1702 + $0x1e8] sm:$0xff]
      %v1765 = vld [vmem:[%s1702 + $0x1f0] sm:$0xff]
      %v1766 = vld [vmem:[%s1702 + $0x1f8] sm:$0xff]
      %v1767 = vld [vmem:[%s1702 + $0x200] sm:$0xff]
      %v1768 = vld [vmem:[%s1702 + $0x208] sm:$0xff]
      %v1769 = vld [vmem:[%s1702 + $0x210] sm:$0xff]
      %v1770 = vld [vmem:[%s1702 + $0x218] sm:$0xff]
      %v1771 = vld [vmem:[%s1702 + $0x220] sm:$0xff]
      %v1772 = vld [vmem:[%s1702 + $0x228] sm:$0xff]
      %v1773 = vld [vmem:[%s1702 + $0x230] sm:$0xff]
      %v1774 = vld [vmem:[%s1702 + $0x238] sm:$0xff]
      %v1775 = vld [vmem:[%s1702 + $0x240] sm:$0xff]
      %v1776 = vld [vmem:[%s1702 + $0x248] sm:$0xff]
      %v1777 = vld [vmem:[%s1702 + $0x250] sm:$0xff]
      %v1778 = vld [vmem:[%s1702 + $0x258] sm:$0xff]
      %v1779 = vld [vmem:[%s1702 + $0x260] sm:$0xff]
      %v1780 = vld [vmem:[%s1702 + $0x268] sm:$0xff]
      %v1781 = vld [vmem:[%s1702 + $0x270] sm:$0xff]
      %v1782 = vld [vmem:[%s1702 + $0x278] sm:$0xff]
      %v1783 = vld [vmem:[%s1702 + $0x280] sm:$0xff]
      %v1784 = vld [vmem:[%s1702 + $0x288] sm:$0xff]
      %v1785 = vld [vmem:[%s1702 + $0x290] sm:$0xff]
      %v1786 = vld [vmem:[%s1702 + $0x298] sm:$0xff]
      %v1787 = vld [vmem:[%s1702 + $0x2a0] sm:$0xff]
      %v1788 = vld [vmem:[%s1702 + $0x2a8] sm:$0xff]
      %v1789 = vld [vmem:[%s1702 + $0x2b0] sm:$0xff]
      %v1790 = vld [vmem:[%s1702 + $0x2b8] sm:$0xff]
      %v1791 = vld [vmem:[%s1702 + $0x2c0] sm:$0xff]
      %v1792 = vld [vmem:[%s1702 + $0x2c8] sm:$0xff]
      %v1793 = vld [vmem:[%s1702 + $0x2d0] sm:$0xff]
      %v1794 = vld [vmem:[%s1702 + $0x2d8] sm:$0xff]
      %v1795 = vld [vmem:[%s1702 + $0x2e0] sm:$0xff]
      %v1796 = vld [vmem:[%s1702 + $0x2e8] sm:$0xff]
      %v1797 = vld [vmem:[%s1702 + $0x2f0] sm:$0xff]
      %v1798 = vld [vmem:[%s1702 + $0x2f8] sm:$0xff]
      %s1799 = scalar_lea.vmem %s288, 768
      %v1800 = vld [vmem:[%s1799] sm:$0xff]
      %v1801 = vld [vmem:[%s1799 + $0x8] sm:$0xff]
      %v1802 = vld [vmem:[%s1799 + $0x10] sm:$0xff]
      %v1803 = vld [vmem:[%s1799 + $0x18] sm:$0xff]
      %v1804 = vld [vmem:[%s1799 + $0x20] sm:$0xff]
      %v1805 = vld [vmem:[%s1799 + $0x28] sm:$0xff]
      %v1806 = vld [vmem:[%s1799 + $0x30] sm:$0xff]
      %v1807 = vld [vmem:[%s1799 + $0x38] sm:$0xff]
      %v1808 = vld [vmem:[%s1799 + $0x40] sm:$0xff]
      %v1809 = vld [vmem:[%s1799 + $0x48] sm:$0xff]
      %v1810 = vld [vmem:[%s1799 + $0x50] sm:$0xff]
      %v1811 = vld [vmem:[%s1799 + $0x58] sm:$0xff]
      %v1812 = vld [vmem:[%s1799 + $0x60] sm:$0xff]
      %v1813 = vld [vmem:[%s1799 + $0x68] sm:$0xff]
      %v1814 = vld [vmem:[%s1799 + $0x70] sm:$0xff]
      %v1815 = vld [vmem:[%s1799 + $0x78] sm:$0xff]
      %v1816 = vld [vmem:[%s1799 + $0x80] sm:$0xff]
      %v1817 = vld [vmem:[%s1799 + $0x88] sm:$0xff]
      %v1818 = vld [vmem:[%s1799 + $0x90] sm:$0xff]
      %v1819 = vld [vmem:[%s1799 + $0x98] sm:$0xff]
      %v1820 = vld [vmem:[%s1799 + $0xa0] sm:$0xff]
      %v1821 = vld [vmem:[%s1799 + $0xa8] sm:$0xff]
      %v1822 = vld [vmem:[%s1799 + $0xb0] sm:$0xff]
      %v1823 = vld [vmem:[%s1799 + $0xb8] sm:$0xff]
      %v1824 = vld [vmem:[%s1799 + $0xc0] sm:$0xff]
      %v1825 = vld [vmem:[%s1799 + $0xc8] sm:$0xff]
      %v1826 = vld [vmem:[%s1799 + $0xd0] sm:$0xff]
      %v1827 = vld [vmem:[%s1799 + $0xd8] sm:$0xff]
      %v1828 = vld [vmem:[%s1799 + $0xe0] sm:$0xff]
      %v1829 = vld [vmem:[%s1799 + $0xe8] sm:$0xff]
      %v1830 = vld [vmem:[%s1799 + $0xf0] sm:$0xff]
      %v1831 = vld [vmem:[%s1799 + $0xf8] sm:$0xff]
      %v1832 = vld [vmem:[%s1799 + $0x100] sm:$0xff]
      %v1833 = vld [vmem:[%s1799 + $0x108] sm:$0xff]
      %v1834 = vld [vmem:[%s1799 + $0x110] sm:$0xff]
      %v1835 = vld [vmem:[%s1799 + $0x118] sm:$0xff]
      %v1836 = vld [vmem:[%s1799 + $0x120] sm:$0xff]
      %v1837 = vld [vmem:[%s1799 + $0x128] sm:$0xff]
      %v1838 = vld [vmem:[%s1799 + $0x130] sm:$0xff]
      %v1839 = vld [vmem:[%s1799 + $0x138] sm:$0xff]
      %v1840 = vld [vmem:[%s1799 + $0x140] sm:$0xff]
      %v1841 = vld [vmem:[%s1799 + $0x148] sm:$0xff]
      %v1842 = vld [vmem:[%s1799 + $0x150] sm:$0xff]
      %v1843 = vld [vmem:[%s1799 + $0x158] sm:$0xff]
      %v1844 = vld [vmem:[%s1799 + $0x160] sm:$0xff]
      %v1845 = vld [vmem:[%s1799 + $0x168] sm:$0xff]
      %v1846 = vld [vmem:[%s1799 + $0x170] sm:$0xff]
      %v1847 = vld [vmem:[%s1799 + $0x178] sm:$0xff]
      %1848 = vmatpush.msra.mxu0 %v1815
      %1849 = vmatpush.msra.mxu0 %v1814
      %1850 = vmatpush.msra.mxu0 %v1813
      %1851 = vmatpush.msra.mxu0 %v1812
      %1852 = vmatpush.msra.mxu0 %v1811
      %1853 = vmatpush.msra.mxu0 %v1810
      %1854 = vmatpush.msra.mxu0 %v1809
      %1855 = vmatpush.msra.mxu0 %v1808
      %1856 = vmatpush.msra.mxu0 %v1807
      %1857 = vmatpush.msra.mxu0 %v1806
      %1858 = vmatpush.msra.mxu0 %v1805
      %1859 = vmatpush.msra.mxu0 %v1804
      %1860 = vmatpush.msra.mxu0 %v1803
      %1861 = vmatpush.msra.mxu0 %v1802
      %1862 = vmatpush.msra.mxu0 %v1801
      %1863 = vmatpush.msra.mxu0 %v1800
      %1864 = vmatmul.f32.gmra.mxu0 %v1703
      %v1865 = vpop.f32.mrf.mxu0
      %v1866 = vadd.f32 0.0, %v1865
      %1867 = vmatmul.f32.gmra.mxu0 %v1706
      %v1868 = vpop.f32.mrf.mxu0
      %v1869 = vadd.f32 0.0, %v1868
      %1870 = vmatmul.f32.gmra.mxu0 %v1709
      %v1871 = vpop.f32.mrf.mxu0
      %v1872 = vadd.f32 0.0, %v1871
      %1873 = vmatmul.f32.gmra.mxu0 %v1712
      %v1874 = vpop.f32.mrf.mxu0
      %v1875 = vadd.f32 0.0, %v1874
      %1876 = vmatmul.f32.gmra.mxu0 %v1715
      %v1877 = vpop.f32.mrf.mxu0
      %v1878 = vadd.f32 0.0, %v1877
      %1879 = vmatmul.f32.gmra.mxu0 %v1718
      %v1880 = vpop.f32.mrf.mxu0
      %v1881 = vadd.f32 0.0, %v1880
      %1882 = vmatmul.f32.gmra.mxu0 %v1721
      %v1883 = vpop.f32.mrf.mxu0
      %v1884 = vadd.f32 0.0, %v1883
      %1885 = vmatmul.f32.gmra.mxu0 %v1724
      %v1886 = vpop.f32.mrf.mxu0
      %v1887 = vadd.f32 0.0, %v1886
      %1888 = vmatmul.f32.gmra.mxu0 %v1727
      %v1889 = vpop.f32.mrf.mxu0
      %v1890 = vadd.f32 0.0, %v1889
      %1891 = vmatmul.f32.gmra.mxu0 %v1730
      %v1892 = vpop.f32.mrf.mxu0
      %v1893 = vadd.f32 0.0, %v1892
      %1894 = vmatmul.f32.gmra.mxu0 %v1733
      %v1895 = vpop.f32.mrf.mxu0
      %v1896 = vadd.f32 0.0, %v1895
      %1897 = vmatmul.f32.gmra.mxu0 %v1736
      %v1898 = vpop.f32.mrf.mxu0
      %v1899 = vadd.f32 0.0, %v1898
      %1900 = vmatmul.f32.gmra.mxu0 %v1739
      %v1901 = vpop.f32.mrf.mxu0
      %v1902 = vadd.f32 0.0, %v1901
      %1903 = vmatmul.f32.gmra.mxu0 %v1742
      %v1904 = vpop.f32.mrf.mxu0
      %v1905 = vadd.f32 0.0, %v1904
      %1906 = vmatmul.f32.gmra.mxu0 %v1745
      %v1907 = vpop.f32.mrf.mxu0
      %v1908 = vadd.f32 0.0, %v1907
      %1909 = vmatmul.f32.gmra.mxu0 %v1748
      %v1910 = vpop.f32.mrf.mxu0
      %v1911 = vadd.f32 0.0, %v1910
      %1912 = vmatmul.f32.gmra.mxu0 %v1751
      %v1913 = vpop.f32.mrf.mxu0
      %v1914 = vadd.f32 0.0, %v1913
      %1915 = vmatmul.f32.gmra.mxu0 %v1754
      %v1916 = vpop.f32.mrf.mxu0
      %v1917 = vadd.f32 0.0, %v1916
      %1918 = vmatmul.f32.gmra.mxu0 %v1757
      %v1919 = vpop.f32.mrf.mxu0
      %v1920 = vadd.f32 0.0, %v1919
      %1921 = vmatmul.f32.gmra.mxu0 %v1760
      %v1922 = vpop.f32.mrf.mxu0
      %v1923 = vadd.f32 0.0, %v1922
      %1924 = vmatmul.f32.gmra.mxu0 %v1763
      %v1925 = vpop.f32.mrf.mxu0
      %v1926 = vadd.f32 0.0, %v1925
      %1927 = vmatmul.f32.gmra.mxu0 %v1766
      %v1928 = vpop.f32.mrf.mxu0
      %v1929 = vadd.f32 0.0, %v1928
      %1930 = vmatmul.f32.gmra.mxu0 %v1769
      %v1931 = vpop.f32.mrf.mxu0
      %v1932 = vadd.f32 0.0, %v1931
      %1933 = vmatmul.f32.gmra.mxu0 %v1772
      %v1934 = vpop.f32.mrf.mxu0
      %v1935 = vadd.f32 0.0, %v1934
      %1936 = vmatmul.f32.gmra.mxu0 %v1775
      %v1937 = vpop.f32.mrf.mxu0
      %v1938 = vadd.f32 0.0, %v1937
      %1939 = vmatmul.f32.gmra.mxu0 %v1778
      %v1940 = vpop.f32.mrf.mxu0
      %v1941 = vadd.f32 0.0, %v1940
      %1942 = vmatmul.f32.gmra.mxu0 %v1781
      %v1943 = vpop.f32.mrf.mxu0
      %v1944 = vadd.f32 0.0, %v1943
      %1945 = vmatmul.f32.gmra.mxu0 %v1784
      %v1946 = vpop.f32.mrf.mxu0
      %v1947 = vadd.f32 0.0, %v1946
      %1948 = vmatmul.f32.gmra.mxu0 %v1787
      %v1949 = vpop.f32.mrf.mxu0
      %v1950 = vadd.f32 0.0, %v1949
      %1951 = vmatmul.f32.gmra.mxu0 %v1790
      %v1952 = vpop.f32.mrf.mxu0
      %v1953 = vadd.f32 0.0, %v1952
      %1954 = vmatmul.f32.gmra.mxu0 %v1793
      %v1955 = vpop.f32.mrf.mxu0
      %v1956 = vadd.f32 0.0, %v1955
      %1957 = vmatmul.f32.gmra.mxu0 %v1796
      %v1958 = vpop.f32.mrf.mxu0
      %v1959 = vadd.f32 0.0, %v1958
      %1960 = vdwg.mxu0
      %1961 = vmatpush.msra.mxu0 %v1831
      %1962 = vmatpush.msra.mxu0 %v1830
      %1963 = vmatpush.msra.mxu0 %v1829
      %1964 = vmatpush.msra.mxu0 %v1828
      %1965 = vmatpush.msra.mxu0 %v1827
      %1966 = vmatpush.msra.mxu0 %v1826
      %1967 = vmatpush.msra.mxu0 %v1825
      %1968 = vmatpush.msra.mxu0 %v1824
      %1969 = vmatpush.msra.mxu0 %v1823
      %1970 = vmatpush.msra.mxu0 %v1822
      %1971 = vmatpush.msra.mxu0 %v1821
      %1972 = vmatpush.msra.mxu0 %v1820
      %1973 = vmatpush.msra.mxu0 %v1819
      %1974 = vmatpush.msra.mxu0 %v1818
      %1975 = vmatpush.msra.mxu0 %v1817
      %1976 = vmatpush.msra.mxu0 %v1816
      %1977 = vmatmul.f32.gmra.mxu0 %v1704
      %v1978 = vpop.f32.mrf.mxu0
      %v1979 = vadd.f32 %v1866, %v1978
      %1980 = vmatmul.f32.gmra.mxu0 %v1707
      %v1981 = vpop.f32.mrf.mxu0
      %v1982 = vadd.f32 %v1869, %v1981
      %1983 = vmatmul.f32.gmra.mxu0 %v1710
      %v1984 = vpop.f32.mrf.mxu0
      %v1985 = vadd.f32 %v1872, %v1984
      %1986 = vmatmul.f32.gmra.mxu0 %v1713
      %v1987 = vpop.f32.mrf.mxu0
      %v1988 = vadd.f32 %v1875, %v1987
      %1989 = vmatmul.f32.gmra.mxu0 %v1716
      %v1990 = vpop.f32.mrf.mxu0
      %v1991 = vadd.f32 %v1878, %v1990
      %1992 = vmatmul.f32.gmra.mxu0 %v1719
      %v1993 = vpop.f32.mrf.mxu0
      %v1994 = vadd.f32 %v1881, %v1993
      %1995 = vmatmul.f32.gmra.mxu0 %v1722
      %v1996 = vpop.f32.mrf.mxu0
      %v1997 = vadd.f32 %v1884, %v1996
      %1998 = vmatmul.f32.gmra.mxu0 %v1725
      %v1999 = vpop.f32.mrf.mxu0
      %v2000 = vadd.f32 %v1887, %v1999
      %2001 = vmatmul.f32.gmra.mxu0 %v1728
      %v2002 = vpop.f32.mrf.mxu0
      %v2003 = vadd.f32 %v1890, %v2002
      %2004 = vmatmul.f32.gmra.mxu0 %v1731
      %v2005 = vpop.f32.mrf.mxu0
      %v2006 = vadd.f32 %v1893, %v2005
      %2007 = vmatmul.f32.gmra.mxu0 %v1734
      %v2008 = vpop.f32.mrf.mxu0
      %v2009 = vadd.f32 %v1896, %v2008
      %2010 = vmatmul.f32.gmra.mxu0 %v1737
      %v2011 = vpop.f32.mrf.mxu0
      %v2012 = vadd.f32 %v1899, %v2011
      %2013 = vmatmul.f32.gmra.mxu0 %v1740
      %v2014 = vpop.f32.mrf.mxu0
      %v2015 = vadd.f32 %v1902, %v2014
      %2016 = vmatmul.f32.gmra.mxu0 %v1743
      %v2017 = vpop.f32.mrf.mxu0
      %v2018 = vadd.f32 %v1905, %v2017
      %2019 = vmatmul.f32.gmra.mxu0 %v1746
      %v2020 = vpop.f32.mrf.mxu0
      %v2021 = vadd.f32 %v1908, %v2020
      %2022 = vmatmul.f32.gmra.mxu0 %v1749
      %v2023 = vpop.f32.mrf.mxu0
      %v2024 = vadd.f32 %v1911, %v2023
      %2025 = vmatmul.f32.gmra.mxu0 %v1752
      %v2026 = vpop.f32.mrf.mxu0
      %v2027 = vadd.f32 %v1914, %v2026
      %2028 = vmatmul.f32.gmra.mxu0 %v1755
      %v2029 = vpop.f32.mrf.mxu0
      %v2030 = vadd.f32 %v1917, %v2029
      %2031 = vmatmul.f32.gmra.mxu0 %v1758
      %v2032 = vpop.f32.mrf.mxu0
      %v2033 = vadd.f32 %v1920, %v2032
      %2034 = vmatmul.f32.gmra.mxu0 %v1761
      %v2035 = vpop.f32.mrf.mxu0
      %v2036 = vadd.f32 %v1923, %v2035
      %2037 = vmatmul.f32.gmra.mxu0 %v1764
      %v2038 = vpop.f32.mrf.mxu0
      %v2039 = vadd.f32 %v1926, %v2038
      %2040 = vmatmul.f32.gmra.mxu0 %v1767
      %v2041 = vpop.f32.mrf.mxu0
      %v2042 = vadd.f32 %v1929, %v2041
      %2043 = vmatmul.f32.gmra.mxu0 %v1770
      %v2044 = vpop.f32.mrf.mxu0
      %v2045 = vadd.f32 %v1932, %v2044
      %2046 = vmatmul.f32.gmra.mxu0 %v1773
      %v2047 = vpop.f32.mrf.mxu0
      %v2048 = vadd.f32 %v1935, %v2047
      %2049 = vmatmul.f32.gmra.mxu0 %v1776
      %v2050 = vpop.f32.mrf.mxu0
      %v2051 = vadd.f32 %v1938, %v2050
      %2052 = vmatmul.f32.gmra.mxu0 %v1779
      %v2053 = vpop.f32.mrf.mxu0
      %v2054 = vadd.f32 %v1941, %v2053
      %2055 = vmatmul.f32.gmra.mxu0 %v1782
      %v2056 = vpop.f32.mrf.mxu0
      %v2057 = vadd.f32 %v1944, %v2056
      %2058 = vmatmul.f32.gmra.mxu0 %v1785
      %v2059 = vpop.f32.mrf.mxu0
      %v2060 = vadd.f32 %v1947, %v2059
      %2061 = vmatmul.f32.gmra.mxu0 %v1788
      %v2062 = vpop.f32.mrf.mxu0
      %v2063 = vadd.f32 %v1950, %v2062
      %2064 = vmatmul.f32.gmra.mxu0 %v1791
      %v2065 = vpop.f32.mrf.mxu0
      %v2066 = vadd.f32 %v1953, %v2065
      %2067 = vmatmul.f32.gmra.mxu0 %v1794
      %v2068 = vpop.f32.mrf.mxu0
      %v2069 = vadd.f32 %v1956, %v2068
      %2070 = vmatmul.f32.gmra.mxu0 %v1797
      %v2071 = vpop.f32.mrf.mxu0
      %v2072 = vadd.f32 %v1959, %v2071
      %2073 = vdwg.mxu0
      %2074 = vmatpush.msra.mxu0 %v1847
      %2075 = vmatpush.msra.mxu0 %v1846
      %2076 = vmatpush.msra.mxu0 %v1845
      %2077 = vmatpush.msra.mxu0 %v1844
      %2078 = vmatpush.msra.mxu0 %v1843
      %2079 = vmatpush.msra.mxu0 %v1842
      %2080 = vmatpush.msra.mxu0 %v1841
      %2081 = vmatpush.msra.mxu0 %v1840
      %2082 = vmatpush.msra.mxu0 %v1839
      %2083 = vmatpush.msra.mxu0 %v1838
      %2084 = vmatpush.msra.mxu0 %v1837
      %2085 = vmatpush.msra.mxu0 %v1836
      %2086 = vmatpush.msra.mxu0 %v1835
      %2087 = vmatpush.msra.mxu0 %v1834
      %2088 = vmatpush.msra.mxu0 %v1833
      %2089 = vmatpush.msra.mxu0 %v1832
      %2090 = vmatmul.f32.gmra.mxu0 %v1705
      %v2091 = vpop.f32.mrf.mxu0
      %v2092 = vadd.f32 %v1979, %v2091
      %2093 = vmatmul.f32.gmra.mxu0 %v1708
      %v2094 = vpop.f32.mrf.mxu0
      %v2095 = vadd.f32 %v1982, %v2094
      %2096 = vmatmul.f32.gmra.mxu0 %v1711
      %v2097 = vpop.f32.mrf.mxu0
      %v2098 = vadd.f32 %v1985, %v2097
      %2099 = vmatmul.f32.gmra.mxu0 %v1714
      %v2100 = vpop.f32.mrf.mxu0
      %v2101 = vadd.f32 %v1988, %v2100
      %2102 = vmatmul.f32.gmra.mxu0 %v1717
      %v2103 = vpop.f32.mrf.mxu0
      %v2104 = vadd.f32 %v1991, %v2103
      %2105 = vmatmul.f32.gmra.mxu0 %v1720
      %v2106 = vpop.f32.mrf.mxu0
      %v2107 = vadd.f32 %v1994, %v2106
      %2108 = vmatmul.f32.gmra.mxu0 %v1723
      %v2109 = vpop.f32.mrf.mxu0
      %v2110 = vadd.f32 %v1997, %v2109
      %2111 = vmatmul.f32.gmra.mxu0 %v1726
      %v2112 = vpop.f32.mrf.mxu0
      %v2113 = vadd.f32 %v2000, %v2112
      %2114 = vmatmul.f32.gmra.mxu0 %v1729
      %v2115 = vpop.f32.mrf.mxu0
      %v2116 = vadd.f32 %v2003, %v2115
      %2117 = vmatmul.f32.gmra.mxu0 %v1732
      %v2118 = vpop.f32.mrf.mxu0
      %v2119 = vadd.f32 %v2006, %v2118
      %2120 = vmatmul.f32.gmra.mxu0 %v1735
      %v2121 = vpop.f32.mrf.mxu0
      %v2122 = vadd.f32 %v2009, %v2121
      %2123 = vmatmul.f32.gmra.mxu0 %v1738
      %v2124 = vpop.f32.mrf.mxu0
      %v2125 = vadd.f32 %v2012, %v2124
      %2126 = vmatmul.f32.gmra.mxu0 %v1741
      %v2127 = vpop.f32.mrf.mxu0
      %v2128 = vadd.f32 %v2015, %v2127
      %2129 = vmatmul.f32.gmra.mxu0 %v1744
      %v2130 = vpop.f32.mrf.mxu0
      %v2131 = vadd.f32 %v2018, %v2130
      %2132 = vmatmul.f32.gmra.mxu0 %v1747
      %v2133 = vpop.f32.mrf.mxu0
      %v2134 = vadd.f32 %v2021, %v2133
      %2135 = vmatmul.f32.gmra.mxu0 %v1750
      %v2136 = vpop.f32.mrf.mxu0
      %v2137 = vadd.f32 %v2024, %v2136
      %2138 = vmatmul.f32.gmra.mxu0 %v1753
      %v2139 = vpop.f32.mrf.mxu0
      %v2140 = vadd.f32 %v2027, %v2139
      %2141 = vmatmul.f32.gmra.mxu0 %v1756
      %v2142 = vpop.f32.mrf.mxu0
      %v2143 = vadd.f32 %v2030, %v2142
      %2144 = vmatmul.f32.gmra.mxu0 %v1759
      %v2145 = vpop.f32.mrf.mxu0
      %v2146 = vadd.f32 %v2033, %v2145
      %2147 = vmatmul.f32.gmra.mxu0 %v1762
      %v2148 = vpop.f32.mrf.mxu0
      %v2149 = vadd.f32 %v2036, %v2148
      %2150 = vmatmul.f32.gmra.mxu0 %v1765
      %v2151 = vpop.f32.mrf.mxu0
      %v2152 = vadd.f32 %v2039, %v2151
      %2153 = vmatmul.f32.gmra.mxu0 %v1768
      %v2154 = vpop.f32.mrf.mxu0
      %v2155 = vadd.f32 %v2042, %v2154
      %2156 = vmatmul.f32.gmra.mxu0 %v1771
      %v2157 = vpop.f32.mrf.mxu0
      %v2158 = vadd.f32 %v2045, %v2157
      %2159 = vmatmul.f32.gmra.mxu0 %v1774
      %v2160 = vpop.f32.mrf.mxu0
      %v2161 = vadd.f32 %v2048, %v2160
      %2162 = vmatmul.f32.gmra.mxu0 %v1777
      %v2163 = vpop.f32.mrf.mxu0
      %v2164 = vadd.f32 %v2051, %v2163
      %2165 = vmatmul.f32.gmra.mxu0 %v1780
      %v2166 = vpop.f32.mrf.mxu0
      %v2167 = vadd.f32 %v2054, %v2166
      %2168 = vmatmul.f32.gmra.mxu0 %v1783
      %v2169 = vpop.f32.mrf.mxu0
      %v2170 = vadd.f32 %v2057, %v2169
      %2171 = vmatmul.f32.gmra.mxu0 %v1786
      %v2172 = vpop.f32.mrf.mxu0
      %v2173 = vadd.f32 %v2060, %v2172
      %2174 = vmatmul.f32.gmra.mxu0 %v1789
      %v2175 = vpop.f32.mrf.mxu0
      %v2176 = vadd.f32 %v2063, %v2175
      %2177 = vmatmul.f32.gmra.mxu0 %v1792
      %v2178 = vpop.f32.mrf.mxu0
      %v2179 = vadd.f32 %v2066, %v2178
      %2180 = vmatmul.f32.gmra.mxu0 %v1795
      %v2181 = vpop.f32.mrf.mxu0
      %v2182 = vadd.f32 %v2069, %v2181
      %2183 = vmatmul.f32.gmra.mxu0 %v1798
      %v2184 = vpop.f32.mrf.mxu0
      %v2185 = vadd.f32 %v2072, %v2184
      %2186 = vdwg.mxu0
      %v2187 = vadd.f32 %v1607, %v2092
      %v2188 = vadd.f32 %v1610, %v2095
      %v2189 = vadd.f32 %v1613, %v2098
      %v2190 = vadd.f32 %v1616, %v2101
      %v2191 = vadd.f32 %v1619, %v2104
      %v2192 = vadd.f32 %v1622, %v2107
      %v2193 = vadd.f32 %v1625, %v2110
      %v2194 = vadd.f32 %v1628, %v2113
      %v2195 = vadd.f32 %v1631, %v2116
      %v2196 = vadd.f32 %v1634, %v2119
      %v2197 = vadd.f32 %v1637, %v2122
      %v2198 = vadd.f32 %v1640, %v2125
      %v2199 = vadd.f32 %v1643, %v2128
      %v2200 = vadd.f32 %v1646, %v2131
      %v2201 = vadd.f32 %v1649, %v2134
      %v2202 = vadd.f32 %v1652, %v2137
      %v2203 = vadd.f32 %v1655, %v2140
      %v2204 = vadd.f32 %v1658, %v2143
      %v2205 = vadd.f32 %v1661, %v2146
      %v2206 = vadd.f32 %v1664, %v2149
      %v2207 = vadd.f32 %v1667, %v2152
      %v2208 = vadd.f32 %v1670, %v2155
      %v2209 = vadd.f32 %v1673, %v2158
      %v2210 = vadd.f32 %v1676, %v2161
      %v2211 = vadd.f32 %v1679, %v2164
      %v2212 = vadd.f32 %v1682, %v2167
      %v2213 = vadd.f32 %v1685, %v2170
      %v2214 = vadd.f32 %v1688, %v2173
      %v2215 = vadd.f32 %v1691, %v2176
      %v2216 = vadd.f32 %v1694, %v2179
      %v2217 = vadd.f32 %v1697, %v2182
      %v2218 = vadd.f32 %v1700, %v2185
      %v2219 = vld [vmem:[%s291] sm:$0x1]
      %v2221 = vperm.slane %v2219, 0
      %v2223 = vadd.f32 %v2187, %v2221
      %v2224 = vadd.f32 %v2188, %v2221
      %v2225 = vadd.f32 %v2189, %v2221
      %v2226 = vadd.f32 %v2190, %v2221
      %v2227 = vadd.f32 %v2191, %v2221
      %v2228 = vadd.f32 %v2192, %v2221
      %v2229 = vadd.f32 %v2193, %v2221
      %v2230 = vadd.f32 %v2194, %v2221
      %v2231 = vadd.f32 %v2195, %v2221
      %v2232 = vadd.f32 %v2196, %v2221
      %v2233 = vadd.f32 %v2197, %v2221
      %v2234 = vadd.f32 %v2198, %v2221
      %v2235 = vadd.f32 %v2199, %v2221
      %v2236 = vadd.f32 %v2200, %v2221
      %v2237 = vadd.f32 %v2201, %v2221
      %v2238 = vadd.f32 %v2202, %v2221
      %v2239 = vadd.f32 %v2203, %v2221
      %v2240 = vadd.f32 %v2204, %v2221
      %v2241 = vadd.f32 %v2205, %v2221
      %v2242 = vadd.f32 %v2206, %v2221
      %v2243 = vadd.f32 %v2207, %v2221
      %v2244 = vadd.f32 %v2208, %v2221
      %v2245 = vadd.f32 %v2209, %v2221
      %v2246 = vadd.f32 %v2210, %v2221
      %v2247 = vadd.f32 %v2211, %v2221
      %v2248 = vadd.f32 %v2212, %v2221
      %v2249 = vadd.f32 %v2213, %v2221
      %v2250 = vadd.f32 %v2214, %v2221
      %v2251 = vadd.f32 %v2215, %v2221
      %v2252 = vadd.f32 %v2216, %v2221
      %v2253 = vadd.f32 %v2217, %v2221
      %v2254 = vadd.f32 %v2218, %v2221
      %p2255 = scmp.lt.s32.totalorder %s21, 2
      // Predicated region
      $region45: #{aag_forward.1} parent=39 // pred_check
        %p2256 = pneg %p2255
      $region46: #{aag_forward.1} parent=39 // pred_check_branch
        %2258 = sbr.rel (%p2256) target = $region48
      $region47: #{aag_forward.1} parent=39 // pred_region
        %v2259 = vmax.f32 %v2223, 0.0
        %v2260 = vmax.f32 %v2224, 0.0
        %v2261 = vmax.f32 %v2225, 0.0
        %v2262 = vmax.f32 %v2226, 0.0
        %v2263 = vmax.f32 %v2227, 0.0
        %v2264 = vmax.f32 %v2228, 0.0
        %v2265 = vmax.f32 %v2229, 0.0
        %v2266 = vmax.f32 %v2230, 0.0
        %v2267 = vmax.f32 %v2231, 0.0
        %v2268 = vmax.f32 %v2232, 0.0
        %v2269 = vmax.f32 %v2233, 0.0
        %v2270 = vmax.f32 %v2234, 0.0
        %v2271 = vmax.f32 %v2235, 0.0
        %v2272 = vmax.f32 %v2236, 0.0
        %v2273 = vmax.f32 %v2237, 0.0
        %v2274 = vmax.f32 %v2238, 0.0
        %v2275 = vmax.f32 %v2239, 0.0
        %v2276 = vmax.f32 %v2240, 0.0
        %v2277 = vmax.f32 %v2241, 0.0
        %v2278 = vmax.f32 %v2242, 0.0
        %v2279 = vmax.f32 %v2243, 0.0
        %v2280 = vmax.f32 %v2244, 0.0
        %v2281 = vmax.f32 %v2245, 0.0
        %v2282 = vmax.f32 %v2246, 0.0
        %v2283 = vmax.f32 %v2247, 0.0
        %v2284 = vmax.f32 %v2248, 0.0
        %v2285 = vmax.f32 %v2249, 0.0
        %v2286 = vmax.f32 %v2250, 0.0
        %v2287 = vmax.f32 %v2251, 0.0
        %v2288 = vmax.f32 %v2252, 0.0
        %v2289 = vmax.f32 %v2253, 0.0
        %v2290 = vmax.f32 %v2254, 0.0
        %s2291 = scalar_lea.vmem [#allocation3], 32
        %2292 = vst [vmem:[%s2291 + $0x1] sm:$0xff] %v2259
        %2293 = vst [vmem:[%s2291 + $0x9] sm:$0xff] %v2260
        %2294 = vst [vmem:[%s2291 + $0x21] sm:$0xff] %v2261
        %2295 = vst [vmem:[%s2291 + $0x29] sm:$0xff] %v2262
        %2296 = vst [vmem:[%s2291 + $0x41] sm:$0xff] %v2263
        %2297 = vst [vmem:[%s2291 + $0x49] sm:$0xff] %v2264
        %2298 = vst [vmem:[%s2291 + $0x61] sm:$0xff] %v2265
        %2299 = vst [vmem:[%s2291 + $0x69] sm:$0xff] %v2266
        %2300 = vst [vmem:[%s2291 + $0x81] sm:$0xff] %v2267
        %2301 = vst [vmem:[%s2291 + $0x89] sm:$0xff] %v2268
        %2302 = vst [vmem:[%s2291 + $0xa1] sm:$0xff] %v2269
        %2303 = vst [vmem:[%s2291 + $0xa9] sm:$0xff] %v2270
        %2304 = vst [vmem:[%s2291 + $0xc1] sm:$0xff] %v2271
        %2305 = vst [vmem:[%s2291 + $0xc9] sm:$0xff] %v2272
        %2306 = vst [vmem:[%s2291 + $0xe1] sm:$0xff] %v2273
        %2307 = vst [vmem:[%s2291 + $0xe9] sm:$0xff] %v2274
        %2308 = vst [vmem:[%s2291 + $0x101] sm:$0xff] %v2275
        %2309 = vst [vmem:[%s2291 + $0x109] sm:$0xff] %v2276
        %2310 = vst [vmem:[%s2291 + $0x121] sm:$0xff] %v2277
        %2311 = vst [vmem:[%s2291 + $0x129] sm:$0xff] %v2278
        %2312 = vst [vmem:[%s2291 + $0x141] sm:$0xff] %v2279
        %2313 = vst [vmem:[%s2291 + $0x149] sm:$0xff] %v2280
        %2314 = vst [vmem:[%s2291 + $0x161] sm:$0xff] %v2281
        %2315 = vst [vmem:[%s2291 + $0x169] sm:$0xff] %v2282
        %2316 = vst [vmem:[%s2291 + $0x181] sm:$0xff] %v2283
        %2317 = vst [vmem:[%s2291 + $0x189] sm:$0xff] %v2284
        %2318 = vst [vmem:[%s2291 + $0x1a1] sm:$0xff] %v2285
        %2319 = vst [vmem:[%s2291 + $0x1a9] sm:$0xff] %v2286
        %2320 = vst [vmem:[%s2291 + $0x1c1] sm:$0xff] %v2287
        %2321 = vst [vmem:[%s2291 + $0x1c9] sm:$0xff] %v2288
        %2322 = vst [vmem:[%s2291 + $0x1e1] sm:$0xff] %v2289
        %2323 = vst [vmem:[%s2291 + $0x1e9] sm:$0xff] %v2290
        %v2324 = vld [vmem:[#allocation3] sm:$0xff]
        %v2325 = vld [vmem:[#allocation3 + $0x8] sm:$0xff]
        %v2326 = vld [vmem:[#allocation3 + $0x20] sm:$0xff]
        %v2327 = vld [vmem:[#allocation3 + $0x28] sm:$0xff]
        %v2328 = vld [vmem:[#allocation3 + $0x40] sm:$0xff]
        %v2329 = vld [vmem:[#allocation3 + $0x48] sm:$0xff]
        %v2330 = vld [vmem:[#allocation3 + $0x60] sm:$0xff]
        %v2331 = vld [vmem:[#allocation3 + $0x68] sm:$0xff]
        %v2332 = vld [vmem:[#allocation3 + $0x80] sm:$0xff]
        %v2333 = vld [vmem:[#allocation3 + $0x88] sm:$0xff]
        %v2334 = vld [vmem:[#allocation3 + $0xa0] sm:$0xff]
        %v2335 = vld [vmem:[#allocation3 + $0xa8] sm:$0xff]
        %v2336 = vld [vmem:[#allocation3 + $0xc0] sm:$0xff]
        %v2337 = vld [vmem:[#allocation3 + $0xc8] sm:$0xff]
        %v2338 = vld [vmem:[#allocation3 + $0xe0] sm:$0xff]
        %v2339 = vld [vmem:[#allocation3 + $0xe8] sm:$0xff]
        %v2340 = vld [vmem:[#allocation3 + $0x100] sm:$0xff]
        %v2341 = vld [vmem:[#allocation3 + $0x108] sm:$0xff]
        %v2342 = vld [vmem:[#allocation3 + $0x120] sm:$0xff]
        %v2343 = vld [vmem:[#allocation3 + $0x128] sm:$0xff]
        %v2344 = vld [vmem:[#allocation3 + $0x140] sm:$0xff]
        %v2345 = vld [vmem:[#allocation3 + $0x148] sm:$0xff]
        %v2346 = vld [vmem:[#allocation3 + $0x160] sm:$0xff]
        %v2347 = vld [vmem:[#allocation3 + $0x168] sm:$0xff]
        %v2348 = vld [vmem:[#allocation3 + $0x180] sm:$0xff]
        %v2349 = vld [vmem:[#allocation3 + $0x188] sm:$0xff]
        %v2350 = vld [vmem:[#allocation3 + $0x1a0] sm:$0xff]
        %v2351 = vld [vmem:[#allocation3 + $0x1a8] sm:$0xff]
        %v2352 = vld [vmem:[#allocation3 + $0x1c0] sm:$0xff]
        %v2353 = vld [vmem:[#allocation3 + $0x1c8] sm:$0xff]
        %v2354 = vld [vmem:[#allocation3 + $0x1e0] sm:$0xff]
        %v2355 = vld [vmem:[#allocation3 + $0x1e8] sm:$0xff]
        %v2356 = vld [vmem:[#allocation3 + $0x200] sm:$0xff]
        %v2357 = vld [vmem:[#allocation3 + $0x208] sm:$0xff]
        %v2358 = vld [vmem:[#allocation3 + $0x220] sm:$0xff]
        %v2359 = vld [vmem:[#allocation3 + $0x228] sm:$0xff]
        %2360 = vst [vmem:[#allocation4] sm:$0xff] %v2324
        %2361 = vst [vmem:[#allocation4 + $0x18] sm:$0xff] %v2325
        %2362 = vst [vmem:[#allocation4 + $0x30] sm:$0xff] %v2326
        %2363 = vst [vmem:[#allocation4 + $0x48] sm:$0xff] %v2327
        %2364 = vst [vmem:[#allocation4 + $0x60] sm:$0xff] %v2328
        %2365 = vst [vmem:[#allocation4 + $0x78] sm:$0xff] %v2329
        %2366 = vst [vmem:[#allocation4 + $0x90] sm:$0xff] %v2330
        %2367 = vst [vmem:[#allocation4 + $0xa8] sm:$0xff] %v2331
        %2368 = vst [vmem:[#allocation4 + $0xc0] sm:$0xff] %v2332
        %2369 = vst [vmem:[#allocation4 + $0xd8] sm:$0xff] %v2333
        %2370 = vst [vmem:[#allocation4 + $0xf0] sm:$0xff] %v2334
        %2371 = vst [vmem:[#allocation4 + $0x108] sm:$0xff] %v2335
        %2372 = vst [vmem:[#allocation4 + $0x120] sm:$0xff] %v2336
        %2373 = vst [vmem:[#allocation4 + $0x138] sm:$0xff] %v2337
        %2374 = vst [vmem:[#allocation4 + $0x150] sm:$0xff] %v2338
        %2375 = vst [vmem:[#allocation4 + $0x168] sm:$0xff] %v2339
        %2376 = vst [vmem:[#allocation4 + $0x180] sm:$0xff] %v2340
        %2377 = vst [vmem:[#allocation4 + $0x198] sm:$0xff] %v2341
        %2378 = vst [vmem:[#allocation4 + $0x1b0] sm:$0xff] %v2342
        %2379 = vst [vmem:[#allocation4 + $0x1c8] sm:$0xff] %v2343
        %2380 = vst [vmem:[#allocation4 + $0x1e0] sm:$0xff] %v2344
        %2381 = vst [vmem:[#allocation4 + $0x1f8] sm:$0xff] %v2345
        %2382 = vst [vmem:[#allocation4 + $0x210] sm:$0xff] %v2346
        %2383 = vst [vmem:[#allocation4 + $0x228] sm:$0xff] %v2347
        %2384 = vst [vmem:[#allocation4 + $0x240] sm:$0xff] %v2348
        %2385 = vst [vmem:[#allocation4 + $0x258] sm:$0xff] %v2349
        %2386 = vst [vmem:[#allocation4 + $0x270] sm:$0xff] %v2350
        %2387 = vst [vmem:[#allocation4 + $0x288] sm:$0xff] %v2351
        %2388 = vst [vmem:[#allocation4 + $0x2a0] sm:$0xff] %v2352
        %2389 = vst [vmem:[#allocation4 + $0x2b8] sm:$0xff] %v2353
        %2390 = vst [vmem:[#allocation4 + $0x2d0] sm:$0xff] %v2354
        %2391 = vst [vmem:[#allocation4 + $0x2e8] sm:$0xff] %v2355
        %2392 = vst [vmem:[#allocation4 + $0x300] sm:$0xff] %v2356
        %2393 = vst [vmem:[#allocation4 + $0x318] sm:$0xff] %v2357
        %2394 = vst [vmem:[#allocation4 + $0x330] sm:$0xff] %v2358
        %2395 = vst [vmem:[#allocation4 + $0x348] sm:$0xff] %v2359
        %v2396 = vld [vmem:[#allocation3 + $0x1] sm:$0xff]
        %v2397 = vld [vmem:[#allocation3 + $0x9] sm:$0xff]
        %v2398 = vld [vmem:[#allocation3 + $0x21] sm:$0xff]
        %v2399 = vld [vmem:[#allocation3 + $0x29] sm:$0xff]
        %v2400 = vld [vmem:[#allocation3 + $0x41] sm:$0xff]
        %v2401 = vld [vmem:[#allocation3 + $0x49] sm:$0xff]
        %v2402 = vld [vmem:[#allocation3 + $0x61] sm:$0xff]
        %v2403 = vld [vmem:[#allocation3 + $0x69] sm:$0xff]
        %v2404 = vld [vmem:[#allocation3 + $0x81] sm:$0xff]
        %v2405 = vld [vmem:[#allocation3 + $0x89] sm:$0xff]
        %v2406 = vld [vmem:[#allocation3 + $0xa1] sm:$0xff]
        %v2407 = vld [vmem:[#allocation3 + $0xa9] sm:$0xff]
        %v2408 = vld [vmem:[#allocation3 + $0xc1] sm:$0xff]
        %v2409 = vld [vmem:[#allocation3 + $0xc9] sm:$0xff]
        %v2410 = vld [vmem:[#allocation3 + $0xe1] sm:$0xff]
        %v2411 = vld [vmem:[#allocation3 + $0xe9] sm:$0xff]
        %v2412 = vld [vmem:[#allocation3 + $0x101] sm:$0xff]
        %v2413 = vld [vmem:[#allocation3 + $0x109] sm:$0xff]
        %v2414 = vld [vmem:[#allocation3 + $0x121] sm:$0xff]
        %v2415 = vld [vmem:[#allocation3 + $0x129] sm:$0xff]
        %v2416 = vld [vmem:[#allocation3 + $0x141] sm:$0xff]
        %v2417 = vld [vmem:[#allocation3 + $0x149] sm:$0xff]
        %v2418 = vld [vmem:[#allocation3 + $0x161] sm:$0xff]
        %v2419 = vld [vmem:[#allocation3 + $0x169] sm:$0xff]
        %v2420 = vld [vmem:[#allocation3 + $0x181] sm:$0xff]
        %v2421 = vld [vmem:[#allocation3 + $0x189] sm:$0xff]
        %v2422 = vld [vmem:[#allocation3 + $0x1a1] sm:$0xff]
        %v2423 = vld [vmem:[#allocation3 + $0x1a9] sm:$0xff]
        %v2424 = vld [vmem:[#allocation3 + $0x1c1] sm:$0xff]
        %v2425 = vld [vmem:[#allocation3 + $0x1c9] sm:$0xff]
        %v2426 = vld [vmem:[#allocation3 + $0x1e1] sm:$0xff]
        %v2427 = vld [vmem:[#allocation3 + $0x1e9] sm:$0xff]
        %v2428 = vld [vmem:[#allocation3 + $0x201] sm:$0xff]
        %v2429 = vld [vmem:[#allocation3 + $0x209] sm:$0xff]
        %v2430 = vld [vmem:[#allocation3 + $0x221] sm:$0xff]
        %v2431 = vld [vmem:[#allocation3 + $0x229] sm:$0xff]
        %2432 = vst [vmem:[#allocation4 + $0x8] sm:$0xff] %v2396
        %2433 = vst [vmem:[#allocation4 + $0x20] sm:$0xff] %v2397
        %2434 = vst [vmem:[#allocation4 + $0x38] sm:$0xff] %v2398
        %2435 = vst [vmem:[#allocation4 + $0x50] sm:$0xff] %v2399
        %2436 = vst [vmem:[#allocation4 + $0x68] sm:$0xff] %v2400
        %2437 = vst [vmem:[#allocation4 + $0x80] sm:$0xff] %v2401
        %2438 = vst [vmem:[#allocation4 + $0x98] sm:$0xff] %v2402
        %2439 = vst [vmem:[#allocation4 + $0xb0] sm:$0xff] %v2403
        %2440 = vst [vmem:[#allocation4 + $0xc8] sm:$0xff] %v2404
        %2441 = vst [vmem:[#allocation4 + $0xe0] sm:$0xff] %v2405
        %2442 = vst [vmem:[#allocation4 + $0xf8] sm:$0xff] %v2406
        %2443 = vst [vmem:[#allocation4 + $0x110] sm:$0xff] %v2407
        %2444 = vst [vmem:[#allocation4 + $0x128] sm:$0xff] %v2408
        %2445 = vst [vmem:[#allocation4 + $0x140] sm:$0xff] %v2409
        %2446 = vst [vmem:[#allocation4 + $0x158] sm:$0xff] %v2410
        %2447 = vst [vmem:[#allocation4 + $0x170] sm:$0xff] %v2411
        %2448 = vst [vmem:[#allocation4 + $0x188] sm:$0xff] %v2412
        %2449 = vst [vmem:[#allocation4 + $0x1a0] sm:$0xff] %v2413
        %2450 = vst [vmem:[#allocation4 + $0x1b8] sm:$0xff] %v2414
        %2451 = vst [vmem:[#allocation4 + $0x1d0] sm:$0xff] %v2415
        %2452 = vst [vmem:[#allocation4 + $0x1e8] sm:$0xff] %v2416
        %2453 = vst [vmem:[#allocation4 + $0x200] sm:$0xff] %v2417
        %2454 = vst [vmem:[#allocation4 + $0x218] sm:$0xff] %v2418
        %2455 = vst [vmem:[#allocation4 + $0x230] sm:$0xff] %v2419
        %2456 = vst [vmem:[#allocation4 + $0x248] sm:$0xff] %v2420
        %2457 = vst [vmem:[#allocation4 + $0x260] sm:$0xff] %v2421
        %2458 = vst [vmem:[#allocation4 + $0x278] sm:$0xff] %v2422
        %2459 = vst [vmem:[#allocation4 + $0x290] sm:$0xff] %v2423
        %2460 = vst [vmem:[#allocation4 + $0x2a8] sm:$0xff] %v2424
        %2461 = vst [vmem:[#allocation4 + $0x2c0] sm:$0xff] %v2425
        %2462 = vst [vmem:[#allocation4 + $0x2d8] sm:$0xff] %v2426
        %2463 = vst [vmem:[#allocation4 + $0x2f0] sm:$0xff] %v2427
        %2464 = vst [vmem:[#allocation4 + $0x308] sm:$0xff] %v2428
        %2465 = vst [vmem:[#allocation4 + $0x320] sm:$0xff] %v2429
        %2466 = vst [vmem:[#allocation4 + $0x338] sm:$0xff] %v2430
        %2467 = vst [vmem:[#allocation4 + $0x350] sm:$0xff] %v2431
        %v2468 = vld [vmem:[#allocation3 + $0x2] sm:$0xff]
        %v2469 = vld [vmem:[#allocation3 + $0xa] sm:$0xff]
        %v2470 = vld [vmem:[#allocation3 + $0x22] sm:$0xff]
        %v2471 = vld [vmem:[#allocation3 + $0x2a] sm:$0xff]
        %v2472 = vld [vmem:[#allocation3 + $0x42] sm:$0xff]
        %v2473 = vld [vmem:[#allocation3 + $0x4a] sm:$0xff]
        %v2474 = vld [vmem:[#allocation3 + $0x62] sm:$0xff]
        %v2475 = vld [vmem:[#allocation3 + $0x6a] sm:$0xff]
        %v2476 = vld [vmem:[#allocation3 + $0x82] sm:$0xff]
        %v2477 = vld [vmem:[#allocation3 + $0x8a] sm:$0xff]
        %v2478 = vld [vmem:[#allocation3 + $0xa2] sm:$0xff]
        %v2479 = vld [vmem:[#allocation3 + $0xaa] sm:$0xff]
        %v2480 = vld [vmem:[#allocation3 + $0xc2] sm:$0xff]
        %v2481 = vld [vmem:[#allocation3 + $0xca] sm:$0xff]
        %v2482 = vld [vmem:[#allocation3 + $0xe2] sm:$0xff]
        %v2483 = vld [vmem:[#allocation3 + $0xea] sm:$0xff]
        %v2484 = vld [vmem:[#allocation3 + $0x102] sm:$0xff]
        %v2485 = vld [vmem:[#allocation3 + $0x10a] sm:$0xff]
        %v2486 = vld [vmem:[#allocation3 + $0x122] sm:$0xff]
        %v2487 = vld [vmem:[#allocation3 + $0x12a] sm:$0xff]
        %v2488 = vld [vmem:[#allocation3 + $0x142] sm:$0xff]
        %v2489 = vld [vmem:[#allocation3 + $0x14a] sm:$0xff]
        %v2490 = vld [vmem:[#allocation3 + $0x162] sm:$0xff]
        %v2491 = vld [vmem:[#allocation3 + $0x16a] sm:$0xff]
        %v2492 = vld [vmem:[#allocation3 + $0x182] sm:$0xff]
        %v2493 = vld [vmem:[#allocation3 + $0x18a] sm:$0xff]
        %v2494 = vld [vmem:[#allocation3 + $0x1a2] sm:$0xff]
        %v2495 = vld [vmem:[#allocation3 + $0x1aa] sm:$0xff]
        %v2496 = vld [vmem:[#allocation3 + $0x1c2] sm:$0xff]
        %v2497 = vld [vmem:[#allocation3 + $0x1ca] sm:$0xff]
        %v2498 = vld [vmem:[#allocation3 + $0x1e2] sm:$0xff]
        %v2499 = vld [vmem:[#allocation3 + $0x1ea] sm:$0xff]
        %v2500 = vld [vmem:[#allocation3 + $0x202] sm:$0xff]
        %v2501 = vld [vmem:[#allocation3 + $0x20a] sm:$0xff]
        %v2502 = vld [vmem:[#allocation3 + $0x222] sm:$0xff]
        %v2503 = vld [vmem:[#allocation3 + $0x22a] sm:$0xff]
        %2504 = vst [vmem:[#allocation4 + $0x10] sm:$0xff] %v2468
        %2505 = vst [vmem:[#allocation4 + $0x28] sm:$0xff] %v2469
        %2506 = vst [vmem:[#allocation4 + $0x40] sm:$0xff] %v2470
        %2507 = vst [vmem:[#allocation4 + $0x58] sm:$0xff] %v2471
        %2508 = vst [vmem:[#allocation4 + $0x70] sm:$0xff] %v2472
        %2509 = vst [vmem:[#allocation4 + $0x88] sm:$0xff] %v2473
        %2510 = vst [vmem:[#allocation4 + $0xa0] sm:$0xff] %v2474
        %2511 = vst [vmem:[#allocation4 + $0xb8] sm:$0xff] %v2475
        %2512 = vst [vmem:[#allocation4 + $0xd0] sm:$0xff] %v2476
        %2513 = vst [vmem:[#allocation4 + $0xe8] sm:$0xff] %v2477
        %2514 = vst [vmem:[#allocation4 + $0x100] sm:$0xff] %v2478
        %2515 = vst [vmem:[#allocation4 + $0x118] sm:$0xff] %v2479
        %2516 = vst [vmem:[#allocation4 + $0x130] sm:$0xff] %v2480
        %2517 = vst [vmem:[#allocation4 + $0x148] sm:$0xff] %v2481
        %2518 = vst [vmem:[#allocation4 + $0x160] sm:$0xff] %v2482
        %2519 = vst [vmem:[#allocation4 + $0x178] sm:$0xff] %v2483
        %2520 = vst [vmem:[#allocation4 + $0x190] sm:$0xff] %v2484
        %2521 = vst [vmem:[#allocation4 + $0x1a8] sm:$0xff] %v2485
        %2522 = vst [vmem:[#allocation4 + $0x1c0] sm:$0xff] %v2486
        %2523 = vst [vmem:[#allocation4 + $0x1d8] sm:$0xff] %v2487
        %2524 = vst [vmem:[#allocation4 + $0x1f0] sm:$0xff] %v2488
        %2525 = vst [vmem:[#allocation4 + $0x208] sm:$0xff] %v2489
        %2526 = vst [vmem:[#allocation4 + $0x220] sm:$0xff] %v2490
        %2527 = vst [vmem:[#allocation4 + $0x238] sm:$0xff] %v2491
        %2528 = vst [vmem:[#allocation4 + $0x250] sm:$0xff] %v2492
        %2529 = vst [vmem:[#allocation4 + $0x268] sm:$0xff] %v2493
        %2530 = vst [vmem:[#allocation4 + $0x280] sm:$0xff] %v2494
        %2531 = vst [vmem:[#allocation4 + $0x298] sm:$0xff] %v2495
        %2532 = vst [vmem:[#allocation4 + $0x2b0] sm:$0xff] %v2496
        %2533 = vst [vmem:[#allocation4 + $0x2c8] sm:$0xff] %v2497
        %2534 = vst [vmem:[#allocation4 + $0x2e0] sm:$0xff] %v2498
        %2535 = vst [vmem:[#allocation4 + $0x2f8] sm:$0xff] %v2499
        %2536 = vst [vmem:[#allocation4 + $0x310] sm:$0xff] %v2500
        %2537 = vst [vmem:[#allocation4 + $0x328] sm:$0xff] %v2501
        %2538 = vst [vmem:[#allocation4 + $0x340] sm:$0xff] %v2502
        %2539 = vst [vmem:[#allocation4 + $0x358] sm:$0xff] %v2503
        %v2540 = vld [vmem:[#allocation4] sm:$0xff]
        %v2541 = vld [vmem:[#allocation4 + $0x8] sm:$0xff]
        %v2542 = vld [vmem:[#allocation4 + $0x10] sm:$0xff]
        %v2543 = vld [vmem:[#allocation4 + $0x18] sm:$0xff]
        %v2544 = vld [vmem:[#allocation4 + $0x20] sm:$0xff]
        %v2545 = vld [vmem:[#allocation4 + $0x28] sm:$0xff]
        %v2546 = vld [vmem:[#allocation4 + $0x30] sm:$0xff]
        %v2547 = vld [vmem:[#allocation4 + $0x38] sm:$0xff]
        %v2548 = vld [vmem:[#allocation4 + $0x40] sm:$0xff]
        %v2549 = vld [vmem:[#allocation4 + $0x48] sm:$0xff]
        %v2550 = vld [vmem:[#allocation4 + $0x50] sm:$0xff]
        %v2551 = vld [vmem:[#allocation4 + $0x58] sm:$0xff]
        %v2552 = vld [vmem:[#allocation4 + $0x60] sm:$0xff]
        %v2553 = vld [vmem:[#allocation4 + $0x68] sm:$0xff]
        %v2554 = vld [vmem:[#allocation4 + $0x70] sm:$0xff]
        %v2555 = vld [vmem:[#allocation4 + $0x78] sm:$0xff]
        %v2556 = vld [vmem:[#allocation4 + $0x80] sm:$0xff]
        %v2557 = vld [vmem:[#allocation4 + $0x88] sm:$0xff]
        %v2558 = vld [vmem:[#allocation4 + $0x90] sm:$0xff]
        %v2559 = vld [vmem:[#allocation4 + $0x98] sm:$0xff]
        %v2560 = vld [vmem:[#allocation4 + $0xa0] sm:$0xff]
        %v2561 = vld [vmem:[#allocation4 + $0xa8] sm:$0xff]
        %v2562 = vld [vmem:[#allocation4 + $0xb0] sm:$0xff]
        %v2563 = vld [vmem:[#allocation4 + $0xb8] sm:$0xff]
        %v2564 = vld [vmem:[#allocation4 + $0xc0] sm:$0xff]
        %v2565 = vld [vmem:[#allocation4 + $0xc8] sm:$0xff]
        %v2566 = vld [vmem:[#allocation4 + $0xd0] sm:$0xff]
        %v2567 = vld [vmem:[#allocation4 + $0xd8] sm:$0xff]
        %v2568 = vld [vmem:[#allocation4 + $0xe0] sm:$0xff]
        %v2569 = vld [vmem:[#allocation4 + $0xe8] sm:$0xff]
        %v2570 = vld [vmem:[#allocation4 + $0xf0] sm:$0xff]
        %v2571 = vld [vmem:[#allocation4 + $0xf8] sm:$0xff]
        %v2572 = vld [vmem:[#allocation4 + $0x100] sm:$0xff]
        %v2573 = vld [vmem:[#allocation4 + $0x108] sm:$0xff]
        %v2574 = vld [vmem:[#allocation4 + $0x110] sm:$0xff]
        %v2575 = vld [vmem:[#allocation4 + $0x118] sm:$0xff]
        %v2576 = vld [vmem:[#allocation4 + $0x120] sm:$0xff]
        %v2577 = vld [vmem:[#allocation4 + $0x128] sm:$0xff]
        %v2578 = vld [vmem:[#allocation4 + $0x130] sm:$0xff]
        %v2579 = vld [vmem:[#allocation4 + $0x138] sm:$0xff]
        %v2580 = vld [vmem:[#allocation4 + $0x140] sm:$0xff]
        %v2581 = vld [vmem:[#allocation4 + $0x148] sm:$0xff]
        %v2582 = vld [vmem:[#allocation4 + $0x150] sm:$0xff]
        %v2583 = vld [vmem:[#allocation4 + $0x158] sm:$0xff]
        %v2584 = vld [vmem:[#allocation4 + $0x160] sm:$0xff]
        %v2585 = vld [vmem:[#allocation4 + $0x168] sm:$0xff]
        %v2586 = vld [vmem:[#allocation4 + $0x170] sm:$0xff]
        %v2587 = vld [vmem:[#allocation4 + $0x178] sm:$0xff]
        %v2588 = vld [vmem:[#allocation4 + $0x180] sm:$0xff]
        %v2589 = vld [vmem:[#allocation4 + $0x188] sm:$0xff]
        %v2590 = vld [vmem:[#allocation4 + $0x190] sm:$0xff]
        %v2591 = vld [vmem:[#allocation4 + $0x198] sm:$0xff]
        %v2592 = vld [vmem:[#allocation4 + $0x1a0] sm:$0xff]
        %v2593 = vld [vmem:[#allocation4 + $0x1a8] sm:$0xff]
        %v2594 = vld [vmem:[#allocation4 + $0x1b0] sm:$0xff]
        %v2595 = vld [vmem:[#allocation4 + $0x1b8] sm:$0xff]
        %v2596 = vld [vmem:[#allocation4 + $0x1c0] sm:$0xff]
        %v2597 = vld [vmem:[#allocation4 + $0x1c8] sm:$0xff]
        %v2598 = vld [vmem:[#allocation4 + $0x1d0] sm:$0xff]
        %v2599 = vld [vmem:[#allocation4 + $0x1d8] sm:$0xff]
        %v2600 = vld [vmem:[#allocation4 + $0x1e0] sm:$0xff]
        %v2601 = vld [vmem:[#allocation4 + $0x1e8] sm:$0xff]
        %v2602 = vld [vmem:[#allocation4 + $0x1f0] sm:$0xff]
        %v2603 = vld [vmem:[#allocation4 + $0x1f8] sm:$0xff]
        %v2604 = vld [vmem:[#allocation4 + $0x200] sm:$0xff]
        %v2605 = vld [vmem:[#allocation4 + $0x208] sm:$0xff]
        %v2606 = vld [vmem:[#allocation4 + $0x210] sm:$0xff]
        %v2607 = vld [vmem:[#allocation4 + $0x218] sm:$0xff]
        %v2608 = vld [vmem:[#allocation4 + $0x220] sm:$0xff]
        %v2609 = vld [vmem:[#allocation4 + $0x228] sm:$0xff]
        %v2610 = vld [vmem:[#allocation4 + $0x230] sm:$0xff]
        %v2611 = vld [vmem:[#allocation4 + $0x238] sm:$0xff]
        %v2612 = vld [vmem:[#allocation4 + $0x240] sm:$0xff]
        %v2613 = vld [vmem:[#allocation4 + $0x248] sm:$0xff]
        %v2614 = vld [vmem:[#allocation4 + $0x250] sm:$0xff]
        %v2615 = vld [vmem:[#allocation4 + $0x258] sm:$0xff]
        %v2616 = vld [vmem:[#allocation4 + $0x260] sm:$0xff]
        %v2617 = vld [vmem:[#allocation4 + $0x268] sm:$0xff]
        %v2618 = vld [vmem:[#allocation4 + $0x270] sm:$0xff]
        %v2619 = vld [vmem:[#allocation4 + $0x278] sm:$0xff]
        %v2620 = vld [vmem:[#allocation4 + $0x280] sm:$0xff]
        %v2621 = vld [vmem:[#allocation4 + $0x288] sm:$0xff]
        %v2622 = vld [vmem:[#allocation4 + $0x290] sm:$0xff]
        %v2623 = vld [vmem:[#allocation4 + $0x298] sm:$0xff]
        %v2624 = vld [vmem:[#allocation4 + $0x2a0] sm:$0xff]
        %v2625 = vld [vmem:[#allocation4 + $0x2a8] sm:$0xff]
        %v2626 = vld [vmem:[#allocation4 + $0x2b0] sm:$0xff]
        %v2627 = vld [vmem:[#allocation4 + $0x2b8] sm:$0xff]
        %v2628 = vld [vmem:[#allocation4 + $0x2c0] sm:$0xff]
        %v2629 = vld [vmem:[#allocation4 + $0x2c8] sm:$0xff]
        %v2630 = vld [vmem:[#allocation4 + $0x2d0] sm:$0xff]
        %v2631 = vld [vmem:[#allocation4 + $0x2d8] sm:$0xff]
        %v2632 = vld [vmem:[#allocation4 + $0x2e0] sm:$0xff]
        %v2633 = vld [vmem:[#allocation4 + $0x2e8] sm:$0xff]
        %v2634 = vld [vmem:[#allocation4 + $0x2f0] sm:$0xff]
        %v2635 = vld [vmem:[#allocation4 + $0x2f8] sm:$0xff]
        %v2636 = vld [vmem:[%s296] sm:$0xff]
        %v2637 = vld [vmem:[%s296 + $0x8] sm:$0xff]
        %v2638 = vld [vmem:[%s296 + $0x10] sm:$0xff]
        %v2639 = vld [vmem:[%s296 + $0x18] sm:$0xff]
        %v2640 = vld [vmem:[%s296 + $0x20] sm:$0xff]
        %v2641 = vld [vmem:[%s296 + $0x28] sm:$0xff]
        %v2642 = vld [vmem:[%s296 + $0x30] sm:$0xff]
        %v2643 = vld [vmem:[%s296 + $0x38] sm:$0xff]
        %v2644 = vld [vmem:[%s296 + $0x40] sm:$0xff]
        %v2645 = vld [vmem:[%s296 + $0x48] sm:$0xff]
        %v2646 = vld [vmem:[%s296 + $0x50] sm:$0xff]
        %v2647 = vld [vmem:[%s296 + $0x58] sm:$0xff]
        %v2648 = vld [vmem:[%s296 + $0x60] sm:$0xff]
        %v2649 = vld [vmem:[%s296 + $0x68] sm:$0xff]
        %v2650 = vld [vmem:[%s296 + $0x70] sm:$0xff]
        %v2651 = vld [vmem:[%s296 + $0x78] sm:$0xff]
        %v2652 = vld [vmem:[%s296 + $0x80] sm:$0xff]
        %v2653 = vld [vmem:[%s296 + $0x88] sm:$0xff]
        %v2654 = vld [vmem:[%s296 + $0x90] sm:$0xff]
        %v2655 = vld [vmem:[%s296 + $0x98] sm:$0xff]
        %v2656 = vld [vmem:[%s296 + $0xa0] sm:$0xff]
        %v2657 = vld [vmem:[%s296 + $0xa8] sm:$0xff]
        %v2658 = vld [vmem:[%s296 + $0xb0] sm:$0xff]
        %v2659 = vld [vmem:[%s296 + $0xb8] sm:$0xff]
        %v2660 = vld [vmem:[%s296 + $0xc0] sm:$0xff]
        %v2661 = vld [vmem:[%s296 + $0xc8] sm:$0xff]
        %v2662 = vld [vmem:[%s296 + $0xd0] sm:$0xff]
        %v2663 = vld [vmem:[%s296 + $0xd8] sm:$0xff]
        %v2664 = vld [vmem:[%s296 + $0xe0] sm:$0xff]
        %v2665 = vld [vmem:[%s296 + $0xe8] sm:$0xff]
        %v2666 = vld [vmem:[%s296 + $0xf0] sm:$0xff]
        %v2667 = vld [vmem:[%s296 + $0xf8] sm:$0xff]
        %v2668 = vld [vmem:[%s296 + $0x100] sm:$0xff]
        %v2669 = vld [vmem:[%s296 + $0x108] sm:$0xff]
        %v2670 = vld [vmem:[%s296 + $0x110] sm:$0xff]
        %v2671 = vld [vmem:[%s296 + $0x118] sm:$0xff]
        %v2672 = vld [vmem:[%s296 + $0x120] sm:$0xff]
        %v2673 = vld [vmem:[%s296 + $0x128] sm:$0xff]
        %v2674 = vld [vmem:[%s296 + $0x130] sm:$0xff]
        %v2675 = vld [vmem:[%s296 + $0x138] sm:$0xff]
        %v2676 = vld [vmem:[%s296 + $0x140] sm:$0xff]
        %v2677 = vld [vmem:[%s296 + $0x148] sm:$0xff]
        %v2678 = vld [vmem:[%s296 + $0x150] sm:$0xff]
        %v2679 = vld [vmem:[%s296 + $0x158] sm:$0xff]
        %v2680 = vld [vmem:[%s296 + $0x160] sm:$0xff]
        %v2681 = vld [vmem:[%s296 + $0x168] sm:$0xff]
        %v2682 = vld [vmem:[%s296 + $0x170] sm:$0xff]
        %v2683 = vld [vmem:[%s296 + $0x178] sm:$0xff]
        %v2684 = vld [vmem:[%s878] sm:$0xff]
        %v2685 = vld [vmem:[%s878 + $0x8] sm:$0xff]
        %v2686 = vld [vmem:[%s878 + $0x10] sm:$0xff]
        %v2687 = vld [vmem:[%s878 + $0x18] sm:$0xff]
        %v2688 = vld [vmem:[%s878 + $0x20] sm:$0xff]
        %v2689 = vld [vmem:[%s878 + $0x28] sm:$0xff]
        %v2690 = vld [vmem:[%s878 + $0x30] sm:$0xff]
        %v2691 = vld [vmem:[%s878 + $0x38] sm:$0xff]
        %v2692 = vld [vmem:[%s878 + $0x40] sm:$0xff]
        %v2693 = vld [vmem:[%s878 + $0x48] sm:$0xff]
        %v2694 = vld [vmem:[%s878 + $0x50] sm:$0xff]
        %v2695 = vld [vmem:[%s878 + $0x58] sm:$0xff]
        %v2696 = vld [vmem:[%s878 + $0x60] sm:$0xff]
        %v2697 = vld [vmem:[%s878 + $0x68] sm:$0xff]
        %v2698 = vld [vmem:[%s878 + $0x70] sm:$0xff]
        %v2699 = vld [vmem:[%s878 + $0x78] sm:$0xff]
        %v2700 = vld [vmem:[%s878 + $0x80] sm:$0xff]
        %v2701 = vld [vmem:[%s878 + $0x88] sm:$0xff]
        %v2702 = vld [vmem:[%s878 + $0x90] sm:$0xff]
        %v2703 = vld [vmem:[%s878 + $0x98] sm:$0xff]
        %v2704 = vld [vmem:[%s878 + $0xa0] sm:$0xff]
        %v2705 = vld [vmem:[%s878 + $0xa8] sm:$0xff]
        %v2706 = vld [vmem:[%s878 + $0xb0] sm:$0xff]
        %v2707 = vld [vmem:[%s878 + $0xb8] sm:$0xff]
        %v2708 = vld [vmem:[%s878 + $0xc0] sm:$0xff]
        %v2709 = vld [vmem:[%s878 + $0xc8] sm:$0xff]
        %v2710 = vld [vmem:[%s878 + $0xd0] sm:$0xff]
        %v2711 = vld [vmem:[%s878 + $0xd8] sm:$0xff]
        %v2712 = vld [vmem:[%s878 + $0xe0] sm:$0xff]
        %v2713 = vld [vmem:[%s878 + $0xe8] sm:$0xff]
        %v2714 = vld [vmem:[%s878 + $0xf0] sm:$0xff]
        %v2715 = vld [vmem:[%s878 + $0xf8] sm:$0xff]
        %v2716 = vld [vmem:[%s878 + $0x100] sm:$0xff]
        %v2717 = vld [vmem:[%s878 + $0x108] sm:$0xff]
        %v2718 = vld [vmem:[%s878 + $0x110] sm:$0xff]
        %v2719 = vld [vmem:[%s878 + $0x118] sm:$0xff]
        %v2720 = vld [vmem:[%s878 + $0x120] sm:$0xff]
        %v2721 = vld [vmem:[%s878 + $0x128] sm:$0xff]
        %v2722 = vld [vmem:[%s878 + $0x130] sm:$0xff]
        %v2723 = vld [vmem:[%s878 + $0x138] sm:$0xff]
        %v2724 = vld [vmem:[%s878 + $0x140] sm:$0xff]
        %v2725 = vld [vmem:[%s878 + $0x148] sm:$0xff]
        %v2726 = vld [vmem:[%s878 + $0x150] sm:$0xff]
        %v2727 = vld [vmem:[%s878 + $0x158] sm:$0xff]
        %v2728 = vld [vmem:[%s878 + $0x160] sm:$0xff]
        %v2729 = vld [vmem:[%s878 + $0x168] sm:$0xff]
        %v2730 = vld [vmem:[%s878 + $0x170] sm:$0xff]
        %v2731 = vld [vmem:[%s878 + $0x178] sm:$0xff]
        %v2732 = vld [vmem:[%s878 + $0x180] sm:$0xff]
        %v2733 = vld [vmem:[%s878 + $0x188] sm:$0xff]
        %v2734 = vld [vmem:[%s878 + $0x190] sm:$0xff]
        %v2735 = vld [vmem:[%s878 + $0x198] sm:$0xff]
        %v2736 = vld [vmem:[%s878 + $0x1a0] sm:$0xff]
        %v2737 = vld [vmem:[%s878 + $0x1a8] sm:$0xff]
        %v2738 = vld [vmem:[%s878 + $0x1b0] sm:$0xff]
        %v2739 = vld [vmem:[%s878 + $0x1b8] sm:$0xff]
        %v2740 = vld [vmem:[%s878 + $0x1c0] sm:$0xff]
        %v2741 = vld [vmem:[%s878 + $0x1c8] sm:$0xff]
        %v2742 = vld [vmem:[%s878 + $0x1d0] sm:$0xff]
        %v2743 = vld [vmem:[%s878 + $0x1d8] sm:$0xff]
        %v2744 = vld [vmem:[%s878 + $0x1e0] sm:$0xff]
        %v2745 = vld [vmem:[%s878 + $0x1e8] sm:$0xff]
        %v2746 = vld [vmem:[%s878 + $0x1f0] sm:$0xff]
        %v2747 = vld [vmem:[%s878 + $0x1f8] sm:$0xff]
        %v2748 = vld [vmem:[%s878 + $0x200] sm:$0xff]
        %v2749 = vld [vmem:[%s878 + $0x208] sm:$0xff]
        %v2750 = vld [vmem:[%s878 + $0x210] sm:$0xff]
        %v2751 = vld [vmem:[%s878 + $0x218] sm:$0xff]
        %v2752 = vld [vmem:[%s878 + $0x220] sm:$0xff]
        %v2753 = vld [vmem:[%s878 + $0x228] sm:$0xff]
        %v2754 = vld [vmem:[%s878 + $0x230] sm:$0xff]
        %v2755 = vld [vmem:[%s878 + $0x238] sm:$0xff]
        %v2756 = vld [vmem:[%s878 + $0x240] sm:$0xff]
        %v2757 = vld [vmem:[%s878 + $0x248] sm:$0xff]
        %v2758 = vld [vmem:[%s878 + $0x250] sm:$0xff]
        %v2759 = vld [vmem:[%s878 + $0x258] sm:$0xff]
        %v2760 = vld [vmem:[%s878 + $0x260] sm:$0xff]
        %v2761 = vld [vmem:[%s878 + $0x268] sm:$0xff]
        %v2762 = vld [vmem:[%s878 + $0x270] sm:$0xff]
        %v2763 = vld [vmem:[%s878 + $0x278] sm:$0xff]
        %v2764 = vld [vmem:[%s878 + $0x280] sm:$0xff]
        %v2765 = vld [vmem:[%s878 + $0x288] sm:$0xff]
        %v2766 = vld [vmem:[%s878 + $0x290] sm:$0xff]
        %v2767 = vld [vmem:[%s878 + $0x298] sm:$0xff]
        %v2768 = vld [vmem:[%s878 + $0x2a0] sm:$0xff]
        %v2769 = vld [vmem:[%s878 + $0x2a8] sm:$0xff]
        %v2770 = vld [vmem:[%s878 + $0x2b0] sm:$0xff]
        %v2771 = vld [vmem:[%s878 + $0x2b8] sm:$0xff]
        %v2772 = vld [vmem:[%s878 + $0x2c0] sm:$0xff]
        %v2773 = vld [vmem:[%s878 + $0x2c8] sm:$0xff]
        %v2774 = vld [vmem:[%s878 + $0x2d0] sm:$0xff]
        %v2775 = vld [vmem:[%s878 + $0x2d8] sm:$0xff]
        %v2776 = vld [vmem:[%s878 + $0x2e0] sm:$0xff]
        %v2777 = vld [vmem:[%s878 + $0x2e8] sm:$0xff]
        %v2778 = vld [vmem:[%s878 + $0x2f0] sm:$0xff]
        %v2779 = vld [vmem:[%s878 + $0x2f8] sm:$0xff]
        %s2780 = scalar_lea.vmem %s296, 384
        %v2781 = vld [vmem:[%s2780] sm:$0xff]
        %v2782 = vld [vmem:[%s2780 + $0x8] sm:$0xff]
        %v2783 = vld [vmem:[%s2780 + $0x10] sm:$0xff]
        %v2784 = vld [vmem:[%s2780 + $0x18] sm:$0xff]
        %v2785 = vld [vmem:[%s2780 + $0x20] sm:$0xff]
        %v2786 = vld [vmem:[%s2780 + $0x28] sm:$0xff]
        %v2787 = vld [vmem:[%s2780 + $0x30] sm:$0xff]
        %v2788 = vld [vmem:[%s2780 + $0x38] sm:$0xff]
        %v2789 = vld [vmem:[%s2780 + $0x40] sm:$0xff]
        %v2790 = vld [vmem:[%s2780 + $0x48] sm:$0xff]
        %v2791 = vld [vmem:[%s2780 + $0x50] sm:$0xff]
        %v2792 = vld [vmem:[%s2780 + $0x58] sm:$0xff]
        %v2793 = vld [vmem:[%s2780 + $0x60] sm:$0xff]
        %v2794 = vld [vmem:[%s2780 + $0x68] sm:$0xff]
        %v2795 = vld [vmem:[%s2780 + $0x70] sm:$0xff]
        %v2796 = vld [vmem:[%s2780 + $0x78] sm:$0xff]
        %v2797 = vld [vmem:[%s2780 + $0x80] sm:$0xff]
        %v2798 = vld [vmem:[%s2780 + $0x88] sm:$0xff]
        %v2799 = vld [vmem:[%s2780 + $0x90] sm:$0xff]
        %v2800 = vld [vmem:[%s2780 + $0x98] sm:$0xff]
        %v2801 = vld [vmem:[%s2780 + $0xa0] sm:$0xff]
        %v2802 = vld [vmem:[%s2780 + $0xa8] sm:$0xff]
        %v2803 = vld [vmem:[%s2780 + $0xb0] sm:$0xff]
        %v2804 = vld [vmem:[%s2780 + $0xb8] sm:$0xff]
        %v2805 = vld [vmem:[%s2780 + $0xc0] sm:$0xff]
        %v2806 = vld [vmem:[%s2780 + $0xc8] sm:$0xff]
        %v2807 = vld [vmem:[%s2780 + $0xd0] sm:$0xff]
        %v2808 = vld [vmem:[%s2780 + $0xd8] sm:$0xff]
        %v2809 = vld [vmem:[%s2780 + $0xe0] sm:$0xff]
        %v2810 = vld [vmem:[%s2780 + $0xe8] sm:$0xff]
        %v2811 = vld [vmem:[%s2780 + $0xf0] sm:$0xff]
        %v2812 = vld [vmem:[%s2780 + $0xf8] sm:$0xff]
        %v2813 = vld [vmem:[%s2780 + $0x100] sm:$0xff]
        %v2814 = vld [vmem:[%s2780 + $0x108] sm:$0xff]
        %v2815 = vld [vmem:[%s2780 + $0x110] sm:$0xff]
        %v2816 = vld [vmem:[%s2780 + $0x118] sm:$0xff]
        %v2817 = vld [vmem:[%s2780 + $0x120] sm:$0xff]
        %v2818 = vld [vmem:[%s2780 + $0x128] sm:$0xff]
        %v2819 = vld [vmem:[%s2780 + $0x130] sm:$0xff]
        %v2820 = vld [vmem:[%s2780 + $0x138] sm:$0xff]
        %v2821 = vld [vmem:[%s2780 + $0x140] sm:$0xff]
        %v2822 = vld [vmem:[%s2780 + $0x148] sm:$0xff]
        %v2823 = vld [vmem:[%s2780 + $0x150] sm:$0xff]
        %v2824 = vld [vmem:[%s2780 + $0x158] sm:$0xff]
        %v2825 = vld [vmem:[%s2780 + $0x160] sm:$0xff]
        %v2826 = vld [vmem:[%s2780 + $0x168] sm:$0xff]
        %v2827 = vld [vmem:[%s2780 + $0x170] sm:$0xff]
        %v2828 = vld [vmem:[%s2780 + $0x178] sm:$0xff]
        %2829 = vmatpush.msra.mxu0 %v2796
        %2830 = vmatpush.msra.mxu0 %v2795
        %2831 = vmatpush.msra.mxu0 %v2794
        %2832 = vmatpush.msra.mxu0 %v2793
        %2833 = vmatpush.msra.mxu0 %v2792
        %2834 = vmatpush.msra.mxu0 %v2791
        %2835 = vmatpush.msra.mxu0 %v2790
        %2836 = vmatpush.msra.mxu0 %v2789
        %2837 = vmatpush.msra.mxu0 %v2788
        %2838 = vmatpush.msra.mxu0 %v2787
        %2839 = vmatpush.msra.mxu0 %v2786
        %2840 = vmatpush.msra.mxu0 %v2785
        %2841 = vmatpush.msra.mxu0 %v2784
        %2842 = vmatpush.msra.mxu0 %v2783
        %2843 = vmatpush.msra.mxu0 %v2782
        %2844 = vmatpush.msra.mxu0 %v2781
        %2845 = vmatmul.f32.gmra.mxu0 %v2684
        %v2846 = vpop.f32.mrf.mxu0
        %v2847 = vadd.f32 0.0, %v2846
        %2848 = vmatmul.f32.gmra.mxu0 %v2687
        %v2849 = vpop.f32.mrf.mxu0
        %v2850 = vadd.f32 0.0, %v2849
        %2851 = vmatmul.f32.gmra.mxu0 %v2690
        %v2852 = vpop.f32.mrf.mxu0
        %v2853 = vadd.f32 0.0, %v2852
        %2854 = vmatmul.f32.gmra.mxu0 %v2693
        %v2855 = vpop.f32.mrf.mxu0
        %v2856 = vadd.f32 0.0, %v2855
        %2857 = vmatmul.f32.gmra.mxu0 %v2696
        %v2858 = vpop.f32.mrf.mxu0
        %v2859 = vadd.f32 0.0, %v2858
        %2860 = vmatmul.f32.gmra.mxu0 %v2699
        %v2861 = vpop.f32.mrf.mxu0
        %v2862 = vadd.f32 0.0, %v2861
        %2863 = vmatmul.f32.gmra.mxu0 %v2702
        %v2864 = vpop.f32.mrf.mxu0
        %v2865 = vadd.f32 0.0, %v2864
        %2866 = vmatmul.f32.gmra.mxu0 %v2705
        %v2867 = vpop.f32.mrf.mxu0
        %v2868 = vadd.f32 0.0, %v2867
        %2869 = vmatmul.f32.gmra.mxu0 %v2708
        %v2870 = vpop.f32.mrf.mxu0
        %v2871 = vadd.f32 0.0, %v2870
        %2872 = vmatmul.f32.gmra.mxu0 %v2711
        %v2873 = vpop.f32.mrf.mxu0
        %v2874 = vadd.f32 0.0, %v2873
        %2875 = vmatmul.f32.gmra.mxu0 %v2714
        %v2876 = vpop.f32.mrf.mxu0
        %v2877 = vadd.f32 0.0, %v2876
        %2878 = vmatmul.f32.gmra.mxu0 %v2717
        %v2879 = vpop.f32.mrf.mxu0
        %v2880 = vadd.f32 0.0, %v2879
        %2881 = vmatmul.f32.gmra.mxu0 %v2720
        %v2882 = vpop.f32.mrf.mxu0
        %v2883 = vadd.f32 0.0, %v2882
        %2884 = vmatmul.f32.gmra.mxu0 %v2723
        %v2885 = vpop.f32.mrf.mxu0
        %v2886 = vadd.f32 0.0, %v2885
        %2887 = vmatmul.f32.gmra.mxu0 %v2726
        %v2888 = vpop.f32.mrf.mxu0
        %v2889 = vadd.f32 0.0, %v2888
        %2890 = vmatmul.f32.gmra.mxu0 %v2729
        %v2891 = vpop.f32.mrf.mxu0
        %v2892 = vadd.f32 0.0, %v2891
        %2893 = vmatmul.f32.gmra.mxu0 %v2732
        %v2894 = vpop.f32.mrf.mxu0
        %v2895 = vadd.f32 0.0, %v2894
        %2896 = vmatmul.f32.gmra.mxu0 %v2735
        %v2897 = vpop.f32.mrf.mxu0
        %v2898 = vadd.f32 0.0, %v2897
        %2899 = vmatmul.f32.gmra.mxu0 %v2738
        %v2900 = vpop.f32.mrf.mxu0
        %v2901 = vadd.f32 0.0, %v2900
        %2902 = vmatmul.f32.gmra.mxu0 %v2741
        %v2903 = vpop.f32.mrf.mxu0
        %v2904 = vadd.f32 0.0, %v2903
        %2905 = vmatmul.f32.gmra.mxu0 %v2744
        %v2906 = vpop.f32.mrf.mxu0
        %v2907 = vadd.f32 0.0, %v2906
        %2908 = vmatmul.f32.gmra.mxu0 %v2747
        %v2909 = vpop.f32.mrf.mxu0
        %v2910 = vadd.f32 0.0, %v2909
        %2911 = vmatmul.f32.gmra.mxu0 %v2750
        %v2912 = vpop.f32.mrf.mxu0
        %v2913 = vadd.f32 0.0, %v2912
        %2914 = vmatmul.f32.gmra.mxu0 %v2753
        %v2915 = vpop.f32.mrf.mxu0
        %v2916 = vadd.f32 0.0, %v2915
        %2917 = vmatmul.f32.gmra.mxu0 %v2756
        %v2918 = vpop.f32.mrf.mxu0
        %v2919 = vadd.f32 0.0, %v2918
        %2920 = vmatmul.f32.gmra.mxu0 %v2759
        %v2921 = vpop.f32.mrf.mxu0
        %v2922 = vadd.f32 0.0, %v2921
        %2923 = vmatmul.f32.gmra.mxu0 %v2762
        %v2924 = vpop.f32.mrf.mxu0
        %v2925 = vadd.f32 0.0, %v2924
        %2926 = vmatmul.f32.gmra.mxu0 %v2765
        %v2927 = vpop.f32.mrf.mxu0
        %v2928 = vadd.f32 0.0, %v2927
        %2929 = vmatmul.f32.gmra.mxu0 %v2768
        %v2930 = vpop.f32.mrf.mxu0
        %v2931 = vadd.f32 0.0, %v2930
        %2932 = vmatmul.f32.gmra.mxu0 %v2771
        %v2933 = vpop.f32.mrf.mxu0
        %v2934 = vadd.f32 0.0, %v2933
        %2935 = vmatmul.f32.gmra.mxu0 %v2774
        %v2936 = vpop.f32.mrf.mxu0
        %v2937 = vadd.f32 0.0, %v2936
        %2938 = vmatmul.f32.gmra.mxu0 %v2777
        %v2939 = vpop.f32.mrf.mxu0
        %v2940 = vadd.f32 0.0, %v2939
        %2941 = vdwg.mxu0
        %2942 = vmatpush.msra.mxu0 %v2812
        %2943 = vmatpush.msra.mxu0 %v2811
        %2944 = vmatpush.msra.mxu0 %v2810
        %2945 = vmatpush.msra.mxu0 %v2809
        %2946 = vmatpush.msra.mxu0 %v2808
        %2947 = vmatpush.msra.mxu0 %v2807
        %2948 = vmatpush.msra.mxu0 %v2806
        %2949 = vmatpush.msra.mxu0 %v2805
        %2950 = vmatpush.msra.mxu0 %v2804
        %2951 = vmatpush.msra.mxu0 %v2803
        %2952 = vmatpush.msra.mxu0 %v2802
        %2953 = vmatpush.msra.mxu0 %v2801
        %2954 = vmatpush.msra.mxu0 %v2800
        %2955 = vmatpush.msra.mxu0 %v2799
        %2956 = vmatpush.msra.mxu0 %v2798
        %2957 = vmatpush.msra.mxu0 %v2797
        %2958 = vmatmul.f32.gmra.mxu0 %v2685
        %v2959 = vpop.f32.mrf.mxu0
        %v2960 = vadd.f32 %v2847, %v2959
        %2961 = vmatmul.f32.gmra.mxu0 %v2688
        %v2962 = vpop.f32.mrf.mxu0
        %v2963 = vadd.f32 %v2850, %v2962
        %2964 = vmatmul.f32.gmra.mxu0 %v2691
        %v2965 = vpop.f32.mrf.mxu0
        %v2966 = vadd.f32 %v2853, %v2965
        %2967 = vmatmul.f32.gmra.mxu0 %v2694
        %v2968 = vpop.f32.mrf.mxu0
        %v2969 = vadd.f32 %v2856, %v2968
        %2970 = vmatmul.f32.gmra.mxu0 %v2697
        %v2971 = vpop.f32.mrf.mxu0
        %v2972 = vadd.f32 %v2859, %v2971
        %2973 = vmatmul.f32.gmra.mxu0 %v2700
        %v2974 = vpop.f32.mrf.mxu0
        %v2975 = vadd.f32 %v2862, %v2974
        %2976 = vmatmul.f32.gmra.mxu0 %v2703
        %v2977 = vpop.f32.mrf.mxu0
        %v2978 = vadd.f32 %v2865, %v2977
        %2979 = vmatmul.f32.gmra.mxu0 %v2706
        %v2980 = vpop.f32.mrf.mxu0
        %v2981 = vadd.f32 %v2868, %v2980
        %2982 = vmatmul.f32.gmra.mxu0 %v2709
        %v2983 = vpop.f32.mrf.mxu0
        %v2984 = vadd.f32 %v2871, %v2983
        %2985 = vmatmul.f32.gmra.mxu0 %v2712
        %v2986 = vpop.f32.mrf.mxu0
        %v2987 = vadd.f32 %v2874, %v2986
        %2988 = vmatmul.f32.gmra.mxu0 %v2715
        %v2989 = vpop.f32.mrf.mxu0
        %v2990 = vadd.f32 %v2877, %v2989
        %2991 = vmatmul.f32.gmra.mxu0 %v2718
        %v2992 = vpop.f32.mrf.mxu0
        %v2993 = vadd.f32 %v2880, %v2992
        %2994 = vmatmul.f32.gmra.mxu0 %v2721
        %v2995 = vpop.f32.mrf.mxu0
        %v2996 = vadd.f32 %v2883, %v2995
        %2997 = vmatmul.f32.gmra.mxu0 %v2724
        %v2998 = vpop.f32.mrf.mxu0
        %v2999 = vadd.f32 %v2886, %v2998
        %3000 = vmatmul.f32.gmra.mxu0 %v2727
        %v3001 = vpop.f32.mrf.mxu0
        %v3002 = vadd.f32 %v2889, %v3001
        %3003 = vmatmul.f32.gmra.mxu0 %v2730
        %v3004 = vpop.f32.mrf.mxu0
        %v3005 = vadd.f32 %v2892, %v3004
        %3006 = vmatmul.f32.gmra.mxu0 %v2733
        %v3007 = vpop.f32.mrf.mxu0
        %v3008 = vadd.f32 %v2895, %v3007
        %3009 = vmatmul.f32.gmra.mxu0 %v2736
        %v3010 = vpop.f32.mrf.mxu0
        %v3011 = vadd.f32 %v2898, %v3010
        %3012 = vmatmul.f32.gmra.mxu0 %v2739
        %v3013 = vpop.f32.mrf.mxu0
        %v3014 = vadd.f32 %v2901, %v3013
        %3015 = vmatmul.f32.gmra.mxu0 %v2742
        %v3016 = vpop.f32.mrf.mxu0
        %v3017 = vadd.f32 %v2904, %v3016
        %3018 = vmatmul.f32.gmra.mxu0 %v2745
        %v3019 = vpop.f32.mrf.mxu0
        %v3020 = vadd.f32 %v2907, %v3019
        %3021 = vmatmul.f32.gmra.mxu0 %v2748
        %v3022 = vpop.f32.mrf.mxu0
        %v3023 = vadd.f32 %v2910, %v3022
        %3024 = vmatmul.f32.gmra.mxu0 %v2751
        %v3025 = vpop.f32.mrf.mxu0
        %v3026 = vadd.f32 %v2913, %v3025
        %3027 = vmatmul.f32.gmra.mxu0 %v2754
        %v3028 = vpop.f32.mrf.mxu0
        %v3029 = vadd.f32 %v2916, %v3028
        %3030 = vmatmul.f32.gmra.mxu0 %v2757
        %v3031 = vpop.f32.mrf.mxu0
        %v3032 = vadd.f32 %v2919, %v3031
        %3033 = vmatmul.f32.gmra.mxu0 %v2760
        %v3034 = vpop.f32.mrf.mxu0
        %v3035 = vadd.f32 %v2922, %v3034
        %3036 = vmatmul.f32.gmra.mxu0 %v2763
        %v3037 = vpop.f32.mrf.mxu0
        %v3038 = vadd.f32 %v2925, %v3037
        %3039 = vmatmul.f32.gmra.mxu0 %v2766
        %v3040 = vpop.f32.mrf.mxu0
        %v3041 = vadd.f32 %v2928, %v3040
        %3042 = vmatmul.f32.gmra.mxu0 %v2769
        %v3043 = vpop.f32.mrf.mxu0
        %v3044 = vadd.f32 %v2931, %v3043
        %3045 = vmatmul.f32.gmra.mxu0 %v2772
        %v3046 = vpop.f32.mrf.mxu0
        %v3047 = vadd.f32 %v2934, %v3046
        %3048 = vmatmul.f32.gmra.mxu0 %v2775
        %v3049 = vpop.f32.mrf.mxu0
        %v3050 = vadd.f32 %v2937, %v3049
        %3051 = vmatmul.f32.gmra.mxu0 %v2778
        %v3052 = vpop.f32.mrf.mxu0
        %v3053 = vadd.f32 %v2940, %v3052
        %3054 = vdwg.mxu0
        %3055 = vmatpush.msra.mxu0 %v2828
        %3056 = vmatpush.msra.mxu0 %v2827
        %3057 = vmatpush.msra.mxu0 %v2826
        %3058 = vmatpush.msra.mxu0 %v2825
        %3059 = vmatpush.msra.mxu0 %v2824
        %3060 = vmatpush.msra.mxu0 %v2823
        %3061 = vmatpush.msra.mxu0 %v2822
        %3062 = vmatpush.msra.mxu0 %v2821
        %3063 = vmatpush.msra.mxu0 %v2820
        %3064 = vmatpush.msra.mxu0 %v2819
        %3065 = vmatpush.msra.mxu0 %v2818
        %3066 = vmatpush.msra.mxu0 %v2817
        %3067 = vmatpush.msra.mxu0 %v2816
        %3068 = vmatpush.msra.mxu0 %v2815
        %3069 = vmatpush.msra.mxu0 %v2814
        %3070 = vmatpush.msra.mxu0 %v2813
        %3071 = vmatmul.f32.gmra.mxu0 %v2686
        %v3072 = vpop.f32.mrf.mxu0
        %v3073 = vadd.f32 %v2960, %v3072
        %3074 = vmatmul.f32.gmra.mxu0 %v2689
        %v3075 = vpop.f32.mrf.mxu0
        %v3076 = vadd.f32 %v2963, %v3075
        %3077 = vmatmul.f32.gmra.mxu0 %v2692
        %v3078 = vpop.f32.mrf.mxu0
        %v3079 = vadd.f32 %v2966, %v3078
        %3080 = vmatmul.f32.gmra.mxu0 %v2695
        %v3081 = vpop.f32.mrf.mxu0
        %v3082 = vadd.f32 %v2969, %v3081
        %3083 = vmatmul.f32.gmra.mxu0 %v2698
        %v3084 = vpop.f32.mrf.mxu0
        %v3085 = vadd.f32 %v2972, %v3084
        %3086 = vmatmul.f32.gmra.mxu0 %v2701
        %v3087 = vpop.f32.mrf.mxu0
        %v3088 = vadd.f32 %v2975, %v3087
        %3089 = vmatmul.f32.gmra.mxu0 %v2704
        %v3090 = vpop.f32.mrf.mxu0
        %v3091 = vadd.f32 %v2978, %v3090
        %3092 = vmatmul.f32.gmra.mxu0 %v2707
        %v3093 = vpop.f32.mrf.mxu0
        %v3094 = vadd.f32 %v2981, %v3093
        %3095 = vmatmul.f32.gmra.mxu0 %v2710
        %v3096 = vpop.f32.mrf.mxu0
        %v3097 = vadd.f32 %v2984, %v3096
        %3098 = vmatmul.f32.gmra.mxu0 %v2713
        %v3099 = vpop.f32.mrf.mxu0
        %v3100 = vadd.f32 %v2987, %v3099
        %3101 = vmatmul.f32.gmra.mxu0 %v2716
        %v3102 = vpop.f32.mrf.mxu0
        %v3103 = vadd.f32 %v2990, %v3102
        %3104 = vmatmul.f32.gmra.mxu0 %v2719
        %v3105 = vpop.f32.mrf.mxu0
        %v3106 = vadd.f32 %v2993, %v3105
        %3107 = vmatmul.f32.gmra.mxu0 %v2722
        %v3108 = vpop.f32.mrf.mxu0
        %v3109 = vadd.f32 %v2996, %v3108
        %3110 = vmatmul.f32.gmra.mxu0 %v2725
        %v3111 = vpop.f32.mrf.mxu0
        %v3112 = vadd.f32 %v2999, %v3111
        %3113 = vmatmul.f32.gmra.mxu0 %v2728
        %v3114 = vpop.f32.mrf.mxu0
        %v3115 = vadd.f32 %v3002, %v3114
        %3116 = vmatmul.f32.gmra.mxu0 %v2731
        %v3117 = vpop.f32.mrf.mxu0
        %v3118 = vadd.f32 %v3005, %v3117
        %3119 = vmatmul.f32.gmra.mxu0 %v2734
        %v3120 = vpop.f32.mrf.mxu0
        %v3121 = vadd.f32 %v3008, %v3120
        %3122 = vmatmul.f32.gmra.mxu0 %v2737
        %v3123 = vpop.f32.mrf.mxu0
        %v3124 = vadd.f32 %v3011, %v3123
        %3125 = vmatmul.f32.gmra.mxu0 %v2740
        %v3126 = vpop.f32.mrf.mxu0
        %v3127 = vadd.f32 %v3014, %v3126
        %3128 = vmatmul.f32.gmra.mxu0 %v2743
        %v3129 = vpop.f32.mrf.mxu0
        %v3130 = vadd.f32 %v3017, %v3129
        %3131 = vmatmul.f32.gmra.mxu0 %v2746
        %v3132 = vpop.f32.mrf.mxu0
        %v3133 = vadd.f32 %v3020, %v3132
        %3134 = vmatmul.f32.gmra.mxu0 %v2749
        %v3135 = vpop.f32.mrf.mxu0
        %v3136 = vadd.f32 %v3023, %v3135
        %3137 = vmatmul.f32.gmra.mxu0 %v2752
        %v3138 = vpop.f32.mrf.mxu0
        %v3139 = vadd.f32 %v3026, %v3138
        %3140 = vmatmul.f32.gmra.mxu0 %v2755
        %v3141 = vpop.f32.mrf.mxu0
        %v3142 = vadd.f32 %v3029, %v3141
        %3143 = vmatmul.f32.gmra.mxu0 %v2758
        %v3144 = vpop.f32.mrf.mxu0
        %v3145 = vadd.f32 %v3032, %v3144
        %3146 = vmatmul.f32.gmra.mxu0 %v2761
        %v3147 = vpop.f32.mrf.mxu0
        %v3148 = vadd.f32 %v3035, %v3147
        %3149 = vmatmul.f32.gmra.mxu0 %v2764
        %v3150 = vpop.f32.mrf.mxu0
        %v3151 = vadd.f32 %v3038, %v3150
        %3152 = vmatmul.f32.gmra.mxu0 %v2767
        %v3153 = vpop.f32.mrf.mxu0
        %v3154 = vadd.f32 %v3041, %v3153
        %3155 = vmatmul.f32.gmra.mxu0 %v2770
        %v3156 = vpop.f32.mrf.mxu0
        %v3157 = vadd.f32 %v3044, %v3156
        %3158 = vmatmul.f32.gmra.mxu0 %v2773
        %v3159 = vpop.f32.mrf.mxu0
        %v3160 = vadd.f32 %v3047, %v3159
        %3161 = vmatmul.f32.gmra.mxu0 %v2776
        %v3162 = vpop.f32.mrf.mxu0
        %v3163 = vadd.f32 %v3050, %v3162
        %3164 = vmatmul.f32.gmra.mxu0 %v2779
        %v3165 = vpop.f32.mrf.mxu0
        %v3166 = vadd.f32 %v3053, %v3165
        %3167 = vdwg.mxu0
        %3168 = vmatpush.msra.mxu0 %v2651
        %3169 = vmatpush.msra.mxu0 %v2650
        %3170 = vmatpush.msra.mxu0 %v2649
        %3171 = vmatpush.msra.mxu0 %v2648
        %3172 = vmatpush.msra.mxu0 %v2647
        %3173 = vmatpush.msra.mxu0 %v2646
        %3174 = vmatpush.msra.mxu0 %v2645
        %3175 = vmatpush.msra.mxu0 %v2644
        %3176 = vmatpush.msra.mxu0 %v2643
        %3177 = vmatpush.msra.mxu0 %v2642
        %3178 = vmatpush.msra.mxu0 %v2641
        %3179 = vmatpush.msra.mxu0 %v2640
        %3180 = vmatpush.msra.mxu0 %v2639
        %3181 = vmatpush.msra.mxu0 %v2638
        %3182 = vmatpush.msra.mxu0 %v2637
        %3183 = vmatpush.msra.mxu0 %v2636
        %3184 = vmatmul.f32.gmra.mxu0 %v2540
        %v3185 = vpop.f32.mrf.mxu0
        %v3186 = vadd.f32 %v3073, %v3185
        %3187 = vmatmul.f32.gmra.mxu0 %v2543
        %v3188 = vpop.f32.mrf.mxu0
        %v3189 = vadd.f32 %v3076, %v3188
        %3190 = vmatmul.f32.gmra.mxu0 %v2546
        %v3191 = vpop.f32.mrf.mxu0
        %v3192 = vadd.f32 %v3079, %v3191
        %3193 = vmatmul.f32.gmra.mxu0 %v2549
        %v3194 = vpop.f32.mrf.mxu0
        %v3195 = vadd.f32 %v3082, %v3194
        %3196 = vmatmul.f32.gmra.mxu0 %v2552
        %v3197 = vpop.f32.mrf.mxu0
        %v3198 = vadd.f32 %v3085, %v3197
        %3199 = vmatmul.f32.gmra.mxu0 %v2555
        %v3200 = vpop.f32.mrf.mxu0
        %v3201 = vadd.f32 %v3088, %v3200
        %3202 = vmatmul.f32.gmra.mxu0 %v2558
        %v3203 = vpop.f32.mrf.mxu0
        %v3204 = vadd.f32 %v3091, %v3203
        %3205 = vmatmul.f32.gmra.mxu0 %v2561
        %v3206 = vpop.f32.mrf.mxu0
        %v3207 = vadd.f32 %v3094, %v3206
        %3208 = vmatmul.f32.gmra.mxu0 %v2564
        %v3209 = vpop.f32.mrf.mxu0
        %v3210 = vadd.f32 %v3097, %v3209
        %3211 = vmatmul.f32.gmra.mxu0 %v2567
        %v3212 = vpop.f32.mrf.mxu0
        %v3213 = vadd.f32 %v3100, %v3212
        %3214 = vmatmul.f32.gmra.mxu0 %v2570
        %v3215 = vpop.f32.mrf.mxu0
        %v3216 = vadd.f32 %v3103, %v3215
        %3217 = vmatmul.f32.gmra.mxu0 %v2573
        %v3218 = vpop.f32.mrf.mxu0
        %v3219 = vadd.f32 %v3106, %v3218
        %3220 = vmatmul.f32.gmra.mxu0 %v2576
        %v3221 = vpop.f32.mrf.mxu0
        %v3222 = vadd.f32 %v3109, %v3221
        %3223 = vmatmul.f32.gmra.mxu0 %v2579
        %v3224 = vpop.f32.mrf.mxu0
        %v3225 = vadd.f32 %v3112, %v3224
        %3226 = vmatmul.f32.gmra.mxu0 %v2582
        %v3227 = vpop.f32.mrf.mxu0
        %v3228 = vadd.f32 %v3115, %v3227
        %3229 = vmatmul.f32.gmra.mxu0 %v2585
        %v3230 = vpop.f32.mrf.mxu0
        %v3231 = vadd.f32 %v3118, %v3230
        %3232 = vmatmul.f32.gmra.mxu0 %v2588
        %v3233 = vpop.f32.mrf.mxu0
        %v3234 = vadd.f32 %v3121, %v3233
        %3235 = vmatmul.f32.gmra.mxu0 %v2591
        %v3236 = vpop.f32.mrf.mxu0
        %v3237 = vadd.f32 %v3124, %v3236
        %3238 = vmatmul.f32.gmra.mxu0 %v2594
        %v3239 = vpop.f32.mrf.mxu0
        %v3240 = vadd.f32 %v3127, %v3239
        %3241 = vmatmul.f32.gmra.mxu0 %v2597
        %v3242 = vpop.f32.mrf.mxu0
        %v3243 = vadd.f32 %v3130, %v3242
        %3244 = vmatmul.f32.gmra.mxu0 %v2600
        %v3245 = vpop.f32.mrf.mxu0
        %v3246 = vadd.f32 %v3133, %v3245
        %3247 = vmatmul.f32.gmra.mxu0 %v2603
        %v3248 = vpop.f32.mrf.mxu0
        %v3249 = vadd.f32 %v3136, %v3248
        %3250 = vmatmul.f32.gmra.mxu0 %v2606
        %v3251 = vpop.f32.mrf.mxu0
        %v3252 = vadd.f32 %v3139, %v3251
        %3253 = vmatmul.f32.gmra.mxu0 %v2609
        %v3254 = vpop.f32.mrf.mxu0
        %v3255 = vadd.f32 %v3142, %v3254
        %3256 = vmatmul.f32.gmra.mxu0 %v2612
        %v3257 = vpop.f32.mrf.mxu0
        %v3258 = vadd.f32 %v3145, %v3257
        %3259 = vmatmul.f32.gmra.mxu0 %v2615
        %v3260 = vpop.f32.mrf.mxu0
        %v3261 = vadd.f32 %v3148, %v3260
        %3262 = vmatmul.f32.gmra.mxu0 %v2618
        %v3263 = vpop.f32.mrf.mxu0
        %v3264 = vadd.f32 %v3151, %v3263
        %3265 = vmatmul.f32.gmra.mxu0 %v2621
        %v3266 = vpop.f32.mrf.mxu0
        %v3267 = vadd.f32 %v3154, %v3266
        %3268 = vmatmul.f32.gmra.mxu0 %v2624
        %v3269 = vpop.f32.mrf.mxu0
        %v3270 = vadd.f32 %v3157, %v3269
        %3271 = vmatmul.f32.gmra.mxu0 %v2627
        %v3272 = vpop.f32.mrf.mxu0
        %v3273 = vadd.f32 %v3160, %v3272
        %3274 = vmatmul.f32.gmra.mxu0 %v2630
        %v3275 = vpop.f32.mrf.mxu0
        %v3276 = vadd.f32 %v3163, %v3275
        %3277 = vmatmul.f32.gmra.mxu0 %v2633
        %v3278 = vpop.f32.mrf.mxu0
        %v3279 = vadd.f32 %v3166, %v3278
        %3280 = vdwg.mxu0
        %3281 = vmatpush.msra.mxu0 %v2667
        %3282 = vmatpush.msra.mxu0 %v2666
        %3283 = vmatpush.msra.mxu0 %v2665
        %3284 = vmatpush.msra.mxu0 %v2664
        %3285 = vmatpush.msra.mxu0 %v2663
        %3286 = vmatpush.msra.mxu0 %v2662
        %3287 = vmatpush.msra.mxu0 %v2661
        %3288 = vmatpush.msra.mxu0 %v2660
        %3289 = vmatpush.msra.mxu0 %v2659
        %3290 = vmatpush.msra.mxu0 %v2658
        %3291 = vmatpush.msra.mxu0 %v2657
        %3292 = vmatpush.msra.mxu0 %v2656
        %3293 = vmatpush.msra.mxu0 %v2655
        %3294 = vmatpush.msra.mxu0 %v2654
        %3295 = vmatpush.msra.mxu0 %v2653
        %3296 = vmatpush.msra.mxu0 %v2652
        %3297 = vmatmul.f32.gmra.mxu0 %v2541
        %v3298 = vpop.f32.mrf.mxu0
        %v3299 = vadd.f32 %v3186, %v3298
        %3300 = vmatmul.f32.gmra.mxu0 %v2544
        %v3301 = vpop.f32.mrf.mxu0
        %v3302 = vadd.f32 %v3189, %v3301
        %3303 = vmatmul.f32.gmra.mxu0 %v2547
        %v3304 = vpop.f32.mrf.mxu0
        %v3305 = vadd.f32 %v3192, %v3304
        %3306 = vmatmul.f32.gmra.mxu0 %v2550
        %v3307 = vpop.f32.mrf.mxu0
        %v3308 = vadd.f32 %v3195, %v3307
        %3309 = vmatmul.f32.gmra.mxu0 %v2553
        %v3310 = vpop.f32.mrf.mxu0
        %v3311 = vadd.f32 %v3198, %v3310
        %3312 = vmatmul.f32.gmra.mxu0 %v2556
        %v3313 = vpop.f32.mrf.mxu0
        %v3314 = vadd.f32 %v3201, %v3313
        %3315 = vmatmul.f32.gmra.mxu0 %v2559
        %v3316 = vpop.f32.mrf.mxu0
        %v3317 = vadd.f32 %v3204, %v3316
        %3318 = vmatmul.f32.gmra.mxu0 %v2562
        %v3319 = vpop.f32.mrf.mxu0
        %v3320 = vadd.f32 %v3207, %v3319
        %3321 = vmatmul.f32.gmra.mxu0 %v2565
        %v3322 = vpop.f32.mrf.mxu0
        %v3323 = vadd.f32 %v3210, %v3322
        %3324 = vmatmul.f32.gmra.mxu0 %v2568
        %v3325 = vpop.f32.mrf.mxu0
        %v3326 = vadd.f32 %v3213, %v3325
        %3327 = vmatmul.f32.gmra.mxu0 %v2571
        %v3328 = vpop.f32.mrf.mxu0
        %v3329 = vadd.f32 %v3216, %v3328
        %3330 = vmatmul.f32.gmra.mxu0 %v2574
        %v3331 = vpop.f32.mrf.mxu0
        %v3332 = vadd.f32 %v3219, %v3331
        %3333 = vmatmul.f32.gmra.mxu0 %v2577
        %v3334 = vpop.f32.mrf.mxu0
        %v3335 = vadd.f32 %v3222, %v3334
        %3336 = vmatmul.f32.gmra.mxu0 %v2580
        %v3337 = vpop.f32.mrf.mxu0
        %v3338 = vadd.f32 %v3225, %v3337
        %3339 = vmatmul.f32.gmra.mxu0 %v2583
        %v3340 = vpop.f32.mrf.mxu0
        %v3341 = vadd.f32 %v3228, %v3340
        %3342 = vmatmul.f32.gmra.mxu0 %v2586
        %v3343 = vpop.f32.mrf.mxu0
        %v3344 = vadd.f32 %v3231, %v3343
        %3345 = vmatmul.f32.gmra.mxu0 %v2589
        %v3346 = vpop.f32.mrf.mxu0
        %v3347 = vadd.f32 %v3234, %v3346
        %3348 = vmatmul.f32.gmra.mxu0 %v2592
        %v3349 = vpop.f32.mrf.mxu0
        %v3350 = vadd.f32 %v3237, %v3349
        %3351 = vmatmul.f32.gmra.mxu0 %v2595
        %v3352 = vpop.f32.mrf.mxu0
        %v3353 = vadd.f32 %v3240, %v3352
        %3354 = vmatmul.f32.gmra.mxu0 %v2598
        %v3355 = vpop.f32.mrf.mxu0
        %v3356 = vadd.f32 %v3243, %v3355
        %3357 = vmatmul.f32.gmra.mxu0 %v2601
        %v3358 = vpop.f32.mrf.mxu0
        %v3359 = vadd.f32 %v3246, %v3358
        %3360 = vmatmul.f32.gmra.mxu0 %v2604
        %v3361 = vpop.f32.mrf.mxu0
        %v3362 = vadd.f32 %v3249, %v3361
        %3363 = vmatmul.f32.gmra.mxu0 %v2607
        %v3364 = vpop.f32.mrf.mxu0
        %v3365 = vadd.f32 %v3252, %v3364
        %3366 = vmatmul.f32.gmra.mxu0 %v2610
        %v3367 = vpop.f32.mrf.mxu0
        %v3368 = vadd.f32 %v3255, %v3367
        %3369 = vmatmul.f32.gmra.mxu0 %v2613
        %v3370 = vpop.f32.mrf.mxu0
        %v3371 = vadd.f32 %v3258, %v3370
        %3372 = vmatmul.f32.gmra.mxu0 %v2616
        %v3373 = vpop.f32.mrf.mxu0
        %v3374 = vadd.f32 %v3261, %v3373
        %3375 = vmatmul.f32.gmra.mxu0 %v2619
        %v3376 = vpop.f32.mrf.mxu0
        %v3377 = vadd.f32 %v3264, %v3376
        %3378 = vmatmul.f32.gmra.mxu0 %v2622
        %v3379 = vpop.f32.mrf.mxu0
        %v3380 = vadd.f32 %v3267, %v3379
        %3381 = vmatmul.f32.gmra.mxu0 %v2625
        %v3382 = vpop.f32.mrf.mxu0
        %v3383 = vadd.f32 %v3270, %v3382
        %3384 = vmatmul.f32.gmra.mxu0 %v2628
        %v3385 = vpop.f32.mrf.mxu0
        %v3386 = vadd.f32 %v3273, %v3385
        %3387 = vmatmul.f32.gmra.mxu0 %v2631
        %v3388 = vpop.f32.mrf.mxu0
        %v3389 = vadd.f32 %v3276, %v3388
        %3390 = vmatmul.f32.gmra.mxu0 %v2634
        %v3391 = vpop.f32.mrf.mxu0
        %v3392 = vadd.f32 %v3279, %v3391
        %3393 = vdwg.mxu0
        %3394 = vmatpush.msra.mxu0 %v2683
        %3395 = vmatpush.msra.mxu0 %v2682
        %3396 = vmatpush.msra.mxu0 %v2681
        %3397 = vmatpush.msra.mxu0 %v2680
        %3398 = vmatpush.msra.mxu0 %v2679
        %3399 = vmatpush.msra.mxu0 %v2678
        %3400 = vmatpush.msra.mxu0 %v2677
        %3401 = vmatpush.msra.mxu0 %v2676
        %3402 = vmatpush.msra.mxu0 %v2675
        %3403 = vmatpush.msra.mxu0 %v2674
        %3404 = vmatpush.msra.mxu0 %v2673
        %3405 = vmatpush.msra.mxu0 %v2672
        %3406 = vmatpush.msra.mxu0 %v2671
        %3407 = vmatpush.msra.mxu0 %v2670
        %3408 = vmatpush.msra.mxu0 %v2669
        %3409 = vmatpush.msra.mxu0 %v2668
        %3410 = vmatmul.f32.gmra.mxu0 %v2542
        %v3411 = vpop.f32.mrf.mxu0
        %v3412 = vadd.f32 %v3299, %v3411
        %3413 = vmatmul.f32.gmra.mxu0 %v2545
        %v3414 = vpop.f32.mrf.mxu0
        %v3415 = vadd.f32 %v3302, %v3414
        %3416 = vmatmul.f32.gmra.mxu0 %v2548
        %v3417 = vpop.f32.mrf.mxu0
        %v3418 = vadd.f32 %v3305, %v3417
        %3419 = vmatmul.f32.gmra.mxu0 %v2551
        %v3420 = vpop.f32.mrf.mxu0
        %v3421 = vadd.f32 %v3308, %v3420
        %3422 = vmatmul.f32.gmra.mxu0 %v2554
        %v3423 = vpop.f32.mrf.mxu0
        %v3424 = vadd.f32 %v3311, %v3423
        %3425 = vmatmul.f32.gmra.mxu0 %v2557
        %v3426 = vpop.f32.mrf.mxu0
        %v3427 = vadd.f32 %v3314, %v3426
        %3428 = vmatmul.f32.gmra.mxu0 %v2560
        %v3429 = vpop.f32.mrf.mxu0
        %v3430 = vadd.f32 %v3317, %v3429
        %3431 = vmatmul.f32.gmra.mxu0 %v2563
        %v3432 = vpop.f32.mrf.mxu0
        %v3433 = vadd.f32 %v3320, %v3432
        %3434 = vmatmul.f32.gmra.mxu0 %v2566
        %v3435 = vpop.f32.mrf.mxu0
        %v3436 = vadd.f32 %v3323, %v3435
        %3437 = vmatmul.f32.gmra.mxu0 %v2569
        %v3438 = vpop.f32.mrf.mxu0
        %v3439 = vadd.f32 %v3326, %v3438
        %3440 = vmatmul.f32.gmra.mxu0 %v2572
        %v3441 = vpop.f32.mrf.mxu0
        %v3442 = vadd.f32 %v3329, %v3441
        %3443 = vmatmul.f32.gmra.mxu0 %v2575
        %v3444 = vpop.f32.mrf.mxu0
        %v3445 = vadd.f32 %v3332, %v3444
        %3446 = vmatmul.f32.gmra.mxu0 %v2578
        %v3447 = vpop.f32.mrf.mxu0
        %v3448 = vadd.f32 %v3335, %v3447
        %3449 = vmatmul.f32.gmra.mxu0 %v2581
        %v3450 = vpop.f32.mrf.mxu0
        %v3451 = vadd.f32 %v3338, %v3450
        %3452 = vmatmul.f32.gmra.mxu0 %v2584
        %v3453 = vpop.f32.mrf.mxu0
        %v3454 = vadd.f32 %v3341, %v3453
        %3455 = vmatmul.f32.gmra.mxu0 %v2587
        %v3456 = vpop.f32.mrf.mxu0
        %v3457 = vadd.f32 %v3344, %v3456
        %3458 = vmatmul.f32.gmra.mxu0 %v2590
        %v3459 = vpop.f32.mrf.mxu0
        %v3460 = vadd.f32 %v3347, %v3459
        %3461 = vmatmul.f32.gmra.mxu0 %v2593
        %v3462 = vpop.f32.mrf.mxu0
        %v3463 = vadd.f32 %v3350, %v3462
        %3464 = vmatmul.f32.gmra.mxu0 %v2596
        %v3465 = vpop.f32.mrf.mxu0
        %v3466 = vadd.f32 %v3353, %v3465
        %3467 = vmatmul.f32.gmra.mxu0 %v2599
        %v3468 = vpop.f32.mrf.mxu0
        %v3469 = vadd.f32 %v3356, %v3468
        %3470 = vmatmul.f32.gmra.mxu0 %v2602
        %v3471 = vpop.f32.mrf.mxu0
        %v3472 = vadd.f32 %v3359, %v3471
        %3473 = vmatmul.f32.gmra.mxu0 %v2605
        %v3474 = vpop.f32.mrf.mxu0
        %v3475 = vadd.f32 %v3362, %v3474
        %3476 = vmatmul.f32.gmra.mxu0 %v2608
        %v3477 = vpop.f32.mrf.mxu0
        %v3478 = vadd.f32 %v3365, %v3477
        %3479 = vmatmul.f32.gmra.mxu0 %v2611
        %v3480 = vpop.f32.mrf.mxu0
        %v3481 = vadd.f32 %v3368, %v3480
        %3482 = vmatmul.f32.gmra.mxu0 %v2614
        %v3483 = vpop.f32.mrf.mxu0
        %v3484 = vadd.f32 %v3371, %v3483
        %3485 = vmatmul.f32.gmra.mxu0 %v2617
        %v3486 = vpop.f32.mrf.mxu0
        %v3487 = vadd.f32 %v3374, %v3486
        %3488 = vmatmul.f32.gmra.mxu0 %v2620
        %v3489 = vpop.f32.mrf.mxu0
        %v3490 = vadd.f32 %v3377, %v3489
        %3491 = vmatmul.f32.gmra.mxu0 %v2623
        %v3492 = vpop.f32.mrf.mxu0
        %v3493 = vadd.f32 %v3380, %v3492
        %3494 = vmatmul.f32.gmra.mxu0 %v2626
        %v3495 = vpop.f32.mrf.mxu0
        %v3496 = vadd.f32 %v3383, %v3495
        %3497 = vmatmul.f32.gmra.mxu0 %v2629
        %v3498 = vpop.f32.mrf.mxu0
        %v3499 = vadd.f32 %v3386, %v3498
        %3500 = vmatmul.f32.gmra.mxu0 %v2632
        %v3501 = vpop.f32.mrf.mxu0
        %v3502 = vadd.f32 %v3389, %v3501
        %3503 = vmatmul.f32.gmra.mxu0 %v2635
        %v3504 = vpop.f32.mrf.mxu0
        %v3505 = vadd.f32 %v3392, %v3504
        %3506 = vdwg.mxu0
        %v3507 = vld [vmem:[%s1702] sm:$0xff]
        %v3508 = vld [vmem:[%s1702 + $0x8] sm:$0xff]
        %v3509 = vld [vmem:[%s1702 + $0x10] sm:$0xff]
        %v3510 = vld [vmem:[%s1702 + $0x18] sm:$0xff]
        %v3511 = vld [vmem:[%s1702 + $0x20] sm:$0xff]
        %v3512 = vld [vmem:[%s1702 + $0x28] sm:$0xff]
        %v3513 = vld [vmem:[%s1702 + $0x30] sm:$0xff]
        %v3514 = vld [vmem:[%s1702 + $0x38] sm:$0xff]
        %v3515 = vld [vmem:[%s1702 + $0x40] sm:$0xff]
        %v3516 = vld [vmem:[%s1702 + $0x48] sm:$0xff]
        %v3517 = vld [vmem:[%s1702 + $0x50] sm:$0xff]
        %v3518 = vld [vmem:[%s1702 + $0x58] sm:$0xff]
        %v3519 = vld [vmem:[%s1702 + $0x60] sm:$0xff]
        %v3520 = vld [vmem:[%s1702 + $0x68] sm:$0xff]
        %v3521 = vld [vmem:[%s1702 + $0x70] sm:$0xff]
        %v3522 = vld [vmem:[%s1702 + $0x78] sm:$0xff]
        %v3523 = vld [vmem:[%s1702 + $0x80] sm:$0xff]
        %v3524 = vld [vmem:[%s1702 + $0x88] sm:$0xff]
        %v3525 = vld [vmem:[%s1702 + $0x90] sm:$0xff]
        %v3526 = vld [vmem:[%s1702 + $0x98] sm:$0xff]
        %v3527 = vld [vmem:[%s1702 + $0xa0] sm:$0xff]
        %v3528 = vld [vmem:[%s1702 + $0xa8] sm:$0xff]
        %v3529 = vld [vmem:[%s1702 + $0xb0] sm:$0xff]
        %v3530 = vld [vmem:[%s1702 + $0xb8] sm:$0xff]
        %v3531 = vld [vmem:[%s1702 + $0xc0] sm:$0xff]
        %v3532 = vld [vmem:[%s1702 + $0xc8] sm:$0xff]
        %v3533 = vld [vmem:[%s1702 + $0xd0] sm:$0xff]
        %v3534 = vld [vmem:[%s1702 + $0xd8] sm:$0xff]
        %v3535 = vld [vmem:[%s1702 + $0xe0] sm:$0xff]
        %v3536 = vld [vmem:[%s1702 + $0xe8] sm:$0xff]
        %v3537 = vld [vmem:[%s1702 + $0xf0] sm:$0xff]
        %v3538 = vld [vmem:[%s1702 + $0xf8] sm:$0xff]
        %v3539 = vld [vmem:[%s1702 + $0x100] sm:$0xff]
        %v3540 = vld [vmem:[%s1702 + $0x108] sm:$0xff]
        %v3541 = vld [vmem:[%s1702 + $0x110] sm:$0xff]
        %v3542 = vld [vmem:[%s1702 + $0x118] sm:$0xff]
        %v3543 = vld [vmem:[%s1702 + $0x120] sm:$0xff]
        %v3544 = vld [vmem:[%s1702 + $0x128] sm:$0xff]
        %v3545 = vld [vmem:[%s1702 + $0x130] sm:$0xff]
        %v3546 = vld [vmem:[%s1702 + $0x138] sm:$0xff]
        %v3547 = vld [vmem:[%s1702 + $0x140] sm:$0xff]
        %v3548 = vld [vmem:[%s1702 + $0x148] sm:$0xff]
        %v3549 = vld [vmem:[%s1702 + $0x150] sm:$0xff]
        %v3550 = vld [vmem:[%s1702 + $0x158] sm:$0xff]
        %v3551 = vld [vmem:[%s1702 + $0x160] sm:$0xff]
        %v3552 = vld [vmem:[%s1702 + $0x168] sm:$0xff]
        %v3553 = vld [vmem:[%s1702 + $0x170] sm:$0xff]
        %v3554 = vld [vmem:[%s1702 + $0x178] sm:$0xff]
        %v3555 = vld [vmem:[%s1702 + $0x180] sm:$0xff]
        %v3556 = vld [vmem:[%s1702 + $0x188] sm:$0xff]
        %v3557 = vld [vmem:[%s1702 + $0x190] sm:$0xff]
        %v3558 = vld [vmem:[%s1702 + $0x198] sm:$0xff]
        %v3559 = vld [vmem:[%s1702 + $0x1a0] sm:$0xff]
        %v3560 = vld [vmem:[%s1702 + $0x1a8] sm:$0xff]
        %v3561 = vld [vmem:[%s1702 + $0x1b0] sm:$0xff]
        %v3562 = vld [vmem:[%s1702 + $0x1b8] sm:$0xff]
        %v3563 = vld [vmem:[%s1702 + $0x1c0] sm:$0xff]
        %v3564 = vld [vmem:[%s1702 + $0x1c8] sm:$0xff]
        %v3565 = vld [vmem:[%s1702 + $0x1d0] sm:$0xff]
        %v3566 = vld [vmem:[%s1702 + $0x1d8] sm:$0xff]
        %v3567 = vld [vmem:[%s1702 + $0x1e0] sm:$0xff]
        %v3568 = vld [vmem:[%s1702 + $0x1e8] sm:$0xff]
        %v3569 = vld [vmem:[%s1702 + $0x1f0] sm:$0xff]
        %v3570 = vld [vmem:[%s1702 + $0x1f8] sm:$0xff]
        %v3571 = vld [vmem:[%s1702 + $0x200] sm:$0xff]
        %v3572 = vld [vmem:[%s1702 + $0x208] sm:$0xff]
        %v3573 = vld [vmem:[%s1702 + $0x210] sm:$0xff]
        %v3574 = vld [vmem:[%s1702 + $0x218] sm:$0xff]
        %v3575 = vld [vmem:[%s1702 + $0x220] sm:$0xff]
        %v3576 = vld [vmem:[%s1702 + $0x228] sm:$0xff]
        %v3577 = vld [vmem:[%s1702 + $0x230] sm:$0xff]
        %v3578 = vld [vmem:[%s1702 + $0x238] sm:$0xff]
        %v3579 = vld [vmem:[%s1702 + $0x240] sm:$0xff]
        %v3580 = vld [vmem:[%s1702 + $0x248] sm:$0xff]
        %v3581 = vld [vmem:[%s1702 + $0x250] sm:$0xff]
        %v3582 = vld [vmem:[%s1702 + $0x258] sm:$0xff]
        %v3583 = vld [vmem:[%s1702 + $0x260] sm:$0xff]
        %v3584 = vld [vmem:[%s1702 + $0x268] sm:$0xff]
        %v3585 = vld [vmem:[%s1702 + $0x270] sm:$0xff]
        %v3586 = vld [vmem:[%s1702 + $0x278] sm:$0xff]
        %v3587 = vld [vmem:[%s1702 + $0x280] sm:$0xff]
        %v3588 = vld [vmem:[%s1702 + $0x288] sm:$0xff]
        %v3589 = vld [vmem:[%s1702 + $0x290] sm:$0xff]
        %v3590 = vld [vmem:[%s1702 + $0x298] sm:$0xff]
        %v3591 = vld [vmem:[%s1702 + $0x2a0] sm:$0xff]
        %v3592 = vld [vmem:[%s1702 + $0x2a8] sm:$0xff]
        %v3593 = vld [vmem:[%s1702 + $0x2b0] sm:$0xff]
        %v3594 = vld [vmem:[%s1702 + $0x2b8] sm:$0xff]
        %v3595 = vld [vmem:[%s1702 + $0x2c0] sm:$0xff]
        %v3596 = vld [vmem:[%s1702 + $0x2c8] sm:$0xff]
        %v3597 = vld [vmem:[%s1702 + $0x2d0] sm:$0xff]
        %v3598 = vld [vmem:[%s1702 + $0x2d8] sm:$0xff]
        %v3599 = vld [vmem:[%s1702 + $0x2e0] sm:$0xff]
        %v3600 = vld [vmem:[%s1702 + $0x2e8] sm:$0xff]
        %v3601 = vld [vmem:[%s1702 + $0x2f0] sm:$0xff]
        %v3602 = vld [vmem:[%s1702 + $0x2f8] sm:$0xff]
        %s3603 = scalar_lea.vmem %s296, 768
        %v3604 = vld [vmem:[%s3603] sm:$0xff]
        %v3605 = vld [vmem:[%s3603 + $0x8] sm:$0xff]
        %v3606 = vld [vmem:[%s3603 + $0x10] sm:$0xff]
        %v3607 = vld [vmem:[%s3603 + $0x18] sm:$0xff]
        %v3608 = vld [vmem:[%s3603 + $0x20] sm:$0xff]
        %v3609 = vld [vmem:[%s3603 + $0x28] sm:$0xff]
        %v3610 = vld [vmem:[%s3603 + $0x30] sm:$0xff]
        %v3611 = vld [vmem:[%s3603 + $0x38] sm:$0xff]
        %v3612 = vld [vmem:[%s3603 + $0x40] sm:$0xff]
        %v3613 = vld [vmem:[%s3603 + $0x48] sm:$0xff]
        %v3614 = vld [vmem:[%s3603 + $0x50] sm:$0xff]
        %v3615 = vld [vmem:[%s3603 + $0x58] sm:$0xff]
        %v3616 = vld [vmem:[%s3603 + $0x60] sm:$0xff]
        %v3617 = vld [vmem:[%s3603 + $0x68] sm:$0xff]
        %v3618 = vld [vmem:[%s3603 + $0x70] sm:$0xff]
        %v3619 = vld [vmem:[%s3603 + $0x78] sm:$0xff]
        %v3620 = vld [vmem:[%s3603 + $0x80] sm:$0xff]
        %v3621 = vld [vmem:[%s3603 + $0x88] sm:$0xff]
        %v3622 = vld [vmem:[%s3603 + $0x90] sm:$0xff]
        %v3623 = vld [vmem:[%s3603 + $0x98] sm:$0xff]
        %v3624 = vld [vmem:[%s3603 + $0xa0] sm:$0xff]
        %v3625 = vld [vmem:[%s3603 + $0xa8] sm:$0xff]
        %v3626 = vld [vmem:[%s3603 + $0xb0] sm:$0xff]
        %v3627 = vld [vmem:[%s3603 + $0xb8] sm:$0xff]
        %v3628 = vld [vmem:[%s3603 + $0xc0] sm:$0xff]
        %v3629 = vld [vmem:[%s3603 + $0xc8] sm:$0xff]
        %v3630 = vld [vmem:[%s3603 + $0xd0] sm:$0xff]
        %v3631 = vld [vmem:[%s3603 + $0xd8] sm:$0xff]
        %v3632 = vld [vmem:[%s3603 + $0xe0] sm:$0xff]
        %v3633 = vld [vmem:[%s3603 + $0xe8] sm:$0xff]
        %v3634 = vld [vmem:[%s3603 + $0xf0] sm:$0xff]
        %v3635 = vld [vmem:[%s3603 + $0xf8] sm:$0xff]
        %v3636 = vld [vmem:[%s3603 + $0x100] sm:$0xff]
        %v3637 = vld [vmem:[%s3603 + $0x108] sm:$0xff]
        %v3638 = vld [vmem:[%s3603 + $0x110] sm:$0xff]
        %v3639 = vld [vmem:[%s3603 + $0x118] sm:$0xff]
        %v3640 = vld [vmem:[%s3603 + $0x120] sm:$0xff]
        %v3641 = vld [vmem:[%s3603 + $0x128] sm:$0xff]
        %v3642 = vld [vmem:[%s3603 + $0x130] sm:$0xff]
        %v3643 = vld [vmem:[%s3603 + $0x138] sm:$0xff]
        %v3644 = vld [vmem:[%s3603 + $0x140] sm:$0xff]
        %v3645 = vld [vmem:[%s3603 + $0x148] sm:$0xff]
        %v3646 = vld [vmem:[%s3603 + $0x150] sm:$0xff]
        %v3647 = vld [vmem:[%s3603 + $0x158] sm:$0xff]
        %v3648 = vld [vmem:[%s3603 + $0x160] sm:$0xff]
        %v3649 = vld [vmem:[%s3603 + $0x168] sm:$0xff]
        %v3650 = vld [vmem:[%s3603 + $0x170] sm:$0xff]
        %v3651 = vld [vmem:[%s3603 + $0x178] sm:$0xff]
        %3652 = vmatpush.msra.mxu0 %v3619
        %3653 = vmatpush.msra.mxu0 %v3618
        %3654 = vmatpush.msra.mxu0 %v3617
        %3655 = vmatpush.msra.mxu0 %v3616
        %3656 = vmatpush.msra.mxu0 %v3615
        %3657 = vmatpush.msra.mxu0 %v3614
        %3658 = vmatpush.msra.mxu0 %v3613
        %3659 = vmatpush.msra.mxu0 %v3612
        %3660 = vmatpush.msra.mxu0 %v3611
        %3661 = vmatpush.msra.mxu0 %v3610
        %3662 = vmatpush.msra.mxu0 %v3609
        %3663 = vmatpush.msra.mxu0 %v3608
        %3664 = vmatpush.msra.mxu0 %v3607
        %3665 = vmatpush.msra.mxu0 %v3606
        %3666 = vmatpush.msra.mxu0 %v3605
        %3667 = vmatpush.msra.mxu0 %v3604
        %3668 = vmatmul.f32.gmra.mxu0 %v3507
        %v3669 = vpop.f32.mrf.mxu0
        %v3670 = vadd.f32 0.0, %v3669
        %3671 = vmatmul.f32.gmra.mxu0 %v3510
        %v3672 = vpop.f32.mrf.mxu0
        %v3673 = vadd.f32 0.0, %v3672
        %3674 = vmatmul.f32.gmra.mxu0 %v3513
        %v3675 = vpop.f32.mrf.mxu0
        %v3676 = vadd.f32 0.0, %v3675
        %3677 = vmatmul.f32.gmra.mxu0 %v3516
        %v3678 = vpop.f32.mrf.mxu0
        %v3679 = vadd.f32 0.0, %v3678
        %3680 = vmatmul.f32.gmra.mxu0 %v3519
        %v3681 = vpop.f32.mrf.mxu0
        %v3682 = vadd.f32 0.0, %v3681
        %3683 = vmatmul.f32.gmra.mxu0 %v3522
        %v3684 = vpop.f32.mrf.mxu0
        %v3685 = vadd.f32 0.0, %v3684
        %3686 = vmatmul.f32.gmra.mxu0 %v3525
        %v3687 = vpop.f32.mrf.mxu0
        %v3688 = vadd.f32 0.0, %v3687
        %3689 = vmatmul.f32.gmra.mxu0 %v3528
        %v3690 = vpop.f32.mrf.mxu0
        %v3691 = vadd.f32 0.0, %v3690
        %3692 = vmatmul.f32.gmra.mxu0 %v3531
        %v3693 = vpop.f32.mrf.mxu0
        %v3694 = vadd.f32 0.0, %v3693
        %3695 = vmatmul.f32.gmra.mxu0 %v3534
        %v3696 = vpop.f32.mrf.mxu0
        %v3697 = vadd.f32 0.0, %v3696
        %3698 = vmatmul.f32.gmra.mxu0 %v3537
        %v3699 = vpop.f32.mrf.mxu0
        %v3700 = vadd.f32 0.0, %v3699
        %3701 = vmatmul.f32.gmra.mxu0 %v3540
        %v3702 = vpop.f32.mrf.mxu0
        %v3703 = vadd.f32 0.0, %v3702
        %3704 = vmatmul.f32.gmra.mxu0 %v3543
        %v3705 = vpop.f32.mrf.mxu0
        %v3706 = vadd.f32 0.0, %v3705
        %3707 = vmatmul.f32.gmra.mxu0 %v3546
        %v3708 = vpop.f32.mrf.mxu0
        %v3709 = vadd.f32 0.0, %v3708
        %3710 = vmatmul.f32.gmra.mxu0 %v3549
        %v3711 = vpop.f32.mrf.mxu0
        %v3712 = vadd.f32 0.0, %v3711
        %3713 = vmatmul.f32.gmra.mxu0 %v3552
        %v3714 = vpop.f32.mrf.mxu0
        %v3715 = vadd.f32 0.0, %v3714
        %3716 = vmatmul.f32.gmra.mxu0 %v3555
        %v3717 = vpop.f32.mrf.mxu0
        %v3718 = vadd.f32 0.0, %v3717
        %3719 = vmatmul.f32.gmra.mxu0 %v3558
        %v3720 = vpop.f32.mrf.mxu0
        %v3721 = vadd.f32 0.0, %v3720
        %3722 = vmatmul.f32.gmra.mxu0 %v3561
        %v3723 = vpop.f32.mrf.mxu0
        %v3724 = vadd.f32 0.0, %v3723
        %3725 = vmatmul.f32.gmra.mxu0 %v3564
        %v3726 = vpop.f32.mrf.mxu0
        %v3727 = vadd.f32 0.0, %v3726
        %3728 = vmatmul.f32.gmra.mxu0 %v3567
        %v3729 = vpop.f32.mrf.mxu0
        %v3730 = vadd.f32 0.0, %v3729
        %3731 = vmatmul.f32.gmra.mxu0 %v3570
        %v3732 = vpop.f32.mrf.mxu0
        %v3733 = vadd.f32 0.0, %v3732
        %3734 = vmatmul.f32.gmra.mxu0 %v3573
        %v3735 = vpop.f32.mrf.mxu0
        %v3736 = vadd.f32 0.0, %v3735
        %3737 = vmatmul.f32.gmra.mxu0 %v3576
        %v3738 = vpop.f32.mrf.mxu0
        %v3739 = vadd.f32 0.0, %v3738
        %3740 = vmatmul.f32.gmra.mxu0 %v3579
        %v3741 = vpop.f32.mrf.mxu0
        %v3742 = vadd.f32 0.0, %v3741
        %3743 = vmatmul.f32.gmra.mxu0 %v3582
        %v3744 = vpop.f32.mrf.mxu0
        %v3745 = vadd.f32 0.0, %v3744
        %3746 = vmatmul.f32.gmra.mxu0 %v3585
        %v3747 = vpop.f32.mrf.mxu0
        %v3748 = vadd.f32 0.0, %v3747
        %3749 = vmatmul.f32.gmra.mxu0 %v3588
        %v3750 = vpop.f32.mrf.mxu0
        %v3751 = vadd.f32 0.0, %v3750
        %3752 = vmatmul.f32.gmra.mxu0 %v3591
        %v3753 = vpop.f32.mrf.mxu0
        %v3754 = vadd.f32 0.0, %v3753
        %3755 = vmatmul.f32.gmra.mxu0 %v3594
        %v3756 = vpop.f32.mrf.mxu0
        %v3757 = vadd.f32 0.0, %v3756
        %3758 = vmatmul.f32.gmra.mxu0 %v3597
        %v3759 = vpop.f32.mrf.mxu0
        %v3760 = vadd.f32 0.0, %v3759
        %3761 = vmatmul.f32.gmra.mxu0 %v3600
        %v3762 = vpop.f32.mrf.mxu0
        %v3763 = vadd.f32 0.0, %v3762
        %3764 = vdwg.mxu0
        %3765 = vmatpush.msra.mxu0 %v3635
        %3766 = vmatpush.msra.mxu0 %v3634
        %3767 = vmatpush.msra.mxu0 %v3633
        %3768 = vmatpush.msra.mxu0 %v3632
        %3769 = vmatpush.msra.mxu0 %v3631
        %3770 = vmatpush.msra.mxu0 %v3630
        %3771 = vmatpush.msra.mxu0 %v3629
        %3772 = vmatpush.msra.mxu0 %v3628
        %3773 = vmatpush.msra.mxu0 %v3627
        %3774 = vmatpush.msra.mxu0 %v3626
        %3775 = vmatpush.msra.mxu0 %v3625
        %3776 = vmatpush.msra.mxu0 %v3624
        %3777 = vmatpush.msra.mxu0 %v3623
        %3778 = vmatpush.msra.mxu0 %v3622
        %3779 = vmatpush.msra.mxu0 %v3621
        %3780 = vmatpush.msra.mxu0 %v3620
        %3781 = vmatmul.f32.gmra.mxu0 %v3508
        %v3782 = vpop.f32.mrf.mxu0
        %v3783 = vadd.f32 %v3670, %v3782
        %3784 = vmatmul.f32.gmra.mxu0 %v3511
        %v3785 = vpop.f32.mrf.mxu0
        %v3786 = vadd.f32 %v3673, %v3785
        %3787 = vmatmul.f32.gmra.mxu0 %v3514
        %v3788 = vpop.f32.mrf.mxu0
        %v3789 = vadd.f32 %v3676, %v3788
        %3790 = vmatmul.f32.gmra.mxu0 %v3517
        %v3791 = vpop.f32.mrf.mxu0
        %v3792 = vadd.f32 %v3679, %v3791
        %3793 = vmatmul.f32.gmra.mxu0 %v3520
        %v3794 = vpop.f32.mrf.mxu0
        %v3795 = vadd.f32 %v3682, %v3794
        %3796 = vmatmul.f32.gmra.mxu0 %v3523
        %v3797 = vpop.f32.mrf.mxu0
        %v3798 = vadd.f32 %v3685, %v3797
        %3799 = vmatmul.f32.gmra.mxu0 %v3526
        %v3800 = vpop.f32.mrf.mxu0
        %v3801 = vadd.f32 %v3688, %v3800
        %3802 = vmatmul.f32.gmra.mxu0 %v3529
        %v3803 = vpop.f32.mrf.mxu0
        %v3804 = vadd.f32 %v3691, %v3803
        %3805 = vmatmul.f32.gmra.mxu0 %v3532
        %v3806 = vpop.f32.mrf.mxu0
        %v3807 = vadd.f32 %v3694, %v3806
        %3808 = vmatmul.f32.gmra.mxu0 %v3535
        %v3809 = vpop.f32.mrf.mxu0
        %v3810 = vadd.f32 %v3697, %v3809
        %3811 = vmatmul.f32.gmra.mxu0 %v3538
        %v3812 = vpop.f32.mrf.mxu0
        %v3813 = vadd.f32 %v3700, %v3812
        %3814 = vmatmul.f32.gmra.mxu0 %v3541
        %v3815 = vpop.f32.mrf.mxu0
        %v3816 = vadd.f32 %v3703, %v3815
        %3817 = vmatmul.f32.gmra.mxu0 %v3544
        %v3818 = vpop.f32.mrf.mxu0
        %v3819 = vadd.f32 %v3706, %v3818
        %3820 = vmatmul.f32.gmra.mxu0 %v3547
        %v3821 = vpop.f32.mrf.mxu0
        %v3822 = vadd.f32 %v3709, %v3821
        %3823 = vmatmul.f32.gmra.mxu0 %v3550
        %v3824 = vpop.f32.mrf.mxu0
        %v3825 = vadd.f32 %v3712, %v3824
        %3826 = vmatmul.f32.gmra.mxu0 %v3553
        %v3827 = vpop.f32.mrf.mxu0
        %v3828 = vadd.f32 %v3715, %v3827
        %3829 = vmatmul.f32.gmra.mxu0 %v3556
        %v3830 = vpop.f32.mrf.mxu0
        %v3831 = vadd.f32 %v3718, %v3830
        %3832 = vmatmul.f32.gmra.mxu0 %v3559
        %v3833 = vpop.f32.mrf.mxu0
        %v3834 = vadd.f32 %v3721, %v3833
        %3835 = vmatmul.f32.gmra.mxu0 %v3562
        %v3836 = vpop.f32.mrf.mxu0
        %v3837 = vadd.f32 %v3724, %v3836
        %3838 = vmatmul.f32.gmra.mxu0 %v3565
        %v3839 = vpop.f32.mrf.mxu0
        %v3840 = vadd.f32 %v3727, %v3839
        %3841 = vmatmul.f32.gmra.mxu0 %v3568
        %v3842 = vpop.f32.mrf.mxu0
        %v3843 = vadd.f32 %v3730, %v3842
        %3844 = vmatmul.f32.gmra.mxu0 %v3571
        %v3845 = vpop.f32.mrf.mxu0
        %v3846 = vadd.f32 %v3733, %v3845
        %3847 = vmatmul.f32.gmra.mxu0 %v3574
        %v3848 = vpop.f32.mrf.mxu0
        %v3849 = vadd.f32 %v3736, %v3848
        %3850 = vmatmul.f32.gmra.mxu0 %v3577
        %v3851 = vpop.f32.mrf.mxu0
        %v3852 = vadd.f32 %v3739, %v3851
        %3853 = vmatmul.f32.gmra.mxu0 %v3580
        %v3854 = vpop.f32.mrf.mxu0
        %v3855 = vadd.f32 %v3742, %v3854
        %3856 = vmatmul.f32.gmra.mxu0 %v3583
        %v3857 = vpop.f32.mrf.mxu0
        %v3858 = vadd.f32 %v3745, %v3857
        %3859 = vmatmul.f32.gmra.mxu0 %v3586
        %v3860 = vpop.f32.mrf.mxu0
        %v3861 = vadd.f32 %v3748, %v3860
        %3862 = vmatmul.f32.gmra.mxu0 %v3589
        %v3863 = vpop.f32.mrf.mxu0
        %v3864 = vadd.f32 %v3751, %v3863
        %3865 = vmatmul.f32.gmra.mxu0 %v3592
        %v3866 = vpop.f32.mrf.mxu0
        %v3867 = vadd.f32 %v3754, %v3866
        %3868 = vmatmul.f32.gmra.mxu0 %v3595
        %v3869 = vpop.f32.mrf.mxu0
        %v3870 = vadd.f32 %v3757, %v3869
        %3871 = vmatmul.f32.gmra.mxu0 %v3598
        %v3872 = vpop.f32.mrf.mxu0
        %v3873 = vadd.f32 %v3760, %v3872
        %3874 = vmatmul.f32.gmra.mxu0 %v3601
        %v3875 = vpop.f32.mrf.mxu0
        %v3876 = vadd.f32 %v3763, %v3875
        %3877 = vdwg.mxu0
        %3878 = vmatpush.msra.mxu0 %v3651
        %3879 = vmatpush.msra.mxu0 %v3650
        %3880 = vmatpush.msra.mxu0 %v3649
        %3881 = vmatpush.msra.mxu0 %v3648
        %3882 = vmatpush.msra.mxu0 %v3647
        %3883 = vmatpush.msra.mxu0 %v3646
        %3884 = vmatpush.msra.mxu0 %v3645
        %3885 = vmatpush.msra.mxu0 %v3644
        %3886 = vmatpush.msra.mxu0 %v3643
        %3887 = vmatpush.msra.mxu0 %v3642
        %3888 = vmatpush.msra.mxu0 %v3641
        %3889 = vmatpush.msra.mxu0 %v3640
        %3890 = vmatpush.msra.mxu0 %v3639
        %3891 = vmatpush.msra.mxu0 %v3638
        %3892 = vmatpush.msra.mxu0 %v3637
        %3893 = vmatpush.msra.mxu0 %v3636
        %3894 = vmatmul.f32.gmra.mxu0 %v3509
        %v3895 = vpop.f32.mrf.mxu0
        %v3896 = vadd.f32 %v3783, %v3895
        %3897 = vmatmul.f32.gmra.mxu0 %v3512
        %v3898 = vpop.f32.mrf.mxu0
        %v3899 = vadd.f32 %v3786, %v3898
        %3900 = vmatmul.f32.gmra.mxu0 %v3515
        %v3901 = vpop.f32.mrf.mxu0
        %v3902 = vadd.f32 %v3789, %v3901
        %3903 = vmatmul.f32.gmra.mxu0 %v3518
        %v3904 = vpop.f32.mrf.mxu0
        %v3905 = vadd.f32 %v3792, %v3904
        %3906 = vmatmul.f32.gmra.mxu0 %v3521
        %v3907 = vpop.f32.mrf.mxu0
        %v3908 = vadd.f32 %v3795, %v3907
        %3909 = vmatmul.f32.gmra.mxu0 %v3524
        %v3910 = vpop.f32.mrf.mxu0
        %v3911 = vadd.f32 %v3798, %v3910
        %3912 = vmatmul.f32.gmra.mxu0 %v3527
        %v3913 = vpop.f32.mrf.mxu0
        %v3914 = vadd.f32 %v3801, %v3913
        %3915 = vmatmul.f32.gmra.mxu0 %v3530
        %v3916 = vpop.f32.mrf.mxu0
        %v3917 = vadd.f32 %v3804, %v3916
        %3918 = vmatmul.f32.gmra.mxu0 %v3533
        %v3919 = vpop.f32.mrf.mxu0
        %v3920 = vadd.f32 %v3807, %v3919
        %3921 = vmatmul.f32.gmra.mxu0 %v3536
        %v3922 = vpop.f32.mrf.mxu0
        %v3923 = vadd.f32 %v3810, %v3922
        %3924 = vmatmul.f32.gmra.mxu0 %v3539
        %v3925 = vpop.f32.mrf.mxu0
        %v3926 = vadd.f32 %v3813, %v3925
        %3927 = vmatmul.f32.gmra.mxu0 %v3542
        %v3928 = vpop.f32.mrf.mxu0
        %v3929 = vadd.f32 %v3816, %v3928
        %3930 = vmatmul.f32.gmra.mxu0 %v3545
        %v3931 = vpop.f32.mrf.mxu0
        %v3932 = vadd.f32 %v3819, %v3931
        %3933 = vmatmul.f32.gmra.mxu0 %v3548
        %v3934 = vpop.f32.mrf.mxu0
        %v3935 = vadd.f32 %v3822, %v3934
        %3936 = vmatmul.f32.gmra.mxu0 %v3551
        %v3937 = vpop.f32.mrf.mxu0
        %v3938 = vadd.f32 %v3825, %v3937
        %3939 = vmatmul.f32.gmra.mxu0 %v3554
        %v3940 = vpop.f32.mrf.mxu0
        %v3941 = vadd.f32 %v3828, %v3940
        %3942 = vmatmul.f32.gmra.mxu0 %v3557
        %v3943 = vpop.f32.mrf.mxu0
        %v3944 = vadd.f32 %v3831, %v3943
        %3945 = vmatmul.f32.gmra.mxu0 %v3560
        %v3946 = vpop.f32.mrf.mxu0
        %v3947 = vadd.f32 %v3834, %v3946
        %3948 = vmatmul.f32.gmra.mxu0 %v3563
        %v3949 = vpop.f32.mrf.mxu0
        %v3950 = vadd.f32 %v3837, %v3949
        %3951 = vmatmul.f32.gmra.mxu0 %v3566
        %v3952 = vpop.f32.mrf.mxu0
        %v3953 = vadd.f32 %v3840, %v3952
        %3954 = vmatmul.f32.gmra.mxu0 %v3569
        %v3955 = vpop.f32.mrf.mxu0
        %v3956 = vadd.f32 %v3843, %v3955
        %3957 = vmatmul.f32.gmra.mxu0 %v3572
        %v3958 = vpop.f32.mrf.mxu0
        %v3959 = vadd.f32 %v3846, %v3958
        %3960 = vmatmul.f32.gmra.mxu0 %v3575
        %v3961 = vpop.f32.mrf.mxu0
        %v3962 = vadd.f32 %v3849, %v3961
        %3963 = vmatmul.f32.gmra.mxu0 %v3578
        %v3964 = vpop.f32.mrf.mxu0
        %v3965 = vadd.f32 %v3852, %v3964
        %3966 = vmatmul.f32.gmra.mxu0 %v3581
        %v3967 = vpop.f32.mrf.mxu0
        %v3968 = vadd.f32 %v3855, %v3967
        %3969 = vmatmul.f32.gmra.mxu0 %v3584
        %v3970 = vpop.f32.mrf.mxu0
        %v3971 = vadd.f32 %v3858, %v3970
        %3972 = vmatmul.f32.gmra.mxu0 %v3587
        %v3973 = vpop.f32.mrf.mxu0
        %v3974 = vadd.f32 %v3861, %v3973
        %3975 = vmatmul.f32.gmra.mxu0 %v3590
        %v3976 = vpop.f32.mrf.mxu0
        %v3977 = vadd.f32 %v3864, %v3976
        %3978 = vmatmul.f32.gmra.mxu0 %v3593
        %v3979 = vpop.f32.mrf.mxu0
        %v3980 = vadd.f32 %v3867, %v3979
        %3981 = vmatmul.f32.gmra.mxu0 %v3596
        %v3982 = vpop.f32.mrf.mxu0
        %v3983 = vadd.f32 %v3870, %v3982
        %3984 = vmatmul.f32.gmra.mxu0 %v3599
        %v3985 = vpop.f32.mrf.mxu0
        %v3986 = vadd.f32 %v3873, %v3985
        %3987 = vmatmul.f32.gmra.mxu0 %v3602
        %v3988 = vpop.f32.mrf.mxu0
        %v3989 = vadd.f32 %v3876, %v3988
        %3990 = vdwg.mxu0
        %v3991 = vadd.f32 %v3412, %v3896
        %v3992 = vadd.f32 %v3415, %v3899
        %v3993 = vadd.f32 %v3418, %v3902
        %v3994 = vadd.f32 %v3421, %v3905
        %v3995 = vadd.f32 %v3424, %v3908
        %v3996 = vadd.f32 %v3427, %v3911
        %v3997 = vadd.f32 %v3430, %v3914
        %v3998 = vadd.f32 %v3433, %v3917
        %v3999 = vadd.f32 %v3436, %v3920
        %v4000 = vadd.f32 %v3439, %v3923
        %v4001 = vadd.f32 %v3442, %v3926
        %v4002 = vadd.f32 %v3445, %v3929
        %v4003 = vadd.f32 %v3448, %v3932
        %v4004 = vadd.f32 %v3451, %v3935
        %v4005 = vadd.f32 %v3454, %v3938
        %v4006 = vadd.f32 %v3457, %v3941
        %v4007 = vadd.f32 %v3460, %v3944
        %v4008 = vadd.f32 %v3463, %v3947
        %v4009 = vadd.f32 %v3466, %v3950
        %v4010 = vadd.f32 %v3469, %v3953
        %v4011 = vadd.f32 %v3472, %v3956
        %v4012 = vadd.f32 %v3475, %v3959
        %v4013 = vadd.f32 %v3478, %v3962
        %v4014 = vadd.f32 %v3481, %v3965
        %v4015 = vadd.f32 %v3484, %v3968
        %v4016 = vadd.f32 %v3487, %v3971
        %v4017 = vadd.f32 %v3490, %v3974
        %v4018 = vadd.f32 %v3493, %v3977
        %v4019 = vadd.f32 %v3496, %v3980
        %v4020 = vadd.f32 %v3499, %v3983
        %v4021 = vadd.f32 %v3502, %v3986
        %v4022 = vadd.f32 %v3505, %v3989
        %v4023 = vld [vmem:[%s299] sm:$0x1]
        %v4025 = vperm.slane %v4023, 0
        %v4027 = vadd.f32 %v3991, %v4025
        %v4028 = vadd.f32 %v3992, %v4025
        %v4029 = vadd.f32 %v3993, %v4025
        %v4030 = vadd.f32 %v3994, %v4025
        %v4031 = vadd.f32 %v3995, %v4025
        %v4032 = vadd.f32 %v3996, %v4025
        %v4033 = vadd.f32 %v3997, %v4025
        %v4034 = vadd.f32 %v3998, %v4025
        %v4035 = vadd.f32 %v3999, %v4025
        %v4036 = vadd.f32 %v4000, %v4025
        %v4037 = vadd.f32 %v4001, %v4025
        %v4038 = vadd.f32 %v4002, %v4025
        %v4039 = vadd.f32 %v4003, %v4025
        %v4040 = vadd.f32 %v4004, %v4025
        %v4041 = vadd.f32 %v4005, %v4025
        %v4042 = vadd.f32 %v4006, %v4025
        %v4043 = vadd.f32 %v4007, %v4025
        %v4044 = vadd.f32 %v4008, %v4025
        %v4045 = vadd.f32 %v4009, %v4025
        %v4046 = vadd.f32 %v4010, %v4025
        %v4047 = vadd.f32 %v4011, %v4025
        %v4048 = vadd.f32 %v4012, %v4025
        %v4049 = vadd.f32 %v4013, %v4025
        %v4050 = vadd.f32 %v4014, %v4025
        %v4051 = vadd.f32 %v4015, %v4025
        %v4052 = vadd.f32 %v4016, %v4025
        %v4053 = vadd.f32 %v4017, %v4025
        %v4054 = vadd.f32 %v4018, %v4025
        %v4055 = vadd.f32 %v4019, %v4025
        %v4056 = vadd.f32 %v4020, %v4025
        %v4057 = vadd.f32 %v4021, %v4025
        %v4058 = vadd.f32 %v4022, %v4025
        %s4059 = scalar_lea.vmem [#allocation2], 32
        %4060 = vst [vmem:[%s4059 + $0x1] sm:$0xff] %v4027
        %4061 = vst [vmem:[%s4059 + $0x9] sm:$0xff] %v4028
        %4062 = vst [vmem:[%s4059 + $0x21] sm:$0xff] %v4029
        %4063 = vst [vmem:[%s4059 + $0x29] sm:$0xff] %v4030
        %4064 = vst [vmem:[%s4059 + $0x41] sm:$0xff] %v4031
        %4065 = vst [vmem:[%s4059 + $0x49] sm:$0xff] %v4032
        %4066 = vst [vmem:[%s4059 + $0x61] sm:$0xff] %v4033
        %4067 = vst [vmem:[%s4059 + $0x69] sm:$0xff] %v4034
        %4068 = vst [vmem:[%s4059 + $0x81] sm:$0xff] %v4035
        %4069 = vst [vmem:[%s4059 + $0x89] sm:$0xff] %v4036
        %4070 = vst [vmem:[%s4059 + $0xa1] sm:$0xff] %v4037
        %4071 = vst [vmem:[%s4059 + $0xa9] sm:$0xff] %v4038
        %4072 = vst [vmem:[%s4059 + $0xc1] sm:$0xff] %v4039
        %4073 = vst [vmem:[%s4059 + $0xc9] sm:$0xff] %v4040
        %4074 = vst [vmem:[%s4059 + $0xe1] sm:$0xff] %v4041
        %4075 = vst [vmem:[%s4059 + $0xe9] sm:$0xff] %v4042
        %4076 = vst [vmem:[%s4059 + $0x101] sm:$0xff] %v4043
        %4077 = vst [vmem:[%s4059 + $0x109] sm:$0xff] %v4044
        %4078 = vst [vmem:[%s4059 + $0x121] sm:$0xff] %v4045
        %4079 = vst [vmem:[%s4059 + $0x129] sm:$0xff] %v4046
        %4080 = vst [vmem:[%s4059 + $0x141] sm:$0xff] %v4047
        %4081 = vst [vmem:[%s4059 + $0x149] sm:$0xff] %v4048
        %4082 = vst [vmem:[%s4059 + $0x161] sm:$0xff] %v4049
        %4083 = vst [vmem:[%s4059 + $0x169] sm:$0xff] %v4050
        %4084 = vst [vmem:[%s4059 + $0x181] sm:$0xff] %v4051
        %4085 = vst [vmem:[%s4059 + $0x189] sm:$0xff] %v4052
        %4086 = vst [vmem:[%s4059 + $0x1a1] sm:$0xff] %v4053
        %4087 = vst [vmem:[%s4059 + $0x1a9] sm:$0xff] %v4054
        %4088 = vst [vmem:[%s4059 + $0x1c1] sm:$0xff] %v4055
        %4089 = vst [vmem:[%s4059 + $0x1c9] sm:$0xff] %v4056
        %4090 = vst [vmem:[%s4059 + $0x1e1] sm:$0xff] %v4057
        %4091 = vst [vmem:[%s4059 + $0x1e9] sm:$0xff] %v4058
      $region48: #{aag_forward.1} parent=39 // pred_fallthru
        _
      %p4092 = scmp.eq.s32.totalorder %s21, 2
      // Predicated region
      $region49: #{aag_forward.1} parent=39 // pred_check
        %p4093 = pneg %p4092
      $region50: #{aag_forward.1} parent=39 // pred_check_branch
        %4095 = sbr.rel (%p4093) target = $region52
      $region51: #{aag_forward.1} parent=39 // pred_region
        %v4096 = vld [vmem:[%s283] sm:$0xff]
        %v4097 = vld [vmem:[%s283 + $0x8] sm:$0xff]
        %v4098 = vld [vmem:[%s283 + $0x10] sm:$0xff]
        %v4099 = vld [vmem:[%s283 + $0x18] sm:$0xff]
        %v4100 = vld [vmem:[%s283 + $0x20] sm:$0xff]
        %v4101 = vld [vmem:[%s283 + $0x28] sm:$0xff]
        %v4102 = vld [vmem:[%s283 + $0x30] sm:$0xff]
        %v4103 = vld [vmem:[%s283 + $0x38] sm:$0xff]
        %v4104 = vld [vmem:[%s283 + $0x40] sm:$0xff]
        %v4105 = vld [vmem:[%s283 + $0x48] sm:$0xff]
        %v4106 = vld [vmem:[%s283 + $0x50] sm:$0xff]
        %v4107 = vld [vmem:[%s283 + $0x58] sm:$0xff]
        %v4108 = vld [vmem:[%s283 + $0x60] sm:$0xff]
        %v4109 = vld [vmem:[%s283 + $0x68] sm:$0xff]
        %v4110 = vld [vmem:[%s283 + $0x70] sm:$0xff]
        %v4111 = vld [vmem:[%s283 + $0x78] sm:$0xff]
        %v4112 = vld [vmem:[%s283 + $0x80] sm:$0xff]
        %v4113 = vld [vmem:[%s283 + $0x88] sm:$0xff]
        %v4114 = vld [vmem:[%s283 + $0x90] sm:$0xff]
        %v4115 = vld [vmem:[%s283 + $0x98] sm:$0xff]
        %v4116 = vld [vmem:[%s283 + $0xa0] sm:$0xff]
        %v4117 = vld [vmem:[%s283 + $0xa8] sm:$0xff]
        %v4118 = vld [vmem:[%s283 + $0xb0] sm:$0xff]
        %v4119 = vld [vmem:[%s283 + $0xb8] sm:$0xff]
        %v4120 = vld [vmem:[%s283 + $0xc0] sm:$0xff]
        %v4121 = vld [vmem:[%s283 + $0xc8] sm:$0xff]
        %v4122 = vld [vmem:[%s283 + $0xd0] sm:$0xff]
        %v4123 = vld [vmem:[%s283 + $0xd8] sm:$0xff]
        %v4124 = vld [vmem:[%s283 + $0xe0] sm:$0xff]
        %v4125 = vld [vmem:[%s283 + $0xe8] sm:$0xff]
        %v4126 = vld [vmem:[%s283 + $0xf0] sm:$0xff]
        %v4127 = vld [vmem:[%s283 + $0xf8] sm:$0xff]
        %v4128 = vadd.f32 %v2223, %v4096
        %v4129 = vadd.f32 %v2224, %v4097
        %v4130 = vadd.f32 %v2225, %v4098
        %v4131 = vadd.f32 %v2226, %v4099
        %v4132 = vadd.f32 %v2227, %v4100
        %v4133 = vadd.f32 %v2228, %v4101
        %v4134 = vadd.f32 %v2229, %v4102
        %v4135 = vadd.f32 %v2230, %v4103
        %v4136 = vadd.f32 %v2231, %v4104
        %v4137 = vadd.f32 %v2232, %v4105
        %v4138 = vadd.f32 %v2233, %v4106
        %v4139 = vadd.f32 %v2234, %v4107
        %v4140 = vadd.f32 %v2235, %v4108
        %v4141 = vadd.f32 %v2236, %v4109
        %v4142 = vadd.f32 %v2237, %v4110
        %v4143 = vadd.f32 %v2238, %v4111
        %v4144 = vadd.f32 %v2239, %v4112
        %v4145 = vadd.f32 %v2240, %v4113
        %v4146 = vadd.f32 %v2241, %v4114
        %v4147 = vadd.f32 %v2242, %v4115
        %v4148 = vadd.f32 %v2243, %v4116
        %v4149 = vadd.f32 %v2244, %v4117
        %v4150 = vadd.f32 %v2245, %v4118
        %v4151 = vadd.f32 %v2246, %v4119
        %v4152 = vadd.f32 %v2247, %v4120
        %v4153 = vadd.f32 %v2248, %v4121
        %v4154 = vadd.f32 %v2249, %v4122
        %v4155 = vadd.f32 %v2250, %v4123
        %v4156 = vadd.f32 %v2251, %v4124
        %v4157 = vadd.f32 %v2252, %v4125
        %v4158 = vadd.f32 %v2253, %v4126
        %v4159 = vadd.f32 %v2254, %v4127
        %4160 = vst [vmem:[%s304] sm:$0xff] %v4128
        %4161 = vst [vmem:[%s304 + $0x8] sm:$0xff] %v4129
        %4162 = vst [vmem:[%s304 + $0x10] sm:$0xff] %v4130
        %4163 = vst [vmem:[%s304 + $0x18] sm:$0xff] %v4131
        %4164 = vst [vmem:[%s304 + $0x20] sm:$0xff] %v4132
        %4165 = vst [vmem:[%s304 + $0x28] sm:$0xff] %v4133
        %4166 = vst [vmem:[%s304 + $0x30] sm:$0xff] %v4134
        %4167 = vst [vmem:[%s304 + $0x38] sm:$0xff] %v4135
        %4168 = vst [vmem:[%s304 + $0x40] sm:$0xff] %v4136
        %4169 = vst [vmem:[%s304 + $0x48] sm:$0xff] %v4137
        %4170 = vst [vmem:[%s304 + $0x50] sm:$0xff] %v4138
        %4171 = vst [vmem:[%s304 + $0x58] sm:$0xff] %v4139
        %4172 = vst [vmem:[%s304 + $0x60] sm:$0xff] %v4140
        %4173 = vst [vmem:[%s304 + $0x68] sm:$0xff] %v4141
        %4174 = vst [vmem:[%s304 + $0x70] sm:$0xff] %v4142
        %4175 = vst [vmem:[%s304 + $0x78] sm:$0xff] %v4143
        %4176 = vst [vmem:[%s304 + $0x80] sm:$0xff] %v4144
        %4177 = vst [vmem:[%s304 + $0x88] sm:$0xff] %v4145
        %4178 = vst [vmem:[%s304 + $0x90] sm:$0xff] %v4146
        %4179 = vst [vmem:[%s304 + $0x98] sm:$0xff] %v4147
        %4180 = vst [vmem:[%s304 + $0xa0] sm:$0xff] %v4148
        %4181 = vst [vmem:[%s304 + $0xa8] sm:$0xff] %v4149
        %4182 = vst [vmem:[%s304 + $0xb0] sm:$0xff] %v4150
        %4183 = vst [vmem:[%s304 + $0xb8] sm:$0xff] %v4151
        %4184 = vst [vmem:[%s304 + $0xc0] sm:$0xff] %v4152
        %4185 = vst [vmem:[%s304 + $0xc8] sm:$0xff] %v4153
        %4186 = vst [vmem:[%s304 + $0xd0] sm:$0xff] %v4154
        %4187 = vst [vmem:[%s304 + $0xd8] sm:$0xff] %v4155
        %4188 = vst [vmem:[%s304 + $0xe0] sm:$0xff] %v4156
        %4189 = vst [vmem:[%s304 + $0xe8] sm:$0xff] %v4157
        %4190 = vst [vmem:[%s304 + $0xf0] sm:$0xff] %v4158
        %4191 = vst [vmem:[%s304 + $0xf8] sm:$0xff] %v4159
      $region52: #{aag_forward.1} parent=39 // pred_fallthru
        _
      %p4192 = scmp.lt.s32.totalorder %s20, 1
      %s4193 = scalar_select %p4192, %s20, 1
      %s4194 = smul.addr %s4193, 32
      %s4195 = smul.addr %s4194, 8
      %s4196 = scalar_lea.vmem %s5, %s4195
      // Predicated region
      $region53: #{aag_forward.1} parent=39 // pred_check
        %p4197 = pneg %p176
      $region54: #{aag_forward.1} parent=39 // pred_check_branch
        %4199 = sbr.rel (%p4197) target = $region56
      $region55: #{aag_forward.1} parent=39 // pred_region
        _
      $region56: #{aag_forward.1} parent=39 // pred_fallthru
        _
    $region40: #{aag_forward.1} parent=5 // pred_fallthru
      _
    %p4200 = scmp.le.s32.totalorder 2, %s11
    // Predicated region
    $region57: #{aag_forward.1} parent=5 // pred_check
      %p4201 = pneg %p4200
    $region58: #{aag_forward.1} parent=5 // pred_check_branch
      %4203 = sbr.rel (%p4201) target = $region60
    $region59: #{aag_forward.1} parent=5 // pred_region
      %s4204 = ssub.s32 %s11, 2
      // Predicated region
      $region61: #{aag_forward.1} parent=59 // pred_check
        %p4205 = pneg %p182
      $region62: #{aag_forward.1} parent=59 // pred_check_branch
        %4207 = sbr.rel (%p4205) target = $region64
      $region63: #{aag_forward.1} parent=59 // pred_region
        %p4208 = scmp.lt.s32.totalorder %s22, 1
        %s4209 = scalar_select %p4208, %s22, 1
        %s4210 = smul.addr %s4209, 32
        %s4211 = smul.addr %s4210, 8
        %s4212 = scalar_lea.vmem %s5, %s4211
      $region64: #{aag_forward.1} parent=59 // pred_fallthru
        _
    $region60: #{aag_forward.1} parent=5 // pred_fallthru
      _
  $region6: #{aag_forward.1} parent=0 // loop_footer
    %s15 = sadd.s32 1, %s11
  $region7: #{aag_forward.1} parent=0 // loop_footer_branch
    %10 = sbr.rel target = $region3
  $region8: #{aag_forward.1} parent=0 // loop_exit
    _

</llo_original>
